<compile_context>
chip_gen: v6e
topology: v6e:2x2x1
jax: 0.10.0
libtpu: 0.0.40
codegen_flags: <defaults>
</compile_context>

<pallas_src>
import math
import functools

import jax
import jax.numpy as jnp
from jax import lax
from jax.experimental import pallas as pl
from jax.experimental.pallas import tpu as pltpu

LN_EPS = 1e-5
NEG_INF = -1e9

# kernel-side (packed) parameter order
PACKED_ORDER = [
    "wqkv1", "bqkv1", "wo1", "bo1",                  # self-attention (QKV fused, Q pre-scaled)
    "wq2", "bq2", "wkv2", "bkv2", "wo2", "bo2",      # cross-attention (KV fused, Q pre-scaled)
    "w1", "b1", "w2", "b2",                          # feed-forward
    "g1", "be1", "g2", "be2", "g3", "be3",           # layer norms
]


def _decoder_layer_kernel(
        tgt_len_ref, mem_len_ref,                    # scalar prefetch (SMEM)
        tgt_ref, mem_ref,
        wqkv1, bqkv1, wo1, bo1,
        wq2, bq2, wkv2, bkv2, wo2, bo2,
        w1, b1, w2, b2,
        g1, be1, g2, be2, g3, be3,
        out_ref,
        qkv1_s, kv2_s,                               # persistent VMEM scratch
        *, h, d_model, tq):
    D = d_model
    dk = D // h
    f32, bf16 = jnp.float32, jnp.bfloat16
    Lt = tgt_ref.shape[0]
    Ls = mem_ref.shape[0]

    b = pl.program_id(0)
    qt = pl.program_id(1)
    q0 = pl.multiple_of(qt * tq, tq)

    # ---- projections invariant along the q-tile axis: compute once per batch
    # element into persistent VMEM scratch (q axis is "arbitrary"). ------------
    @pl.when(qt == 0)
    def _():
        # fused self-attn Q/K/V: one (Lt,D)x(D,3D) matmul (Q scale folded in)
        qkv1_s[...] = (jnp.dot(tgt_ref[...], wqkv1[...],
                               preferred_element_type=f32) + bqkv1[...])
        # cross-attn K/V over the encoder memory
        kv2_s[...] = (jnp.dot(mem_ref[...], wkv2[...],
                              preferred_element_type=f32) + bkv2[...])

    def layernorm(x, g, beta):
        mu = jnp.mean(x, axis=-1, keepdims=True)
        var = jnp.mean((x - mu) ** 2, axis=-1, keepdims=True)
        return (x - mu) * lax.rsqrt(var + LN_EPS) * g[...] + beta[...]

    def softmax_rows(s):
        # numerically stable row softmax; reciprocal runs on the EUP slot
        s = s - jnp.max(s, axis=-1, keepdims=True)
        e = jnp.exp(s)
        return e * pl.reciprocal(jnp.sum(e, axis=-1, keepdims=True), approx=True)

    def mha(q_all, k_all, v_all, wo_ref, bo_ref, bias):
        # q_all: (tq, D) f32 (pre-scaled), k_all/v_all: (Lk, D) f32,
        # bias: (tq, Lk) additive f32 mask (built once, outside the head loop).
        # Per-head scores/contexts stay in registers; contexts are concatenated
        # in-register and the output projection is one full-depth matmul.
        ctxs = []
        for i in range(h):                                       # static head loop
            sl = slice(i * dk, (i + 1) * dk)
            qh = q_all[:, sl].astype(bf16)
            kh = k_all[:, sl].astype(bf16)
            vh = v_all[:, sl].astype(bf16)
            s = lax.dot_general(qh, kh, (((1,), (1,)), ((), ())),
                                preferred_element_type=f32)      # (tq, Lk)
            p = softmax_rows(s + bias).astype(bf16)
            ctxs.append(jnp.dot(p, vh, preferred_element_type=f32))
        ctx = jnp.concatenate(ctxs, axis=-1).astype(bf16)        # (tq, D) in vregs
        return jnp.dot(ctx, wo_ref[...], preferred_element_type=f32) + bo_ref[...]

    # ---- additive mask biases built in-kernel from iota + prefetched lengths --
    tgt_len = tgt_len_ref[b]
    mem_len = mem_len_ref[b]
    rows = lax.broadcasted_iota(jnp.int32, (tq, Lt), 0) + q0
    cols_t = lax.broadcasted_iota(jnp.int32, (tq, Lt), 1)
    self_bias = jnp.where((cols_t <= rows) & (cols_t < tgt_len),
                          0.0, NEG_INF).astype(f32)
    cols_s = lax.broadcasted_iota(jnp.int32, (tq, Ls), 1)
    mem_bias = jnp.where(cols_s < mem_len, 0.0, NEG_INF).astype(f32)

    # ---- 1) masked self-attention + residual + LayerNorm ----------------------
    x = tgt_ref[pl.ds(q0, tq), :].astype(f32)        # residual / query tile
    q1 = qkv1_s[pl.ds(q0, tq), pl.ds(0, D)]
    k1 = qkv1_s[:, pl.ds(D, D)]
    v1 = qkv1_s[:, pl.ds(2 * D, D)]
    sa = mha(q1, k1, v1, wo1, bo1, self_bias)
    x = layernorm(x + sa, g1, be1)

    # ---- 2) cross-attention over encoder memory + residual + LayerNorm --------
    q2 = jnp.dot(x.astype(bf16), wq2[...], preferred_element_type=f32) + bq2[...]
    k2 = kv2_s[:, pl.ds(0, D)]
    v2 = kv2_s[:, pl.ds(D, D)]
    ca = mha(q2, k2, v2, wo2, bo2, mem_bias)
    x = layernorm(x + ca, g2, be2)

    # ---- 3) position-wise feed-forward + residual + LayerNorm -----------------
    hid = jnp.maximum(jnp.dot(x.astype(bf16), w1[...],
                              preferred_element_type=f32) + b1[...], 0.0)
    ff = jnp.dot(hid.astype(bf16), w2[...], preferred_element_type=f32) + b2[...]
    x = layernorm(x + ff, g3, be3)

    out_ref[...] = x.astype(out_ref.dtype)


def _pack_params(p, *, h):
    """Fuse Q/K/V (self) and K/V (cross) weights, fold 1/sqrt(dk) into the Q
    projections, and cast matmul weights to bf16 (biases / LN stay f32)."""
    bf16, f32 = jnp.bfloat16, jnp.float32
    d_model = p["wq1"].shape[0]
    scale = 1.0 / math.sqrt(d_model // h)
    return {
        "wqkv1": jnp.concatenate([p["wq1"] * scale, p["wk1"], p["wv1"]],
                                 axis=1).astype(bf16),
        "bqkv1": jnp.concatenate([p["bq1"] * scale, p["bk1"], p["bv1"]],
                                 axis=1).astype(f32),
        "wo1": p["wo1"].astype(bf16), "bo1": p["bo1"].astype(f32),
        "wq2": (p["wq2"] * scale).astype(bf16), "bq2": (p["bq2"] * scale).astype(f32),
        "wkv2": jnp.concatenate([p["wk2"], p["wv2"]], axis=1).astype(bf16),
        "bkv2": jnp.concatenate([p["bk2"], p["bv2"]], axis=1).astype(f32),
        "wo2": p["wo2"].astype(bf16), "bo2": p["bo2"].astype(f32),
        "w1": p["w1"].astype(bf16), "b1": p["b1"].astype(f32),
        "w2": p["w2"].astype(bf16), "b2": p["b2"].astype(f32),
        "g1": p["g1"], "be1": p["be1"],
        "g2": p["g2"], "be2": p["be2"],
        "g3": p["g3"], "be3": p["be3"],
    }


def decoder_layer(tgt, memory, params, *, h, tgt_lens=None, mem_lens=None, tq=None):
    B, Lt, D = tgt.shape
    _, Ls, _ = memory.shape
    assert D % h == 0

    if tq is None:
        # whole target sequence for short targets; 128 for long ones keeps
        # vreg/VMEM pressure acceptable on v7x (pass tq=256 on v5e/v6e if desired)
        tq = Lt if Lt <= 256 else 128
    assert Lt % tq == 0, "target length must be divisible by the q-tile size"
    n_qt = Lt // tq

    if tgt_lens is None:
        tgt_lens = jnp.full((B,), Lt, jnp.int32)
    if mem_lens is None:
        mem_lens = jnp.full((B,), Ls, jnp.int32)
    tgt_lens = tgt_lens.astype(jnp.int32)
    mem_lens = mem_lens.astype(jnp.int32)

    packed = _pack_params(params, h=h)
    d_ff = packed["w1"].shape[1]

    # bf16 activations at the kernel boundary (matmuls run in bf16 anyway)
    tgt_bf = tgt.astype(jnp.bfloat16)
    mem_bf = memory.astype(jnp.bfloat16)

    def seq_spec(L):
        # squeezed batch dim -> kernel sees an (L, D) ref
        return pl.BlockSpec((None, L, D), lambda b, q, tl, ml: (b, 0, 0))

    in_specs = [seq_spec(Lt), seq_spec(Ls)]
    in_specs += [pl.BlockSpec(packed[k].shape, lambda b, q, tl, ml: (0, 0))
                 for k in PACKED_ORDER]
    out_spec = pl.BlockSpec((None, tq, D), lambda b, q, tl, ml: (b, q, 0))

    kernel = functools.partial(_decoder_layer_kernel, h=h, d_model=D, tq=tq)

    # VMEM budget derived from actual block sizes (double-buffered blocks +
    # persistent scratch + headroom for in-kernel temporaries), capped at 64 MiB.
    def nbytes(shape, dtype):
        return math.prod(shape) * jnp.dtype(dtype).itemsize
    weight_bytes = sum(nbytes(packed[k].shape, packed[k].dtype) for k in PACKED_ORDER)
    block_bytes = (nbytes((Lt, D), jnp.bfloat16) + nbytes((Ls, D), jnp.bfloat16)
                   + nbytes((tq, D), jnp.bfloat16))
    scratch_bytes = nbytes((Lt, 3 * D), jnp.float32) + nbytes((Ls, 2 * D), jnp.float32)
    vmem_limit = min(64 * 1024 * 1024,
                     2 * (block_bytes + weight_bytes) + scratch_bytes + (16 << 20))

    # advisory cost estimate (matmul MACs * 2, softmax exps, HBM bytes)
    flops = 2 * B * (
        Lt * D * 3 * D                                  # fused self-attn QKV proj
        + 2 * Lt * Lt * D + Lt * D * D                  # self-attn scores/ctx + out proj
        + Lt * D * D + Ls * D * 2 * D                   # cross-attn Q + fused KV proj
        + 2 * Lt * Ls * D + Lt * D * D                  # cross-attn scores/ctx + out proj
        + 2 * Lt * D * d_ff)                            # FFN
    transcendentals = B * h * (Lt * Lt + Lt * Ls)
    bytes_accessed = (tgt_bf.size * 2 + mem_bf.size * 2 + weight_bytes
                      + B * Lt * D * 2)
    cost = pl.CostEstimate(flops=int(flops),
                           transcendentals=int(transcendentals),
                           bytes_accessed=int(bytes_accessed))

    return pl.pallas_call(
        kernel,
        out_shape=jax.ShapeDtypeStruct((B, Lt, D), jnp.bfloat16),
        grid_spec=pltpu.PrefetchScalarGridSpec(
            num_scalar_prefetch=2,
            grid=(B, n_qt),
            in_specs=in_specs,
            out_specs=out_spec,
            scratch_shapes=[
                pltpu.VMEM((Lt, 3 * D), jnp.float32),   # cached self-attn Q/K/V
                pltpu.VMEM((Ls, 2 * D), jnp.float32),   # cached cross-attn K/V
            ]),
        compiler_params=pltpu.CompilerParams(
            dimension_semantics=("parallel", "arbitrary"),
            vmem_limit_bytes=int(vmem_limit)),
        cost_estimate=cost,
    )(tgt_lens, mem_lens, tgt_bf, mem_bf, *[packed[k] for k in PACKED_ORDER])


def init_params(key, d_model, h, d_ff):
    def linear_init(k, fan_in, fan_out):
        bound = 1.0 / math.sqrt(fan_in)
        kw, kb = jax.random.split(k)
        w = jax.random.uniform(kw, (fan_in, fan_out), jnp.float32, -bound, bound)
        b = jax.random.uniform(kb, (1, fan_out), jnp.float32, -bound, bound)
        return w, b

    keys = jax.random.split(key, 10)
    p = {}
    p["wq1"], p["bq1"] = linear_init(keys[0], d_model, d_model)
    p["wk1"], p["bk1"] = linear_init(keys[1], d_model, d_model)
    p["wv1"], p["bv1"] = linear_init(keys[2], d_model, d_model)
    p["wo1"], p["bo1"] = linear_init(keys[3], d_model, d_model)
    p["wq2"], p["bq2"] = linear_init(keys[4], d_model, d_model)
    p["wk2"], p["bk2"] = linear_init(keys[5], d_model, d_model)
    p["wv2"], p["bv2"] = linear_init(keys[6], d_model, d_model)
    p["wo2"], p["bo2"] = linear_init(keys[7], d_model, d_model)
    p["w1"], p["b1"] = linear_init(keys[8], d_model, d_ff)
    p["w2"], p["b2"] = linear_init(keys[9], d_ff, d_model)
    for n in ("1", "2", "3"):
        p["g" + n] = jnp.ones((1, d_model), jnp.float32)
        p["be" + n] = jnp.zeros((1, d_model), jnp.float32)
    return p


def ref_forward(tgt, memory, tmask, mmask, p, *, h):
    """Pure-JAX f32 reference (inference mode, dropout = identity).
    Masks are (B, Lq, Lk), >0 means attend."""
    def mha(xq, xkv, wq, bq, wk, bk, wv, bv, wo, bo, mask):
        B, Lq, D = xq.shape
        dk = D // h
        Q = xq @ wq + bq
        K = xkv @ wk + bk
        V = xkv @ wv + bv
        Qh = Q.reshape(B, Lq, h, dk).transpose(0, 2, 1, 3)
        Kh = K.reshape(B, -1, h, dk).transpose(0, 2, 1, 3)
        Vh = V.reshape(B, -1, h, dk).transpose(0, 2, 1, 3)
        s = jnp.einsum("bhqd,bhkd->bhqk", Qh, Kh) / math.sqrt(dk)
        s = jnp.where(mask[:, None] > 0, s, NEG_INF)
        a = jax.nn.softmax(s, axis=-1)
        ctx = jnp.einsum("bhqk,bhkd->bhqd", a, Vh).transpose(0, 2, 1, 3).reshape(B, Lq, D)
        return ctx @ wo + bo

    def ln(x, g, b):
        mu = x.mean(-1, keepdims=True)
        var = ((x - mu) ** 2).mean(-1, keepdims=True)
        return (x - mu) / jnp.sqrt(var + LN_EPS) * g + b

    x = ln(tgt + mha(tgt, tgt, p["wq1"], p["bq1"], p["wk1"], p["bk1"],
                     p["wv1"], p["bv1"], p["wo1"], p["bo1"], tmask),
           p["g1"], p["be1"])
    x = ln(x + mha(x, memory, p["wq2"], p["bq2"], p["wk2"], p["bk2"],
                   p["wv2"], p["bv2"], p["wo2"], p["bo2"], mmask),
           p["g2"], p["be2"])
    hid = jnp.maximum(x @ p["w1"] + p["b1"], 0.0)
    ff = hid @ p["w2"] + p["b2"]
    return ln(x + ff, p["g3"], p["be3"])


if __name__ == "__main__":
    B, Lt, Ls = 2, 8, 16
    D, H, D_FF = 128, 4, 256      # D=128 keeps every block lane-dense

    key = jax.random.PRNGKey(0)
    k_tgt, k_mem, k_par = jax.random.split(key, 3)

    tgt = jax.random.normal(k_tgt, (B, Lt, D), jnp.float32)
    memory = jax.random.normal(k_mem, (B, Ls, D), jnp.float32)
    params = init_params(k_par, D, H, D_FF)

    # per-batch valid lengths (causal look-ahead mask is generated in-kernel)
    tgt_lens = jnp.array([Lt, Lt - 2], jnp.int32)
    mem_lens = jnp.array([Ls, Ls - 4], jnp.int32)

    out = decoder_layer(tgt, memory, params, h=H,
                        tgt_lens=tgt_lens, mem_lens=mem_lens)
    out = jax.block_until_ready(out)

    # reference masks equivalent to the in-kernel causal + length-padding masks
    causal = jnp.tril(jnp.ones((Lt, Lt), jnp.float32))
    tpad = (jnp.arange(Lt)[None, :] < tgt_lens[:, None]).astype(jnp.float32)
    tgt_mask = causal[None, :, :] * tpad[:, None, :]                    # (B, Lt, Lt)
    mpad = (jnp.arange(Ls)[None, :] < mem_lens[:, None]).astype(jnp.float32)
    memory_mask = jnp.broadcast_to(mpad[:, None, :], (B, Lt, Ls))       # (B, Lt, Ls)

    ref = ref_forward(tgt, memory, tgt_mask, memory_mask, params, h=H)

    assert out.shape == (B, Lt, D)
    out_f32 = out.astype(jnp.float32)
    max_err = float(jnp.max(jnp.abs(out_f32 - ref)))
    assert jnp.allclose(out_f32, ref, atol=5e-2, rtol=5e-2), (
        f"max abs diff {max_err}")

    print("KERNEL_OK")
</pallas_src>

<mosaic_0001>
module attributes {stable_mosaic.version = 11 : i64} {
  func.func @_decoder_layer_kernel(%arg0: i32, %arg1: i32, %arg2: memref<2xi32, #tpu.memory_space<smem>>, %arg3: memref<2xi32, #tpu.memory_space<smem>>, %arg4: memref<1x8x128xbf16, #tpu.memory_space<vmem>>, %arg5: memref<1x16x128xbf16, #tpu.memory_space<vmem>>, %arg6: memref<128x384xbf16, #tpu.memory_space<vmem>>, %arg7: memref<1x384xf32, #tpu.memory_space<vmem>>, %arg8: memref<128x128xbf16, #tpu.memory_space<vmem>>, %arg9: memref<1x128xf32, #tpu.memory_space<vmem>>, %arg10: memref<128x128xbf16, #tpu.memory_space<vmem>>, %arg11: memref<1x128xf32, #tpu.memory_space<vmem>>, %arg12: memref<128x256xbf16, #tpu.memory_space<vmem>>, %arg13: memref<1x256xf32, #tpu.memory_space<vmem>>, %arg14: memref<128x128xbf16, #tpu.memory_space<vmem>>, %arg15: memref<1x128xf32, #tpu.memory_space<vmem>>, %arg16: memref<128x256xbf16, #tpu.memory_space<vmem>>, %arg17: memref<1x256xf32, #tpu.memory_space<vmem>>, %arg18: memref<256x128xbf16, #tpu.memory_space<vmem>>, %arg19: memref<1x128xf32, #tpu.memory_space<vmem>>, %arg20: memref<1x128xf32, #tpu.memory_space<vmem>>, %arg21: memref<1x128xf32, #tpu.memory_space<vmem>>, %arg22: memref<1x128xf32, #tpu.memory_space<vmem>>, %arg23: memref<1x128xf32, #tpu.memory_space<vmem>>, %arg24: memref<1x128xf32, #tpu.memory_space<vmem>>, %arg25: memref<1x128xf32, #tpu.memory_space<vmem>>, %arg26: memref<1x8x128xbf16, #tpu.memory_space<vmem>>, %arg27: memref<8x384xf32, #tpu.memory_space<vmem>>, %arg28: memref<16x256xf32, #tpu.memory_space<vmem>>) attributes {dimension_semantics = [#tpu.dimension_semantics<parallel>, #tpu.dimension_semantics<arbitrary>], iteration_bounds = array<i64: 2, 1>, scalar_prefetch = 2 : i64, scratch_operands = 2 : i64, tpu.core_type = #tpu.core_type<tc>, window_params = [{transform_indices = @transform_0, window_bounds = array<i64: 1, 8, 128>}, {transform_indices = @transform_1, window_bounds = array<i64: 1, 16, 128>}, {pipeline_mode = #tpu.pipeline_mode<synchronous>, transform_indices = @transform_2, window_bounds = array<i64: 128, 384>}, {pipeline_mode = #tpu.pipeline_mode<synchronous>, transform_indices = @transform_3, window_bounds = array<i64: 1, 384>}, {pipeline_mode = #tpu.pipeline_mode<synchronous>, transform_indices = @transform_4, window_bounds = array<i64: 128, 128>}, {pipeline_mode = #tpu.pipeline_mode<synchronous>, transform_indices = @transform_5, window_bounds = array<i64: 1, 128>}, {pipeline_mode = #tpu.pipeline_mode<synchronous>, transform_indices = @transform_6, window_bounds = array<i64: 128, 128>}, {pipeline_mode = #tpu.pipeline_mode<synchronous>, transform_indices = @transform_7, window_bounds = array<i64: 1, 128>}, {pipeline_mode = #tpu.pipeline_mode<synchronous>, transform_indices = @transform_8, window_bounds = array<i64: 128, 256>}, {pipeline_mode = #tpu.pipeline_mode<synchronous>, transform_indices = @transform_9, window_bounds = array<i64: 1, 256>}, {pipeline_mode = #tpu.pipeline_mode<synchronous>, transform_indices = @transform_10, window_bounds = array<i64: 128, 128>}, {pipeline_mode = #tpu.pipeline_mode<synchronous>, transform_indices = @transform_11, window_bounds = array<i64: 1, 128>}, {pipeline_mode = #tpu.pipeline_mode<synchronous>, transform_indices = @transform_12, window_bounds = array<i64: 128, 256>}, {pipeline_mode = #tpu.pipeline_mode<synchronous>, transform_indices = @transform_13, window_bounds = array<i64: 1, 256>}, {pipeline_mode = #tpu.pipeline_mode<synchronous>, transform_indices = @transform_14, window_bounds = array<i64: 256, 128>}, {pipeline_mode = #tpu.pipeline_mode<synchronous>, transform_indices = @transform_15, window_bounds = array<i64: 1, 128>}, {pipeline_mode = #tpu.pipeline_mode<synchronous>, transform_indices = @transform_16, window_bounds = array<i64: 1, 128>}, {pipeline_mode = #tpu.pipeline_mode<synchronous>, transform_indices = @transform_17, window_bounds = array<i64: 1, 128>}, {pipeline_mode = #tpu.pipeline_mode<synchronous>, transform_indices = @transform_18, window_bounds = array<i64: 1, 128>}, {pipeline_mode = #tpu.pipeline_mode<synchronous>, transform_indices = @transform_19, window_bounds = array<i64: 1, 128>}, {pipeline_mode = #tpu.pipeline_mode<synchronous>, transform_indices = @transform_20, window_bounds = array<i64: 1, 128>}, {pipeline_mode = #tpu.pipeline_mode<synchronous>, transform_indices = @transform_21, window_bounds = array<i64: 1, 128>}, {transform_indices = @transform_22, window_bounds = array<i64: 1, 8, 128>}]} {
    %c8_i32 = arith.constant 8 : i32
    %0 = arith.muli %arg1, %c8_i32 : i32
    %1 = tpu.assume_multiple %0, 8 : i32
    %c0_i32 = arith.constant 0 : i32
    %2 = arith.cmpi eq, %arg1, %c0_i32 : i32
    %3 = arith.extui %2 : i1 to i32
    %c0_i32_0 = arith.constant 0 : i32
    %4 = arith.cmpi ne, %3, %c0_i32_0 : i32
    scf.if %4 {
      %c0_100 = arith.constant 0 : index
      %c0_101 = arith.constant 0 : index
      %c0_102 = arith.constant 0 : index
      %309 = vector.load %arg4[%c0_100, %c0_101, %c0_102] : memref<1x8x128xbf16, #tpu.memory_space<vmem>>, vector<1x8x128xbf16>
      %310 = vector.shape_cast %309 : vector<1x8x128xbf16> to vector<8x128xbf16>
      %c0_103 = arith.constant 0 : index
      %c0_104 = arith.constant 0 : index
      %311 = vector.load %arg6[%c0_103, %c0_104] : memref<128x384xbf16, #tpu.memory_space<vmem>>, vector<128x384xbf16>
      %cst_105 = arith.constant dense<0.000000e+00> : vector<8x384xf32>
      %312 = tpu.matmul %310, %311, %cst_105 {dimension_numbers = #tpu.dot_dimension_numbers<[1], [0], [0], [1], [0, 0, 1, 1], [], []>} : vector<8x128xbf16>, vector<128x384xbf16>, vector<8x384xf32> -> vector<8x384xf32>
      %c0_106 = arith.constant 0 : index
      %c0_107 = arith.constant 0 : index
      %313 = vector.load %arg7[%c0_106, %c0_107] : memref<1x384xf32, #tpu.memory_space<vmem>>, vector<1x384xf32>
      %314 = vector.broadcast %313 : vector<1x384xf32> to vector<8x384xf32>
      %315 = arith.addf %312, %314 : vector<8x384xf32>
      %c0_108 = arith.constant 0 : index
      %c0_109 = arith.constant 0 : index
      %316 = vector.load %arg27[%c0_108, %c0_109] : memref<8x384xf32, #tpu.memory_space<vmem>>, vector<8x384xf32>
      tpu.vector_store %arg27[%c0_108, %c0_109], %315 {strides = array<i32>} : memref<8x384xf32, #tpu.memory_space<vmem>>, vector<8x384xf32>,
      %c0_110 = arith.constant 0 : index
      %c0_111 = arith.constant 0 : index
      %c0_112 = arith.constant 0 : index
      %317 = vector.load %arg5[%c0_110, %c0_111, %c0_112] : memref<1x16x128xbf16, #tpu.memory_space<vmem>>, vector<1x16x128xbf16>
      %318 = vector.shape_cast %317 : vector<1x16x128xbf16> to vector<16x128xbf16>
      %c0_113 = arith.constant 0 : index
      %c0_114 = arith.constant 0 : index
      %319 = vector.load %arg12[%c0_113, %c0_114] : memref<128x256xbf16, #tpu.memory_space<vmem>>, vector<128x256xbf16>
      %cst_115 = arith.constant dense<0.000000e+00> : vector<16x256xf32>
      %320 = tpu.matmul %318, %319, %cst_115 {dimension_numbers = #tpu.dot_dimension_numbers<[1], [0], [0], [1], [0, 0, 1, 1], [], []>} : vector<16x128xbf16>, vector<128x256xbf16>, vector<16x256xf32> -> vector<16x256xf32>
      %c0_116 = arith.constant 0 : index
      %c0_117 = arith.constant 0 : index
      %321 = vector.load %arg13[%c0_116, %c0_117] : memref<1x256xf32, #tpu.memory_space<vmem>>, vector<1x256xf32>
      %322 = vector.broadcast %321 : vector<1x256xf32> to vector<16x256xf32>
      %323 = arith.addf %320, %322 : vector<16x256xf32>
      %c0_118 = arith.constant 0 : index
      %c0_119 = arith.constant 0 : index
      %324 = vector.load %arg28[%c0_118, %c0_119] : memref<16x256xf32, #tpu.memory_space<vmem>>, vector<16x256xf32>
      tpu.vector_store %arg28[%c0_118, %c0_119], %323 {strides = array<i32>} : memref<16x256xf32, #tpu.memory_space<vmem>>, vector<16x256xf32>,
    } else {
    }
    %5 = arith.index_cast %arg0 : i32 to index
    %6 = memref.load %arg2[%5] : memref<2xi32, #tpu.memory_space<smem>>
    %7 = arith.index_cast %arg0 : i32 to index
    %8 = memref.load %arg3[%7] : memref<2xi32, #tpu.memory_space<smem>>
    %9 = tpu.iota {dimensions = array<i32: 0>} : vector<8x8xi32>
    %10 = vector.broadcast %1 : i32 to vector<8x8xi32>
    %11 = arith.addi %9, %10 : vector<8x8xi32>
    %12 = tpu.iota {dimensions = array<i32: 1>} : vector<8x8xi32>
    %13 = arith.cmpi sle, %12, %11 : vector<8x8xi32>
    %14 = vector.broadcast %6 : i32 to vector<8x8xi32>
    %15 = arith.cmpi slt, %12, %14 : vector<8x8xi32>
    %16 = arith.andi %13, %15 : vector<8x8xi1>
    %cst = arith.constant 0.000000e+00 : f32
    %cst_1 = arith.constant -1.000000e+09 : f32
    %17 = vector.broadcast %cst : f32 to vector<8x8xf32>
    %18 = vector.broadcast %cst_1 : f32 to vector<8x8xf32>
    %19 = arith.select %16, %17, %18 : vector<8x8xi1>, vector<8x8xf32>
    %20 = tpu.iota {dimensions = array<i32: 1>} : vector<8x16xi32>
    %21 = vector.broadcast %8 : i32 to vector<8x16xi32>
    %22 = arith.cmpi slt, %20, %21 : vector<8x16xi32>
    %cst_2 = arith.constant 0.000000e+00 : f32
    %cst_3 = arith.constant -1.000000e+09 : f32
    %23 = vector.broadcast %cst_2 : f32 to vector<8x16xf32>
    %24 = vector.broadcast %cst_3 : f32 to vector<8x16xf32>
    %25 = arith.select %22, %23, %24 : vector<8x16xi1>, vector<8x16xf32>
    %c0 = arith.constant 0 : index
    %26 = arith.index_cast %1 : i32 to index
    %c0_4 = arith.constant 0 : index
    %27 = vector.load %arg4[%c0, %26, %c0_4] : memref<1x8x128xbf16, #tpu.memory_space<vmem>>, vector<1x8x128xbf16>
    %28 = vector.shape_cast %27 : vector<1x8x128xbf16> to vector<8x128xbf16>
    %29 = arith.extf %28 : vector<8x128xbf16> to vector<8x128xf32>
    %30 = arith.index_cast %1 : i32 to index
    %c0_5 = arith.constant 0 : index
    %31 = vector.load %arg27[%30, %c0_5] : memref<8x384xf32, #tpu.memory_space<vmem>>, vector<8x128xf32>
    %c0_6 = arith.constant 0 : index
    %c128 = arith.constant 128 : index
    %32 = vector.load %arg27[%c0_6, %c128] : memref<8x384xf32, #tpu.memory_space<vmem>>, vector<8x128xf32>
    %c0_7 = arith.constant 0 : index
    %c256 = arith.constant 256 : index
    %33 = vector.load %arg27[%c0_7, %c256] : memref<8x384xf32, #tpu.memory_space<vmem>>, vector<8x128xf32>
    %34 = vector.extract_strided_slice %31 {offsets = [0, 0], sizes = [8, 32], strides = [1, 1]} : vector<8x128xf32> to vector<8x32xf32>
    %35 = arith.truncf %34 : vector<8x32xf32> to vector<8x32xbf16>
    %36 = vector.extract_strided_slice %32 {offsets = [0, 0], sizes = [8, 32], strides = [1, 1]} : vector<8x128xf32> to vector<8x32xf32>
    %37 = arith.truncf %36 : vector<8x32xf32> to vector<8x32xbf16>
    %38 = vector.extract_strided_slice %33 {offsets = [0, 0], sizes = [8, 32], strides = [1, 1]} : vector<8x128xf32> to vector<8x32xf32>
    %39 = arith.truncf %38 : vector<8x32xf32> to vector<8x32xbf16>
    %cst_8 = arith.constant dense<0.000000e+00> : vector<8x8xf32>
    %40 = tpu.matmul %35, %37, %cst_8 {dimension_numbers = #tpu.dot_dimension_numbers<[1], [1], [0], [0], [0, 0, 1, 0], [], []>} : vector<8x32xbf16>, vector<8x32xbf16>, vector<8x8xf32> -> vector<8x8xf32>
    %41 = arith.addf %40, %19 : vector<8x8xf32>
    %cst_9 = arith.constant dense<0xFF800000> : vector<8xf32>
    %42 = vector.multi_reduction <maximumf>, %41, %cst_9 [1] : vector<8x8xf32> to vector<8xf32>
    %43 = vector.shape_cast %42 : vector<8xf32> to vector<8x1xf32>
    %44 = vector.broadcast %43 : vector<8x1xf32> to vector<8x8xf32>
    %45 = arith.subf %41, %44 : vector<8x8xf32>
    %46 = math.exp %45 : vector<8x8xf32>
    %cst_10 = arith.constant dense<0.000000e+00> : vector<8xf32>
    %47 = vector.multi_reduction <add>, %46, %cst_10 [1] : vector<8x8xf32> to vector<8xf32>
    %48 = vector.shape_cast %47 : vector<8xf32> to vector<8x1xf32>
    %49 = tpu.reciprocal %48 {approx = true} : vector<8x1xf32> -> vector<8x1xf32>
    %50 = vector.broadcast %49 : vector<8x1xf32> to vector<8x8xf32>
    %51 = arith.mulf %46, %50 : vector<8x8xf32>
    %52 = arith.truncf %51 : vector<8x8xf32> to vector<8x8xbf16>
    %cst_11 = arith.constant dense<0.000000e+00> : vector<8x32xf32>
    %53 = tpu.matmul %52, %39, %cst_11 {dimension_numbers = #tpu.dot_dimension_numbers<[1], [0], [0], [1], [0, 0, 1, 1], [], []>} : vector<8x8xbf16>, vector<8x32xbf16>, vector<8x32xf32> -> vector<8x32xf32>
    %54 = vector.extract_strided_slice %31 {offsets = [0, 32], sizes = [8, 32], strides = [1, 1]} : vector<8x128xf32> to vector<8x32xf32>
    %55 = arith.truncf %54 : vector<8x32xf32> to vector<8x32xbf16>
    %56 = vector.extract_strided_slice %32 {offsets = [0, 32], sizes = [8, 32], strides = [1, 1]} : vector<8x128xf32> to vector<8x32xf32>
    %57 = arith.truncf %56 : vector<8x32xf32> to vector<8x32xbf16>
    %58 = vector.extract_strided_slice %33 {offsets = [0, 32], sizes = [8, 32], strides = [1, 1]} : vector<8x128xf32> to vector<8x32xf32>
    %59 = arith.truncf %58 : vector<8x32xf32> to vector<8x32xbf16>
    %cst_12 = arith.constant dense<0.000000e+00> : vector<8x8xf32>
    %60 = tpu.matmul %55, %57, %cst_12 {dimension_numbers = #tpu.dot_dimension_numbers<[1], [1], [0], [0], [0, 0, 1, 0], [], []>} : vector<8x32xbf16>, vector<8x32xbf16>, vector<8x8xf32> -> vector<8x8xf32>
    %61 = arith.addf %60, %19 : vector<8x8xf32>
    %cst_13 = arith.constant dense<0xFF800000> : vector<8xf32>
    %62 = vector.multi_reduction <maximumf>, %61, %cst_13 [1] : vector<8x8xf32> to vector<8xf32>
    %63 = vector.shape_cast %62 : vector<8xf32> to vector<8x1xf32>
    %64 = vector.broadcast %63 : vector<8x1xf32> to vector<8x8xf32>
    %65 = arith.subf %61, %64 : vector<8x8xf32>
    %66 = math.exp %65 : vector<8x8xf32>
    %cst_14 = arith.constant dense<0.000000e+00> : vector<8xf32>
    %67 = vector.multi_reduction <add>, %66, %cst_14 [1] : vector<8x8xf32> to vector<8xf32>
    %68 = vector.shape_cast %67 : vector<8xf32> to vector<8x1xf32>
    %69 = tpu.reciprocal %68 {approx = true} : vector<8x1xf32> -> vector<8x1xf32>
    %70 = vector.broadcast %69 : vector<8x1xf32> to vector<8x8xf32>
    %71 = arith.mulf %66, %70 : vector<8x8xf32>
    %72 = arith.truncf %71 : vector<8x8xf32> to vector<8x8xbf16>
    %cst_15 = arith.constant dense<0.000000e+00> : vector<8x32xf32>
    %73 = tpu.matmul %72, %59, %cst_15 {dimension_numbers = #tpu.dot_dimension_numbers<[1], [0], [0], [1], [0, 0, 1, 1], [], []>} : vector<8x8xbf16>, vector<8x32xbf16>, vector<8x32xf32> -> vector<8x32xf32>
    %74 = vector.extract_strided_slice %31 {offsets = [0, 64], sizes = [8, 32], strides = [1, 1]} : vector<8x128xf32> to vector<8x32xf32>
    %75 = arith.truncf %74 : vector<8x32xf32> to vector<8x32xbf16>
    %76 = vector.extract_strided_slice %32 {offsets = [0, 64], sizes = [8, 32], strides = [1, 1]} : vector<8x128xf32> to vector<8x32xf32>
    %77 = arith.truncf %76 : vector<8x32xf32> to vector<8x32xbf16>
    %78 = vector.extract_strided_slice %33 {offsets = [0, 64], sizes = [8, 32], strides = [1, 1]} : vector<8x128xf32> to vector<8x32xf32>
    %79 = arith.truncf %78 : vector<8x32xf32> to vector<8x32xbf16>
    %cst_16 = arith.constant dense<0.000000e+00> : vector<8x8xf32>
    %80 = tpu.matmul %75, %77, %cst_16 {dimension_numbers = #tpu.dot_dimension_numbers<[1], [1], [0], [0], [0, 0, 1, 0], [], []>} : vector<8x32xbf16>, vector<8x32xbf16>, vector<8x8xf32> -> vector<8x8xf32>
    %81 = arith.addf %80, %19 : vector<8x8xf32>
    %cst_17 = arith.constant dense<0xFF800000> : vector<8xf32>
    %82 = vector.multi_reduction <maximumf>, %81, %cst_17 [1] : vector<8x8xf32> to vector<8xf32>
    %83 = vector.shape_cast %82 : vector<8xf32> to vector<8x1xf32>
    %84 = vector.broadcast %83 : vector<8x1xf32> to vector<8x8xf32>
    %85 = arith.subf %81, %84 : vector<8x8xf32>
    %86 = math.exp %85 : vector<8x8xf32>
    %cst_18 = arith.constant dense<0.000000e+00> : vector<8xf32>
    %87 = vector.multi_reduction <add>, %86, %cst_18 [1] : vector<8x8xf32> to vector<8xf32>
    %88 = vector.shape_cast %87 : vector<8xf32> to vector<8x1xf32>
    %89 = tpu.reciprocal %88 {approx = true} : vector<8x1xf32> -> vector<8x1xf32>
    %90 = vector.broadcast %89 : vector<8x1xf32> to vector<8x8xf32>
    %91 = arith.mulf %86, %90 : vector<8x8xf32>
    %92 = arith.truncf %91 : vector<8x8xf32> to vector<8x8xbf16>
    %cst_19 = arith.constant dense<0.000000e+00> : vector<8x32xf32>
    %93 = tpu.matmul %92, %79, %cst_19 {dimension_numbers = #tpu.dot_dimension_numbers<[1], [0], [0], [1], [0, 0, 1, 1], [], []>} : vector<8x8xbf16>, vector<8x32xbf16>, vector<8x32xf32> -> vector<8x32xf32>
    %94 = vector.extract_strided_slice %31 {offsets = [0, 96], sizes = [8, 32], strides = [1, 1]} : vector<8x128xf32> to vector<8x32xf32>
    %95 = arith.truncf %94 : vector<8x32xf32> to vector<8x32xbf16>
    %96 = vector.extract_strided_slice %32 {offsets = [0, 96], sizes = [8, 32], strides = [1, 1]} : vector<8x128xf32> to vector<8x32xf32>
    %97 = arith.truncf %96 : vector<8x32xf32> to vector<8x32xbf16>
    %98 = vector.extract_strided_slice %33 {offsets = [0, 96], sizes = [8, 32], strides = [1, 1]} : vector<8x128xf32> to vector<8x32xf32>
    %99 = arith.truncf %98 : vector<8x32xf32> to vector<8x32xbf16>
    %cst_20 = arith.constant dense<0.000000e+00> : vector<8x8xf32>
    %100 = tpu.matmul %95, %97, %cst_20 {dimension_numbers = #tpu.dot_dimension_numbers<[1], [1], [0], [0], [0, 0, 1, 0], [], []>} : vector<8x32xbf16>, vector<8x32xbf16>, vector<8x8xf32> -> vector<8x8xf32>
    %101 = arith.addf %100, %19 : vector<8x8xf32>
    %cst_21 = arith.constant dense<0xFF800000> : vector<8xf32>
    %102 = vector.multi_reduction <maximumf>, %101, %cst_21 [1] : vector<8x8xf32> to vector<8xf32>
    %103 = vector.shape_cast %102 : vector<8xf32> to vector<8x1xf32>
    %104 = vector.broadcast %103 : vector<8x1xf32> to vector<8x8xf32>
    %105 = arith.subf %101, %104 : vector<8x8xf32>
    %106 = math.exp %105 : vector<8x8xf32>
    %cst_22 = arith.constant dense<0.000000e+00> : vector<8xf32>
    %107 = vector.multi_reduction <add>, %106, %cst_22 [1] : vector<8x8xf32> to vector<8xf32>
    %108 = vector.shape_cast %107 : vector<8xf32> to vector<8x1xf32>
    %109 = tpu.reciprocal %108 {approx = true} : vector<8x1xf32> -> vector<8x1xf32>
    %110 = vector.broadcast %109 : vector<8x1xf32> to vector<8x8xf32>
    %111 = arith.mulf %106, %110 : vector<8x8xf32>
    %112 = arith.truncf %111 : vector<8x8xf32> to vector<8x8xbf16>
    %cst_23 = arith.constant dense<0.000000e+00> : vector<8x32xf32>
    %113 = tpu.matmul %112, %99, %cst_23 {dimension_numbers = #tpu.dot_dimension_numbers<[1], [0], [0], [1], [0, 0, 1, 1], [], []>} : vector<8x8xbf16>, vector<8x32xbf16>, vector<8x32xf32> -> vector<8x32xf32>
    %114 = tpu.concatenate %53, %73, %93, %113 in 1 : vector<8x32xf32>, vector<8x32xf32>, vector<8x32xf32>, vector<8x32xf32> -> vector<8x128xf32>
    %115 = arith.truncf %114 : vector<8x128xf32> to vector<8x128xbf16>
    %c0_24 = arith.constant 0 : index
    %c0_25 = arith.constant 0 : index
    %116 = vector.load %arg8[%c0_24, %c0_25] : memref<128x128xbf16, #tpu.memory_space<vmem>>, vector<128x128xbf16>
    %cst_26 = arith.constant dense<0.000000e+00> : vector<8x128xf32>
    %117 = tpu.matmul %115, %116, %cst_26 {dimension_numbers = #tpu.dot_dimension_numbers<[1], [0], [0], [1], [0, 0, 1, 1], [], []>} : vector<8x128xbf16>, vector<128x128xbf16>, vector<8x128xf32> -> vector<8x128xf32>
    %c0_27 = arith.constant 0 : index
    %c0_28 = arith.constant 0 : index
    %118 = vector.load %arg9[%c0_27, %c0_28] : memref<1x128xf32, #tpu.memory_space<vmem>>, vector<1x128xf32>
    %119 = vector.broadcast %118 : vector<1x128xf32> to vector<8x128xf32>
    %120 = arith.addf %117, %119 : vector<8x128xf32>
    %121 = arith.addf %29, %120 : vector<8x128xf32>
    %cst_29 = arith.constant dense<0.000000e+00> : vector<8xf32>
    %122 = vector.multi_reduction <add>, %121, %cst_29 [1] : vector<8x128xf32> to vector<8xf32>
    %123 = vector.shape_cast %122 : vector<8xf32> to vector<8x1xf32>
    %cst_30 = arith.constant 1.280000e+02 : f32
    %124 = vector.broadcast %cst_30 : f32 to vector<8x1xf32>
    %125 = arith.divf %123, %124 : vector<8x1xf32>
    %126 = vector.broadcast %125 : vector<8x1xf32> to vector<8x128xf32>
    %127 = arith.subf %121, %126 : vector<8x128xf32>
    %128 = arith.mulf %127, %127 : vector<8x128xf32>
    %cst_31 = arith.constant dense<0.000000e+00> : vector<8xf32>
    %129 = vector.multi_reduction <add>, %128, %cst_31 [1] : vector<8x128xf32> to vector<8xf32>
    %130 = vector.shape_cast %129 : vector<8xf32> to vector<8x1xf32>
    %cst_32 = arith.constant 1.280000e+02 : f32
    %131 = vector.broadcast %cst_32 : f32 to vector<8x1xf32>
    %132 = arith.divf %130, %131 : vector<8x1xf32>
    %133 = vector.broadcast %125 : vector<8x1xf32> to vector<8x128xf32>
    %134 = arith.subf %121, %133 : vector<8x128xf32>
    %cst_33 = arith.constant 9.99999974E-6 : f32
    %135 = vector.broadcast %cst_33 : f32 to vector<8x1xf32>
    %136 = arith.addf %132, %135 : vector<8x1xf32>
    %137 = math.rsqrt %136 : vector<8x1xf32>
    %138 = vector.broadcast %137 : vector<8x1xf32> to vector<8x128xf32>
    %139 = arith.mulf %134, %138 : vector<8x128xf32>
    %c0_34 = arith.constant 0 : index
    %c0_35 = arith.constant 0 : index
    %140 = vector.load %arg20[%c0_34, %c0_35] : memref<1x128xf32, #tpu.memory_space<vmem>>, vector<1x128xf32>
    %141 = vector.broadcast %140 : vector<1x128xf32> to vector<8x128xf32>
    %142 = arith.mulf %139, %141 : vector<8x128xf32>
    %c0_36 = arith.constant 0 : index
    %c0_37 = arith.constant 0 : index
    %143 = vector.load %arg21[%c0_36, %c0_37] : memref<1x128xf32, #tpu.memory_space<vmem>>, vector<1x128xf32>
    %144 = vector.broadcast %143 : vector<1x128xf32> to vector<8x128xf32>
    %145 = arith.addf %142, %144 : vector<8x128xf32>
    %146 = arith.truncf %145 : vector<8x128xf32> to vector<8x128xbf16>
    %c0_38 = arith.constant 0 : index
    %c0_39 = arith.constant 0 : index
    %147 = vector.load %arg10[%c0_38, %c0_39] : memref<128x128xbf16, #tpu.memory_space<vmem>>, vector<128x128xbf16>
    %cst_40 = arith.constant dense<0.000000e+00> : vector<8x128xf32>
    %148 = tpu.matmul %146, %147, %cst_40 {dimension_numbers = #tpu.dot_dimension_numbers<[1], [0], [0], [1], [0, 0, 1, 1], [], []>} : vector<8x128xbf16>, vector<128x128xbf16>, vector<8x128xf32> -> vector<8x128xf32>
    %c0_41 = arith.constant 0 : index
    %c0_42 = arith.constant 0 : index
    %149 = vector.load %arg11[%c0_41, %c0_42] : memref<1x128xf32, #tpu.memory_space<vmem>>, vector<1x128xf32>
    %150 = vector.broadcast %149 : vector<1x128xf32> to vector<8x128xf32>
    %151 = arith.addf %148, %150 : vector<8x128xf32>
    %c0_43 = arith.constant 0 : index
    %c0_44 = arith.constant 0 : index
    %152 = vector.load %arg28[%c0_43, %c0_44] : memref<16x256xf32, #tpu.memory_space<vmem>>, vector<16x128xf32>
    %c0_45 = arith.constant 0 : index
    %c128_46 = arith.constant 128 : index
    %153 = vector.load %arg28[%c0_45, %c128_46] : memref<16x256xf32, #tpu.memory_space<vmem>>, vector<16x128xf32>
    %154 = vector.extract_strided_slice %151 {offsets = [0, 0], sizes = [8, 32], strides = [1, 1]} : vector<8x128xf32> to vector<8x32xf32>
    %155 = arith.truncf %154 : vector<8x32xf32> to vector<8x32xbf16>
    %156 = vector.extract_strided_slice %152 {offsets = [0, 0], sizes = [16, 32], strides = [1, 1]} : vector<16x128xf32> to vector<16x32xf32>
    %157 = arith.truncf %156 : vector<16x32xf32> to vector<16x32xbf16>
    %158 = vector.extract_strided_slice %153 {offsets = [0, 0], sizes = [16, 32], strides = [1, 1]} : vector<16x128xf32> to vector<16x32xf32>
    %159 = arith.truncf %158 : vector<16x32xf32> to vector<16x32xbf16>
    %cst_47 = arith.constant dense<0.000000e+00> : vector<8x16xf32>
    %160 = tpu.matmul %155, %157, %cst_47 {dimension_numbers = #tpu.dot_dimension_numbers<[1], [1], [0], [0], [0, 0, 1, 0], [], []>} : vector<8x32xbf16>, vector<16x32xbf16>, vector<8x16xf32> -> vector<8x16xf32>
    %161 = arith.addf %160, %25 : vector<8x16xf32>
    %cst_48 = arith.constant dense<0xFF800000> : vector<8xf32>
    %162 = vector.multi_reduction <maximumf>, %161, %cst_48 [1] : vector<8x16xf32> to vector<8xf32>
    %163 = vector.shape_cast %162 : vector<8xf32> to vector<8x1xf32>
    %164 = vector.broadcast %163 : vector<8x1xf32> to vector<8x16xf32>
    %165 = arith.subf %161, %164 : vector<8x16xf32>
    %166 = math.exp %165 : vector<8x16xf32>
    %cst_49 = arith.constant dense<0.000000e+00> : vector<8xf32>
    %167 = vector.multi_reduction <add>, %166, %cst_49 [1] : vector<8x16xf32> to vector<8xf32>
    %168 = vector.shape_cast %167 : vector<8xf32> to vector<8x1xf32>
    %169 = tpu.reciprocal %168 {approx = true} : vector<8x1xf32> -> vector<8x1xf32>
    %170 = vector.broadcast %169 : vector<8x1xf32> to vector<8x16xf32>
    %171 = arith.mulf %166, %170 : vector<8x16xf32>
    %172 = arith.truncf %171 : vector<8x16xf32> to vector<8x16xbf16>
    %cst_50 = arith.constant dense<0.000000e+00> : vector<8x32xf32>
    %173 = tpu.matmul %172, %159, %cst_50 {dimension_numbers = #tpu.dot_dimension_numbers<[1], [0], [0], [1], [0, 0, 1, 1], [], []>} : vector<8x16xbf16>, vector<16x32xbf16>, vector<8x32xf32> -> vector<8x32xf32>
    %174 = vector.extract_strided_slice %151 {offsets = [0, 32], sizes = [8, 32], strides = [1, 1]} : vector<8x128xf32> to vector<8x32xf32>
    %175 = arith.truncf %174 : vector<8x32xf32> to vector<8x32xbf16>
    %176 = vector.extract_strided_slice %152 {offsets = [0, 32], sizes = [16, 32], strides = [1, 1]} : vector<16x128xf32> to vector<16x32xf32>
    %177 = arith.truncf %176 : vector<16x32xf32> to vector<16x32xbf16>
    %178 = vector.extract_strided_slice %153 {offsets = [0, 32], sizes = [16, 32], strides = [1, 1]} : vector<16x128xf32> to vector<16x32xf32>
    %179 = arith.truncf %178 : vector<16x32xf32> to vector<16x32xbf16>
    %cst_51 = arith.constant dense<0.000000e+00> : vector<8x16xf32>
    %180 = tpu.matmul %175, %177, %cst_51 {dimension_numbers = #tpu.dot_dimension_numbers<[1], [1], [0], [0], [0, 0, 1, 0], [], []>} : vector<8x32xbf16>, vector<16x32xbf16>, vector<8x16xf32> -> vector<8x16xf32>
    %181 = arith.addf %180, %25 : vector<8x16xf32>
    %cst_52 = arith.constant dense<0xFF800000> : vector<8xf32>
    %182 = vector.multi_reduction <maximumf>, %181, %cst_52 [1] : vector<8x16xf32> to vector<8xf32>
    %183 = vector.shape_cast %182 : vector<8xf32> to vector<8x1xf32>
    %184 = vector.broadcast %183 : vector<8x1xf32> to vector<8x16xf32>
    %185 = arith.subf %181, %184 : vector<8x16xf32>
    %186 = math.exp %185 : vector<8x16xf32>
    %cst_53 = arith.constant dense<0.000000e+00> : vector<8xf32>
    %187 = vector.multi_reduction <add>, %186, %cst_53 [1] : vector<8x16xf32> to vector<8xf32>
    %188 = vector.shape_cast %187 : vector<8xf32> to vector<8x1xf32>
    %189 = tpu.reciprocal %188 {approx = true} : vector<8x1xf32> -> vector<8x1xf32>
    %190 = vector.broadcast %189 : vector<8x1xf32> to vector<8x16xf32>
    %191 = arith.mulf %186, %190 : vector<8x16xf32>
    %192 = arith.truncf %191 : vector<8x16xf32> to vector<8x16xbf16>
    %cst_54 = arith.constant dense<0.000000e+00> : vector<8x32xf32>
    %193 = tpu.matmul %192, %179, %cst_54 {dimension_numbers = #tpu.dot_dimension_numbers<[1], [0], [0], [1], [0, 0, 1, 1], [], []>} : vector<8x16xbf16>, vector<16x32xbf16>, vector<8x32xf32> -> vector<8x32xf32>
    %194 = vector.extract_strided_slice %151 {offsets = [0, 64], sizes = [8, 32], strides = [1, 1]} : vector<8x128xf32> to vector<8x32xf32>
    %195 = arith.truncf %194 : vector<8x32xf32> to vector<8x32xbf16>
    %196 = vector.extract_strided_slice %152 {offsets = [0, 64], sizes = [16, 32], strides = [1, 1]} : vector<16x128xf32> to vector<16x32xf32>
    %197 = arith.truncf %196 : vector<16x32xf32> to vector<16x32xbf16>
    %198 = vector.extract_strided_slice %153 {offsets = [0, 64], sizes = [16, 32], strides = [1, 1]} : vector<16x128xf32> to vector<16x32xf32>
    %199 = arith.truncf %198 : vector<16x32xf32> to vector<16x32xbf16>
    %cst_55 = arith.constant dense<0.000000e+00> : vector<8x16xf32>
    %200 = tpu.matmul %195, %197, %cst_55 {dimension_numbers = #tpu.dot_dimension_numbers<[1], [1], [0], [0], [0, 0, 1, 0], [], []>} : vector<8x32xbf16>, vector<16x32xbf16>, vector<8x16xf32> -> vector<8x16xf32>
    %201 = arith.addf %200, %25 : vector<8x16xf32>
    %cst_56 = arith.constant dense<0xFF800000> : vector<8xf32>
    %202 = vector.multi_reduction <maximumf>, %201, %cst_56 [1] : vector<8x16xf32> to vector<8xf32>
    %203 = vector.shape_cast %202 : vector<8xf32> to vector<8x1xf32>
    %204 = vector.broadcast %203 : vector<8x1xf32> to vector<8x16xf32>
    %205 = arith.subf %201, %204 : vector<8x16xf32>
    %206 = math.exp %205 : vector<8x16xf32>
    %cst_57 = arith.constant dense<0.000000e+00> : vector<8xf32>
    %207 = vector.multi_reduction <add>, %206, %cst_57 [1] : vector<8x16xf32> to vector<8xf32>
    %208 = vector.shape_cast %207 : vector<8xf32> to vector<8x1xf32>
    %209 = tpu.reciprocal %208 {approx = true} : vector<8x1xf32> -> vector<8x1xf32>
    %210 = vector.broadcast %209 : vector<8x1xf32> to vector<8x16xf32>
    %211 = arith.mulf %206, %210 : vector<8x16xf32>
    %212 = arith.truncf %211 : vector<8x16xf32> to vector<8x16xbf16>
    %cst_58 = arith.constant dense<0.000000e+00> : vector<8x32xf32>
    %213 = tpu.matmul %212, %199, %cst_58 {dimension_numbers = #tpu.dot_dimension_numbers<[1], [0], [0], [1], [0, 0, 1, 1], [], []>} : vector<8x16xbf16>, vector<16x32xbf16>, vector<8x32xf32> -> vector<8x32xf32>
    %214 = vector.extract_strided_slice %151 {offsets = [0, 96], sizes = [8, 32], strides = [1, 1]} : vector<8x128xf32> to vector<8x32xf32>
    %215 = arith.truncf %214 : vector<8x32xf32> to vector<8x32xbf16>
    %216 = vector.extract_strided_slice %152 {offsets = [0, 96], sizes = [16, 32], strides = [1, 1]} : vector<16x128xf32> to vector<16x32xf32>
    %217 = arith.truncf %216 : vector<16x32xf32> to vector<16x32xbf16>
    %218 = vector.extract_strided_slice %153 {offsets = [0, 96], sizes = [16, 32], strides = [1, 1]} : vector<16x128xf32> to vector<16x32xf32>
    %219 = arith.truncf %218 : vector<16x32xf32> to vector<16x32xbf16>
    %cst_59 = arith.constant dense<0.000000e+00> : vector<8x16xf32>
    %220 = tpu.matmul %215, %217, %cst_59 {dimension_numbers = #tpu.dot_dimension_numbers<[1], [1], [0], [0], [0, 0, 1, 0], [], []>} : vector<8x32xbf16>, vector<16x32xbf16>, vector<8x16xf32> -> vector<8x16xf32>
    %221 = arith.addf %220, %25 : vector<8x16xf32>
    %cst_60 = arith.constant dense<0xFF800000> : vector<8xf32>
    %222 = vector.multi_reduction <maximumf>, %221, %cst_60 [1] : vector<8x16xf32> to vector<8xf32>
    %223 = vector.shape_cast %222 : vector<8xf32> to vector<8x1xf32>
    %224 = vector.broadcast %223 : vector<8x1xf32> to vector<8x16xf32>
    %225 = arith.subf %221, %224 : vector<8x16xf32>
    %226 = math.exp %225 : vector<8x16xf32>
    %cst_61 = arith.constant dense<0.000000e+00> : vector<8xf32>
    %227 = vector.multi_reduction <add>, %226, %cst_61 [1] : vector<8x16xf32> to vector<8xf32>
    %228 = vector.shape_cast %227 : vector<8xf32> to vector<8x1xf32>
    %229 = tpu.reciprocal %228 {approx = true} : vector<8x1xf32> -> vector<8x1xf32>
    %230 = vector.broadcast %229 : vector<8x1xf32> to vector<8x16xf32>
    %231 = arith.mulf %226, %230 : vector<8x16xf32>
    %232 = arith.truncf %231 : vector<8x16xf32> to vector<8x16xbf16>
    %cst_62 = arith.constant dense<0.000000e+00> : vector<8x32xf32>
    %233 = tpu.matmul %232, %219, %cst_62 {dimension_numbers = #tpu.dot_dimension_numbers<[1], [0], [0], [1], [0, 0, 1, 1], [], []>} : vector<8x16xbf16>, vector<16x32xbf16>, vector<8x32xf32> -> vector<8x32xf32>
    %234 = tpu.concatenate %173, %193, %213, %233 in 1 : vector<8x32xf32>, vector<8x32xf32>, vector<8x32xf32>, vector<8x32xf32> -> vector<8x128xf32>
    %235 = arith.truncf %234 : vector<8x128xf32> to vector<8x128xbf16>
    %c0_63 = arith.constant 0 : index
    %c0_64 = arith.constant 0 : index
    %236 = vector.load %arg14[%c0_63, %c0_64] : memref<128x128xbf16, #tpu.memory_space<vmem>>, vector<128x128xbf16>
    %cst_65 = arith.constant dense<0.000000e+00> : vector<8x128xf32>
    %237 = tpu.matmul %235, %236, %cst_65 {dimension_numbers = #tpu.dot_dimension_numbers<[1], [0], [0], [1], [0, 0, 1, 1], [], []>} : vector<8x128xbf16>, vector<128x128xbf16>, vector<8x128xf32> -> vector<8x128xf32>
    %c0_66 = arith.constant 0 : index
    %c0_67 = arith.constant 0 : index
    %238 = vector.load %arg15[%c0_66, %c0_67] : memref<1x128xf32, #tpu.memory_space<vmem>>, vector<1x128xf32>
    %239 = vector.broadcast %238 : vector<1x128xf32> to vector<8x128xf32>
    %240 = arith.addf %237, %239 : vector<8x128xf32>
    %241 = arith.addf %145, %240 : vector<8x128xf32>
    %cst_68 = arith.constant dense<0.000000e+00> : vector<8xf32>
    %242 = vector.multi_reduction <add>, %241, %cst_68 [1] : vector<8x128xf32> to vector<8xf32>
    %243 = vector.shape_cast %242 : vector<8xf32> to vector<8x1xf32>
    %cst_69 = arith.constant 1.280000e+02 : f32
    %244 = vector.broadcast %cst_69 : f32 to vector<8x1xf32>
    %245 = arith.divf %243, %244 : vector<8x1xf32>
    %246 = vector.broadcast %245 : vector<8x1xf32> to vector<8x128xf32>
    %247 = arith.subf %241, %246 : vector<8x128xf32>
    %248 = arith.mulf %247, %247 : vector<8x128xf32>
    %cst_70 = arith.constant dense<0.000000e+00> : vector<8xf32>
    %249 = vector.multi_reduction <add>, %248, %cst_70 [1] : vector<8x128xf32> to vector<8xf32>
    %250 = vector.shape_cast %249 : vector<8xf32> to vector<8x1xf32>
    %cst_71 = arith.constant 1.280000e+02 : f32
    %251 = vector.broadcast %cst_71 : f32 to vector<8x1xf32>
    %252 = arith.divf %250, %251 : vector<8x1xf32>
    %253 = vector.broadcast %245 : vector<8x1xf32> to vector<8x128xf32>
    %254 = arith.subf %241, %253 : vector<8x128xf32>
    %cst_72 = arith.constant 9.99999974E-6 : f32
    %255 = vector.broadcast %cst_72 : f32 to vector<8x1xf32>
    %256 = arith.addf %252, %255 : vector<8x1xf32>
    %257 = math.rsqrt %256 : vector<8x1xf32>
    %258 = vector.broadcast %257 : vector<8x1xf32> to vector<8x128xf32>
    %259 = arith.mulf %254, %258 : vector<8x128xf32>
    %c0_73 = arith.constant 0 : index
    %c0_74 = arith.constant 0 : index
    %260 = vector.load %arg22[%c0_73, %c0_74] : memref<1x128xf32, #tpu.memory_space<vmem>>, vector<1x128xf32>
    %261 = vector.broadcast %260 : vector<1x128xf32> to vector<8x128xf32>
    %262 = arith.mulf %259, %261 : vector<8x128xf32>
    %c0_75 = arith.constant 0 : index
    %c0_76 = arith.constant 0 : index
    %263 = vector.load %arg23[%c0_75, %c0_76] : memref<1x128xf32, #tpu.memory_space<vmem>>, vector<1x128xf32>
    %264 = vector.broadcast %263 : vector<1x128xf32> to vector<8x128xf32>
    %265 = arith.addf %262, %264 : vector<8x128xf32>
    %266 = arith.truncf %265 : vector<8x128xf32> to vector<8x128xbf16>
    %c0_77 = arith.constant 0 : index
    %c0_78 = arith.constant 0 : index
    %267 = vector.load %arg16[%c0_77, %c0_78] : memref<128x256xbf16, #tpu.memory_space<vmem>>, vector<128x256xbf16>
    %cst_79 = arith.constant dense<0.000000e+00> : vector<8x256xf32>
    %268 = tpu.matmul %266, %267, %cst_79 {dimension_numbers = #tpu.dot_dimension_numbers<[1], [0], [0], [1], [0, 0, 1, 1], [], []>} : vector<8x128xbf16>, vector<128x256xbf16>, vector<8x256xf32> -> vector<8x256xf32>
    %c0_80 = arith.constant 0 : index
    %c0_81 = arith.constant 0 : index
    %269 = vector.load %arg17[%c0_80, %c0_81] : memref<1x256xf32, #tpu.memory_space<vmem>>, vector<1x256xf32>
    %270 = vector.broadcast %269 : vector<1x256xf32> to vector<8x256xf32>
    %271 = arith.addf %268, %270 : vector<8x256xf32>
    %cst_82 = arith.constant 0.000000e+00 : f32
    %272 = vector.broadcast %cst_82 : f32 to vector<8x256xf32>
    %273 = arith.maximumf %271, %272 : vector<8x256xf32>
    %274 = arith.truncf %273 : vector<8x256xf32> to vector<8x256xbf16>
    %c0_83 = arith.constant 0 : index
    %c0_84 = arith.constant 0 : index
    %275 = vector.load %arg18[%c0_83, %c0_84] : memref<256x128xbf16, #tpu.memory_space<vmem>>, vector<256x128xbf16>
    %cst_85 = arith.constant dense<0.000000e+00> : vector<8x128xf32>
    %276 = tpu.matmul %274, %275, %cst_85 {dimension_numbers = #tpu.dot_dimension_numbers<[1], [0], [0], [1], [0, 0, 1, 1], [], []>} : vector<8x256xbf16>, vector<256x128xbf16>, vector<8x128xf32> -> vector<8x128xf32>
    %c0_86 = arith.constant 0 : index
    %c0_87 = arith.constant 0 : index
    %277 = vector.load %arg19[%c0_86, %c0_87] : memref<1x128xf32, #tpu.memory_space<vmem>>, vector<1x128xf32>
    %278 = vector.broadcast %277 : vector<1x128xf32> to vector<8x128xf32>
    %279 = arith.addf %276, %278 : vector<8x128xf32>
    %280 = arith.addf %265, %279 : vector<8x128xf32>
    %cst_88 = arith.constant dense<0.000000e+00> : vector<8xf32>
    %281 = vector.multi_reduction <add>, %280, %cst_88 [1] : vector<8x128xf32> to vector<8xf32>
    %282 = vector.shape_cast %281 : vector<8xf32> to vector<8x1xf32>
    %cst_89 = arith.constant 1.280000e+02 : f32
    %283 = vector.broadcast %cst_89 : f32 to vector<8x1xf32>
    %284 = arith.divf %282, %283 : vector<8x1xf32>
    %285 = vector.broadcast %284 : vector<8x1xf32> to vector<8x128xf32>
    %286 = arith.subf %280, %285 : vector<8x128xf32>
    %287 = arith.mulf %286, %286 : vector<8x128xf32>
    %cst_90 = arith.constant dense<0.000000e+00> : vector<8xf32>
    %288 = vector.multi_reduction <add>, %287, %cst_90 [1] : vector<8x128xf32> to vector<8xf32>
    %289 = vector.shape_cast %288 : vector<8xf32> to vector<8x1xf32>
    %cst_91 = arith.constant 1.280000e+02 : f32
    %290 = vector.broadcast %cst_91 : f32 to vector<8x1xf32>
    %291 = arith.divf %289, %290 : vector<8x1xf32>
    %292 = vector.broadcast %284 : vector<8x1xf32> to vector<8x128xf32>
    %293 = arith.subf %280, %292 : vector<8x128xf32>
    %cst_92 = arith.constant 9.99999974E-6 : f32
    %294 = vector.broadcast %cst_92 : f32 to vector<8x1xf32>
    %295 = arith.addf %291, %294 : vector<8x1xf32>
    %296 = math.rsqrt %295 : vector<8x1xf32>
    %297 = vector.broadcast %296 : vector<8x1xf32> to vector<8x128xf32>
    %298 = arith.mulf %293, %297 : vector<8x128xf32>
    %c0_93 = arith.constant 0 : index
    %c0_94 = arith.constant 0 : index
    %299 = vector.load %arg24[%c0_93, %c0_94] : memref<1x128xf32, #tpu.memory_space<vmem>>, vector<1x128xf32>
    %300 = vector.broadcast %299 : vector<1x128xf32> to vector<8x128xf32>
    %301 = arith.mulf %298, %300 : vector<8x128xf32>
    %c0_95 = arith.constant 0 : index
    %c0_96 = arith.constant 0 : index
    %302 = vector.load %arg25[%c0_95, %c0_96] : memref<1x128xf32, #tpu.memory_space<vmem>>, vector<1x128xf32>
    %303 = vector.broadcast %302 : vector<1x128xf32> to vector<8x128xf32>
    %304 = arith.addf %301, %303 : vector<8x128xf32>
    %305 = arith.truncf %304 : vector<8x128xf32> to vector<8x128xbf16>
    %c0_97 = arith.constant 0 : index
    %c0_98 = arith.constant 0 : index
    %c0_99 = arith.constant 0 : index
    %306 = vector.load %arg26[%c0_97, %c0_98, %c0_99] : memref<1x8x128xbf16, #tpu.memory_space<vmem>>, vector<1x8x128xbf16>
    %307 = vector.shape_cast %306 : vector<1x8x128xbf16> to vector<8x128xbf16>
    %308 = vector.shape_cast %305 : vector<8x128xbf16> to vector<1x8x128xbf16>
    tpu.vector_store %arg26[%c0_97, %c0_98, %c0_99], %308 {strides = array<i32>} : memref<1x8x128xbf16, #tpu.memory_space<vmem>>, vector<1x8x128xbf16>,
    return
  }
  func.func @transform_0(%arg0: i32, %arg1: i32, %arg2: memref<2xi32, #tpu.memory_space<smem>>, %arg3: memref<2xi32, #tpu.memory_space<smem>>) -> (i32, i32, i32) {
    %c0_i32 = arith.constant 0 : i32
    %c0_i32_0 = arith.constant 0 : i32
    %c0_i32_1 = arith.constant 0 : i32
    return %arg0, %c0_i32, %c0_i32_0 : i32, i32, i32
  }
  func.func @transform_1(%arg0: i32, %arg1: i32, %arg2: memref<2xi32, #tpu.memory_space<smem>>, %arg3: memref<2xi32, #tpu.memory_space<smem>>) -> (i32, i32, i32) {
    %c0_i32 = arith.constant 0 : i32
    %c0_i32_0 = arith.constant 0 : i32
    %c0_i32_1 = arith.constant 0 : i32
    return %arg0, %c0_i32, %c0_i32_0 : i32, i32, i32
  }
  func.func @transform_2(%arg0: i32, %arg1: i32, %arg2: memref<2xi32, #tpu.memory_space<smem>>, %arg3: memref<2xi32, #tpu.memory_space<smem>>) -> (i32, i32) {
    %c0_i32 = arith.constant 0 : i32
    %c0_i32_0 = arith.constant 0 : i32
    %c0_i32_1 = arith.constant 0 : i32
    return %c0_i32, %c0_i32_0 : i32, i32
  }
  func.func @transform_3(%arg0: i32, %arg1: i32, %arg2: memref<2xi32, #tpu.memory_space<smem>>, %arg3: memref<2xi32, #tpu.memory_space<smem>>) -> (i32, i32) {
    %c0_i32 = arith.constant 0 : i32
    %c0_i32_0 = arith.constant 0 : i32
    %c0_i32_1 = arith.constant 0 : i32
    return %c0_i32, %c0_i32_0 : i32, i32
  }
  func.func @transform_4(%arg0: i32, %arg1: i32, %arg2: memref<2xi32, #tpu.memory_space<smem>>, %arg3: memref<2xi32, #tpu.memory_space<smem>>) -> (i32, i32) {
    %c0_i32 = arith.constant 0 : i32
    %c0_i32_0 = arith.constant 0 : i32
    %c0_i32_1 = arith.constant 0 : i32
    return %c0_i32, %c0_i32_0 : i32, i32
  }
  func.func @transform_5(%arg0: i32, %arg1: i32, %arg2: memref<2xi32, #tpu.memory_space<smem>>, %arg3: memref<2xi32, #tpu.memory_space<smem>>) -> (i32, i32) {
    %c0_i32 = arith.constant 0 : i32
    %c0_i32_0 = arith.constant 0 : i32
    %c0_i32_1 = arith.constant 0 : i32
    return %c0_i32, %c0_i32_0 : i32, i32
  }
  func.func @transform_6(%arg0: i32, %arg1: i32, %arg2: memref<2xi32, #tpu.memory_space<smem>>, %arg3: memref<2xi32, #tpu.memory_space<smem>>) -> (i32, i32) {
    %c0_i32 = arith.constant 0 : i32
    %c0_i32_0 = arith.constant 0 : i32
    %c0_i32_1 = arith.constant 0 : i32
    return %c0_i32, %c0_i32_0 : i32, i32
  }
  func.func @transform_7(%arg0: i32, %arg1: i32, %arg2: memref<2xi32, #tpu.memory_space<smem>>, %arg3: memref<2xi32, #tpu.memory_space<smem>>) -> (i32, i32) {
    %c0_i32 = arith.constant 0 : i32
    %c0_i32_0 = arith.constant 0 : i32
    %c0_i32_1 = arith.constant 0 : i32
    return %c0_i32, %c0_i32_0 : i32, i32
  }
  func.func @transform_8(%arg0: i32, %arg1: i32, %arg2: memref<2xi32, #tpu.memory_space<smem>>, %arg3: memref<2xi32, #tpu.memory_space<smem>>) -> (i32, i32) {
    %c0_i32 = arith.constant 0 : i32
    %c0_i32_0 = arith.constant 0 : i32
    %c0_i32_1 = arith.constant 0 : i32
    return %c0_i32, %c0_i32_0 : i32, i32
  }
  func.func @transform_9(%arg0: i32, %arg1: i32, %arg2: memref<2xi32, #tpu.memory_space<smem>>, %arg3: memref<2xi32, #tpu.memory_space<smem>>) -> (i32, i32) {
    %c0_i32 = arith.constant 0 : i32
    %c0_i32_0 = arith.constant 0 : i32
    %c0_i32_1 = arith.constant 0 : i32
    return %c0_i32, %c0_i32_0 : i32, i32
  }
  func.func @transform_10(%arg0: i32, %arg1: i32, %arg2: memref<2xi32, #tpu.memory_space<smem>>, %arg3: memref<2xi32, #tpu.memory_space<smem>>) -> (i32, i32) {
    %c0_i32 = arith.constant 0 : i32
    %c0_i32_0 = arith.constant 0 : i32
    %c0_i32_1 = arith.constant 0 : i32
    return %c0_i32, %c0_i32_0 : i32, i32
  }
  func.func @transform_11(%arg0: i32, %arg1: i32, %arg2: memref<2xi32, #tpu.memory_space<smem>>, %arg3: memref<2xi32, #tpu.memory_space<smem>>) -> (i32, i32) {
    %c0_i32 = arith.constant 0 : i32
    %c0_i32_0 = arith.constant 0 : i32
    %c0_i32_1 = arith.constant 0 : i32
    return %c0_i32, %c0_i32_0 : i32, i32
  }
  func.func @transform_12(%arg0: i32, %arg1: i32, %arg2: memref<2xi32, #tpu.memory_space<smem>>, %arg3: memref<2xi32, #tpu.memory_space<smem>>) -> (i32, i32) {
    %c0_i32 = arith.constant 0 : i32
    %c0_i32_0 = arith.constant 0 : i32
    %c0_i32_1 = arith.constant 0 : i32
    return %c0_i32, %c0_i32_0 : i32, i32
  }
  func.func @transform_13(%arg0: i32, %arg1: i32, %arg2: memref<2xi32, #tpu.memory_space<smem>>, %arg3: memref<2xi32, #tpu.memory_space<smem>>) -> (i32, i32) {
    %c0_i32 = arith.constant 0 : i32
    %c0_i32_0 = arith.constant 0 : i32
    %c0_i32_1 = arith.constant 0 : i32
    return %c0_i32, %c0_i32_0 : i32, i32
  }
  func.func @transform_14(%arg0: i32, %arg1: i32, %arg2: memref<2xi32, #tpu.memory_space<smem>>, %arg3: memref<2xi32, #tpu.memory_space<smem>>) -> (i32, i32) {
    %c0_i32 = arith.constant 0 : i32
    %c0_i32_0 = arith.constant 0 : i32
    %c0_i32_1 = arith.constant 0 : i32
    return %c0_i32, %c0_i32_0 : i32, i32
  }
  func.func @transform_15(%arg0: i32, %arg1: i32, %arg2: memref<2xi32, #tpu.memory_space<smem>>, %arg3: memref<2xi32, #tpu.memory_space<smem>>) -> (i32, i32) {
    %c0_i32 = arith.constant 0 : i32
    %c0_i32_0 = arith.constant 0 : i32
    %c0_i32_1 = arith.constant 0 : i32
    return %c0_i32, %c0_i32_0 : i32, i32
  }
  func.func @transform_16(%arg0: i32, %arg1: i32, %arg2: memref<2xi32, #tpu.memory_space<smem>>, %arg3: memref<2xi32, #tpu.memory_space<smem>>) -> (i32, i32) {
    %c0_i32 = arith.constant 0 : i32
    %c0_i32_0 = arith.constant 0 : i32
    %c0_i32_1 = arith.constant 0 : i32
    return %c0_i32, %c0_i32_0 : i32, i32
  }
  func.func @transform_17(%arg0: i32, %arg1: i32, %arg2: memref<2xi32, #tpu.memory_space<smem>>, %arg3: memref<2xi32, #tpu.memory_space<smem>>) -> (i32, i32) {
    %c0_i32 = arith.constant 0 : i32
    %c0_i32_0 = arith.constant 0 : i32
    %c0_i32_1 = arith.constant 0 : i32
    return %c0_i32, %c0_i32_0 : i32, i32
  }
  func.func @transform_18(%arg0: i32, %arg1: i32, %arg2: memref<2xi32, #tpu.memory_space<smem>>, %arg3: memref<2xi32, #tpu.memory_space<smem>>) -> (i32, i32) {
    %c0_i32 = arith.constant 0 : i32
    %c0_i32_0 = arith.constant 0 : i32
    %c0_i32_1 = arith.constant 0 : i32
    return %c0_i32, %c0_i32_0 : i32, i32
  }
  func.func @transform_19(%arg0: i32, %arg1: i32, %arg2: memref<2xi32, #tpu.memory_space<smem>>, %arg3: memref<2xi32, #tpu.memory_space<smem>>) -> (i32, i32) {
    %c0_i32 = arith.constant 0 : i32
    %c0_i32_0 = arith.constant 0 : i32
    %c0_i32_1 = arith.constant 0 : i32
    return %c0_i32, %c0_i32_0 : i32, i32
  }
  func.func @transform_20(%arg0: i32, %arg1: i32, %arg2: memref<2xi32, #tpu.memory_space<smem>>, %arg3: memref<2xi32, #tpu.memory_space<smem>>) -> (i32, i32) {
    %c0_i32 = arith.constant 0 : i32
    %c0_i32_0 = arith.constant 0 : i32
    %c0_i32_1 = arith.constant 0 : i32
    return %c0_i32, %c0_i32_0 : i32, i32
  }
  func.func @transform_21(%arg0: i32, %arg1: i32, %arg2: memref<2xi32, #tpu.memory_space<smem>>, %arg3: memref<2xi32, #tpu.memory_space<smem>>) -> (i32, i32) {
    %c0_i32 = arith.constant 0 : i32
    %c0_i32_0 = arith.constant 0 : i32
    %c0_i32_1 = arith.constant 0 : i32
    return %c0_i32, %c0_i32_0 : i32, i32
  }
  func.func @transform_22(%arg0: i32, %arg1: i32, %arg2: memref<2xi32, #tpu.memory_space<smem>>, %arg3: memref<2xi32, #tpu.memory_space<smem>>) -> (i32, i32, i32) {
    %c0_i32 = arith.constant 0 : i32
    %c0_i32_0 = arith.constant 0 : i32
    return %arg0, %arg1, %c0_i32 : i32, i32, i32
  }
}

</mosaic_0001>

<llo_original>
// kernel: tpu_custom_call.1
$region0: #{tpu_custom_call.1}
  #allocation0 [shape = 'u32[]', space=smem, size = 0x4, offset = 0x4, fixed_abs, tag = 'smem constant byte address 0x4 - core index']
  #allocation1 [shape = 'u32[144,128]{1,0:T(1,128)}', space=vmem, size = 0x12000, scoped, tag = 'internal scratch']
  #allocation2 [shape = 'f32[8,384]{1,0:T(8,128)}', space=vmem, size = 0x3000, scoped, tag = 'scratch operand']
  #allocation3 [shape = 'f32[16,256]{1,0:T(8,128)}', space=vmem, size = 0x4000, scoped, tag = 'scratch operand']
  #allocation4 [shape = 's32[1]{0}', space=sflag, size = 0x4, scoped, tag = 'scoped memory for tpu_custom_call.1']
  #allocation5 [shape = 'u8[512]{0}', space=smem, size = 0x200, scoped, tag = 'prefetched SMEM operand 0']
  #allocation6 [shape = 'u8[512]{0}', space=smem, size = 0x200, scoped, tag = 'prefetched SMEM operand 1']
  %s0 = inlined_call_operand.hbm [shape: s32[2], index: 0, kind: input, shape index: {}]
  %s1 = inlined_call_operand.hbm [shape: s32[2], index: 1, kind: input, shape index: {}]
  %s2 = inlined_call_operand.hbm [shape: bf16[2,8,128], index: 2, kind: input, shape index: {}]
  %s3 = inlined_call_operand.hbm [shape: bf16[2,16,128], index: 3, kind: input, shape index: {}]
  %s4 = inlined_call_operand.hbm [shape: bf16[128,384], index: 4, kind: input, shape index: {}]
  %s5 = inlined_call_operand.vmem [shape: f32[1,384], index: 5, kind: input, shape index: {}]
  %s6 = inlined_call_operand.hbm [shape: bf16[128,128], index: 6, kind: input, shape index: {}]
  %s7 = inlined_call_operand.vmem [shape: f32[1,128], index: 7, kind: input, shape index: {}]
  %s8 = inlined_call_operand.hbm [shape: bf16[128,128], index: 8, kind: input, shape index: {}]
  %s9 = inlined_call_operand.vmem [shape: f32[1,128], index: 9, kind: input, shape index: {}]
  %s10 = inlined_call_operand.hbm [shape: bf16[128,256], index: 10, kind: input, shape index: {}]
  %s11 = inlined_call_operand.vmem [shape: f32[1,256], index: 11, kind: input, shape index: {}]
  %s12 = inlined_call_operand.hbm [shape: bf16[128,128], index: 12, kind: input, shape index: {}]
  %s13 = inlined_call_operand.vmem [shape: f32[1,128], index: 13, kind: input, shape index: {}]
  %s14 = inlined_call_operand.hbm [shape: bf16[128,256], index: 14, kind: input, shape index: {}]
  %s15 = inlined_call_operand.vmem [shape: f32[1,256], index: 15, kind: input, shape index: {}]
  %s16 = inlined_call_operand.hbm [shape: bf16[256,128], index: 16, kind: input, shape index: {}]
  %s17 = inlined_call_operand.vmem [shape: f32[1,128], index: 17, kind: input, shape index: {}]
  %s18 = inlined_call_operand.vmem [shape: f32[1,128], index: 18, kind: input, shape index: {}]
  %s19 = inlined_call_operand.vmem [shape: f32[1,128], index: 19, kind: input, shape index: {}]
  %s20 = inlined_call_operand.vmem [shape: f32[1,128], index: 20, kind: input, shape index: {}]
  %s21 = inlined_call_operand.vmem [shape: f32[1,128], index: 21, kind: input, shape index: {}]
  %s22 = inlined_call_operand.vmem [shape: f32[1,128], index: 22, kind: input, shape index: {}]
  %s23 = inlined_call_operand.vmem [shape: f32[1,128], index: 23, kind: input, shape index: {}]
  %s24 = inlined_call_operand.hbm [shape: bf16[2,8,128], index: 24, kind: output, shape index: {}]
  %s25 = sld [smem:[#allocation0]]
  $region161: #{tpu_custom_call.1} parent=0
    _
  %s27 = ssub.s32 1, %s25
  %s28 = scalar_select 0, %s27, %s25
  %30 = dma.hbm_to_smem %s0, 16, [#allocation5], [#allocation4]
  %32 = dma.hbm_to_smem %s1, 16, [#allocation6], [#allocation4]
  %33 = dma.done [#allocation4], 32
  %34 = sfence
  $region1: #{tpu_custom_call.1} parent=0
    #allocation7 [shape = 'u8[4096]{0}', space=vmem, size = 0x1000, scoped, tag = 'input window, operand 2']
    #allocation8 [shape = 's32[2]{0}', space=sflag, size = 0x8, scoped, tag = 'scoped memory for tpu_custom_call.1']
    #allocation9 [shape = 's32[2]{0}', space=sflag, size = 0x8, scoped, tag = 'scoped memory for tpu_custom_call.1']
    #allocation10 [shape = 'u8[8192]{0}', space=vmem, size = 0x2000, scoped, tag = 'input window, operand 3']
    #allocation11 [shape = 's32[2]{0}', space=sflag, size = 0x8, scoped, tag = 'scoped memory for tpu_custom_call.1']
    #allocation12 [shape = 'u8[98304]{0}', space=vmem, size = 0x18000, scoped, tag = 'input window, operand 4, single buffered']
    #allocation13 [shape = 'u8[32768]{0}', space=vmem, size = 0x8000, scoped, tag = 'input window, operand 6, single buffered']
    #allocation14 [shape = 's32[1]{0}', space=sflag, size = 0x4, scoped, tag = 'scoped memory for tpu_custom_call.1']
    #allocation15 [shape = 'u8[32768]{0}', space=vmem, size = 0x8000, scoped, tag = 'input window, operand 8, single buffered']
    #allocation16 [shape = 'u8[65536]{0}', space=vmem, size = 0x10000, scoped, tag = 'input window, operand 10, single buffered']
    #allocation17 [shape = 's32[1]{0}', space=sflag, size = 0x4, scoped, tag = 'scoped memory for tpu_custom_call.1']
    #allocation18 [shape = 'u8[32768]{0}', space=vmem, size = 0x8000, scoped, tag = 'input window, operand 12, single buffered']
    #allocation19 [shape = 'u8[65536]{0}', space=vmem, size = 0x10000, scoped, tag = 'input window, operand 14, single buffered']
    #allocation20 [shape = 's32[1]{0}', space=sflag, size = 0x4, scoped, tag = 'scoped memory for tpu_custom_call.1']
    #allocation21 [shape = 'u8[65536]{0}', space=vmem, size = 0x10000, scoped, tag = 'input window, operand 16, single buffered']
    #allocation22 [shape = 'u8[4096]{0}', space=vmem, size = 0x1000, scoped, tag = 'output window, operand 0']
    %35 = vsyncpa [#allocation8], 0
    %s36 = scalar_lea.sflag [#allocation8], 1
    %37 = vsyncpa %s36, 0
    %38 = vsyncpa [#allocation11], 0
    %s39 = scalar_lea.sflag [#allocation11], 1
    %40 = vsyncpa %s39, 0
    %41 = vsyncpa [#allocation14], 0
    %42 = vsyncpa [#allocation17], 0
    %43 = vsyncpa [#allocation20], 0
    %44 = vsyncpa [#allocation9], 0
    %s45 = scalar_lea.sflag [#allocation9], 1
    %46 = vsyncpa %s45, 0
    loop: start=0, step=1, limit=4
    $region2: #{tpu_custom_call.1} parent=1 // loop_pre_header
      _
    $region3: #{tpu_custom_call.1} parent=1 // loop_header
      %s48 = sphi 0, %s52
      %p49 = scmp.ge.s32.totalorder %s48, 4
      %s55 = sphi 0, %s67
      %s56 = sphi 0, %s63
      %s57 = sphi 0, %s55
      %s58 = sphi 0, %s56
      %s59 = sphi 0, %s57
      %s60 = sphi 0, %s58
      %s70 = sphi 0, %s72
      %s73 = sphi 0, %s70
      %s74 = sphi 0, %s73
      %s90 = sphi 0, %s74
      %s96 = sphi 0, %s98
      %s99 = sphi 0, %s96
      %s100 = sphi 0, %s99
      %s116 = sphi 0, %s100
      %s120 = sphi 0, %s120
      %s122 = sphi 0, %s120
      %s123 = sphi 0, %s122
      %s137 = sphi 0, %s123
      %s141 = sphi 0, %s141
      %s143 = sphi 0, %s141
      %s144 = sphi 0, %s143
      %s158 = sphi 0, %s144
      %s162 = sphi 0, %s162
      %s164 = sphi 0, %s162
      %s165 = sphi 0, %s164
      %s179 = sphi 0, %s165
      %s183 = sphi 0, %s183
      %s185 = sphi 0, %s183
      %s186 = sphi 0, %s185
      %s200 = sphi 0, %s186
      %s204 = sphi 0, %s204
      %s206 = sphi 0, %s204
      %s207 = sphi 0, %s206
      %s221 = sphi 0, %s207
      %s225 = sphi 0, %s225
      %s227 = sphi 0, %s225
      %s228 = sphi 0, %s227
      %s242 = sphi 0, %s228
      %s246 = sphi 0, %s246
      %s248 = sphi 0, %s246
      %s249 = sphi 0, %s248
      %s263 = sphi 0, %s249
      %s267 = sphi 0, %s267
      %s269 = sphi 0, %s267
      %s270 = sphi 0, %s269
      %s284 = sphi 0, %s270
      %s288 = sphi 0, %s288
      %s290 = sphi 0, %s288
      %s291 = sphi 0, %s290
      %s305 = sphi 0, %s291
      %s309 = sphi 0, %s309
      %s311 = sphi 0, %s309
      %s312 = sphi 0, %s311
      %s326 = sphi 0, %s312
      %s330 = sphi 0, %s330
      %s332 = sphi 0, %s330
      %s333 = sphi 0, %s332
      %s347 = sphi 0, %s333
      %s351 = sphi 0, %s351
      %s353 = sphi 0, %s351
      %s354 = sphi 0, %s353
      %s368 = sphi 0, %s354
      %s372 = sphi 0, %s372
      %s374 = sphi 0, %s372
      %s375 = sphi 0, %s374
      %s389 = sphi 0, %s375
      %s393 = sphi 0, %s393
      %s395 = sphi 0, %s393
      %s396 = sphi 0, %s395
      %s410 = sphi 0, %s396
      %s414 = sphi 0, %s414
      %s416 = sphi 0, %s414
      %s417 = sphi 0, %s416
      %s431 = sphi 0, %s417
      %s435 = sphi 0, %s435
      %s437 = sphi 0, %s435
      %s438 = sphi 0, %s437
      %s452 = sphi 0, %s438
      %s456 = sphi 0, %s456
      %s458 = sphi 0, %s456
      %s459 = sphi 0, %s458
      %s473 = sphi 0, %s459
      %s477 = sphi 0, %s477
      %s479 = sphi 0, %s477
      %s480 = sphi 0, %s479
      %s494 = sphi 0, %s480
      %s498 = sphi 0, %s498
      %s500 = sphi 0, %s498
      %s501 = sphi 0, %s500
      %s515 = sphi 0, %s501
      %s519 = sphi 0, %s519
      %s521 = sphi 0, %s519
      %s522 = sphi 0, %s521
      %s536 = sphi 0, %s522
      %s544 = sphi 0, %s546
      %s547 = sphi 0, %s544
      %s548 = sphi 0, %s547
      %s564 = sphi 0, %s548
    $region4: #{tpu_custom_call.1} parent=1 // loop_header_branch
      %51 = sbr.rel (%p49) target = $region8
    $region5: #{tpu_custom_call.1} parent=1 // loop_body
      %s53 = ssub.s32 %s48, 1
      %s54 = ssub.s32 %s48, 2
      %s61 = sadd.s32 1, %s56
      %p62 = scmp.ge.s32.totalorder %s61, 1
      %s63 = scalar_select %p62, 0, %s61
      %s64 = sadd.s32 1, %s55
      %s65 = scalar_select %p62, %s64, %s55
      %p66 = scmp.ge.s32.totalorder %s65, 2
      %s67 = scalar_select %p66, 0, %s65
      %s68 = ssub.s32 %s55, %s67
      %p69 = scmp.eq.s32.totalorder %s68, 0
      %s71 = sadd.s32 %s70, 1
      %s72 = scalar_select %p69, %s70, %s71
      %p75 = pneg %p69
      %p76 = scmp.eq.s32.totalorder %s48, 1
      %p77 = por %p75, %p76
      %p78 = scmp.ne.s32.totalorder %s70, %s73
      %p79 = scmp.eq.s32.totalorder %s48, 0
      %p80 = por %p78, %p79
      %p81 = scmp.ne.s32.totalorder %s70, %s73
      %p82 = scmp.eq.s32.totalorder %s53, 1
      %p83 = por %p81, %p82
      %p84 = scmp.ne.s32.totalorder %s73, %s74
      %p85 = scmp.eq.s32.totalorder %s53, 0
      %p86 = por %p84, %p85
      %p87 = scmp.ne.s32.totalorder %s73, %s74
      %p88 = scmp.eq.s32.totalorder %s54, 1
      %p89 = por %p87, %p88
      %p91 = scmp.ne.s32.totalorder %s74, %s90
      %p92 = scmp.eq.s32.totalorder %s54, 0
      %p93 = por %p91, %p92
      %s94 = ssub.s32 %s55, %s67
      %p95 = scmp.eq.s32.totalorder %s94, 0
      %s97 = sadd.s32 %s96, 1
      %s98 = scalar_select %p95, %s96, %s97
      %p101 = pneg %p95
      %p102 = scmp.eq.s32.totalorder %s48, 1
      %p103 = por %p101, %p102
      %p104 = scmp.ne.s32.totalorder %s96, %s99
      %p105 = scmp.eq.s32.totalorder %s48, 0
      %p106 = por %p104, %p105
      %p107 = scmp.ne.s32.totalorder %s96, %s99
      %p108 = scmp.eq.s32.totalorder %s53, 1
      %p109 = por %p107, %p108
      %p110 = scmp.ne.s32.totalorder %s99, %s100
      %p111 = scmp.eq.s32.totalorder %s53, 0
      %p112 = por %p110, %p111
      %p113 = scmp.ne.s32.totalorder %s99, %s100
      %p114 = scmp.eq.s32.totalorder %s54, 1
      %p115 = por %p113, %p114
      %p117 = scmp.ne.s32.totalorder %s100, %s116
      %p118 = scmp.eq.s32.totalorder %s54, 0
      %p119 = por %p117, %p118
      %s121 = sadd.s32 %s120, 1
      %p124 = scmp.eq.s32.totalorder %s48, 1
      %p125 = scmp.ne.s32.totalorder %s120, %s122
      %p126 = scmp.eq.s32.totalorder %s48, 0
      %p127 = por %p125, %p126
      %p128 = scmp.ne.s32.totalorder %s120, %s122
      %p129 = scmp.eq.s32.totalorder %s53, 1
      %p130 = por %p128, %p129
      %p131 = scmp.ne.s32.totalorder %s122, %s123
      %p132 = scmp.eq.s32.totalorder %s53, 0
      %p133 = por %p131, %p132
      %p134 = scmp.ne.s32.totalorder %s122, %s123
      %p135 = scmp.eq.s32.totalorder %s54, 1
      %p136 = por %p134, %p135
      %p138 = scmp.ne.s32.totalorder %s123, %s137
      %p139 = scmp.eq.s32.totalorder %s54, 0
      %p140 = por %p138, %p139
      %s142 = sadd.s32 %s141, 1
      %p145 = scmp.eq.s32.totalorder %s48, 1
      %p146 = scmp.ne.s32.totalorder %s141, %s143
      %p147 = scmp.eq.s32.totalorder %s48, 0
      %p148 = por %p146, %p147
      %p149 = scmp.ne.s32.totalorder %s141, %s143
      %p150 = scmp.eq.s32.totalorder %s53, 1
      %p151 = por %p149, %p150
      %p152 = scmp.ne.s32.totalorder %s143, %s144
      %p153 = scmp.eq.s32.totalorder %s53, 0
      %p154 = por %p152, %p153
      %p155 = scmp.ne.s32.totalorder %s143, %s144
      %p156 = scmp.eq.s32.totalorder %s54, 1
      %p157 = por %p155, %p156
      %p159 = scmp.ne.s32.totalorder %s144, %s158
      %p160 = scmp.eq.s32.totalorder %s54, 0
      %p161 = por %p159, %p160
      %s163 = sadd.s32 %s162, 1
      %p166 = scmp.eq.s32.totalorder %s48, 1
      %p167 = scmp.ne.s32.totalorder %s162, %s164
      %p168 = scmp.eq.s32.totalorder %s48, 0
      %p169 = por %p167, %p168
      %p170 = scmp.ne.s32.totalorder %s162, %s164
      %p171 = scmp.eq.s32.totalorder %s53, 1
      %p172 = por %p170, %p171
      %p173 = scmp.ne.s32.totalorder %s164, %s165
      %p174 = scmp.eq.s32.totalorder %s53, 0
      %p175 = por %p173, %p174
      %p176 = scmp.ne.s32.totalorder %s164, %s165
      %p177 = scmp.eq.s32.totalorder %s54, 1
      %p178 = por %p176, %p177
      %p180 = scmp.ne.s32.totalorder %s165, %s179
      %p181 = scmp.eq.s32.totalorder %s54, 0
      %p182 = por %p180, %p181
      %s184 = sadd.s32 %s183, 1
      %p187 = scmp.eq.s32.totalorder %s48, 1
      %p188 = scmp.ne.s32.totalorder %s183, %s185
      %p189 = scmp.eq.s32.totalorder %s48, 0
      %p190 = por %p188, %p189
      %p191 = scmp.ne.s32.totalorder %s183, %s185
      %p192 = scmp.eq.s32.totalorder %s53, 1
      %p193 = por %p191, %p192
      %p194 = scmp.ne.s32.totalorder %s185, %s186
      %p195 = scmp.eq.s32.totalorder %s53, 0
      %p196 = por %p194, %p195
      %p197 = scmp.ne.s32.totalorder %s185, %s186
      %p198 = scmp.eq.s32.totalorder %s54, 1
      %p199 = por %p197, %p198
      %p201 = scmp.ne.s32.totalorder %s186, %s200
      %p202 = scmp.eq.s32.totalorder %s54, 0
      %p203 = por %p201, %p202
      %s205 = sadd.s32 %s204, 1
      %p208 = scmp.eq.s32.totalorder %s48, 1
      %p209 = scmp.ne.s32.totalorder %s204, %s206
      %p210 = scmp.eq.s32.totalorder %s48, 0
      %p211 = por %p209, %p210
      %p212 = scmp.ne.s32.totalorder %s204, %s206
      %p213 = scmp.eq.s32.totalorder %s53, 1
      %p214 = por %p212, %p213
      %p215 = scmp.ne.s32.totalorder %s206, %s207
      %p216 = scmp.eq.s32.totalorder %s53, 0
      %p217 = por %p215, %p216
      %p218 = scmp.ne.s32.totalorder %s206, %s207
      %p219 = scmp.eq.s32.totalorder %s54, 1
      %p220 = por %p218, %p219
      %p222 = scmp.ne.s32.totalorder %s207, %s221
      %p223 = scmp.eq.s32.totalorder %s54, 0
      %p224 = por %p222, %p223
      %s226 = sadd.s32 %s225, 1
      %p229 = scmp.eq.s32.totalorder %s48, 1
      %p230 = scmp.ne.s32.totalorder %s225, %s227
      %p231 = scmp.eq.s32.totalorder %s48, 0
      %p232 = por %p230, %p231
      %p233 = scmp.ne.s32.totalorder %s225, %s227
      %p234 = scmp.eq.s32.totalorder %s53, 1
      %p235 = por %p233, %p234
      %p236 = scmp.ne.s32.totalorder %s227, %s228
      %p237 = scmp.eq.s32.totalorder %s53, 0
      %p238 = por %p236, %p237
      %p239 = scmp.ne.s32.totalorder %s227, %s228
      %p240 = scmp.eq.s32.totalorder %s54, 1
      %p241 = por %p239, %p240
      %p243 = scmp.ne.s32.totalorder %s228, %s242
      %p244 = scmp.eq.s32.totalorder %s54, 0
      %p245 = por %p243, %p244
      %s247 = sadd.s32 %s246, 1
      %p250 = scmp.eq.s32.totalorder %s48, 1
      %p251 = scmp.ne.s32.totalorder %s246, %s248
      %p252 = scmp.eq.s32.totalorder %s48, 0
      %p253 = por %p251, %p252
      %p254 = scmp.ne.s32.totalorder %s246, %s248
      %p255 = scmp.eq.s32.totalorder %s53, 1
      %p256 = por %p254, %p255
      %p257 = scmp.ne.s32.totalorder %s248, %s249
      %p258 = scmp.eq.s32.totalorder %s53, 0
      %p259 = por %p257, %p258
      %p260 = scmp.ne.s32.totalorder %s248, %s249
      %p261 = scmp.eq.s32.totalorder %s54, 1
      %p262 = por %p260, %p261
      %p264 = scmp.ne.s32.totalorder %s249, %s263
      %p265 = scmp.eq.s32.totalorder %s54, 0
      %p266 = por %p264, %p265
      %s268 = sadd.s32 %s267, 1
      %p271 = scmp.eq.s32.totalorder %s48, 1
      %p272 = scmp.ne.s32.totalorder %s267, %s269
      %p273 = scmp.eq.s32.totalorder %s48, 0
      %p274 = por %p272, %p273
      %p275 = scmp.ne.s32.totalorder %s267, %s269
      %p276 = scmp.eq.s32.totalorder %s53, 1
      %p277 = por %p275, %p276
      %p278 = scmp.ne.s32.totalorder %s269, %s270
      %p279 = scmp.eq.s32.totalorder %s53, 0
      %p280 = por %p278, %p279
      %p281 = scmp.ne.s32.totalorder %s269, %s270
      %p282 = scmp.eq.s32.totalorder %s54, 1
      %p283 = por %p281, %p282
      %p285 = scmp.ne.s32.totalorder %s270, %s284
      %p286 = scmp.eq.s32.totalorder %s54, 0
      %p287 = por %p285, %p286
      %s289 = sadd.s32 %s288, 1
      %p292 = scmp.eq.s32.totalorder %s48, 1
      %p293 = scmp.ne.s32.totalorder %s288, %s290
      %p294 = scmp.eq.s32.totalorder %s48, 0
      %p295 = por %p293, %p294
      %p296 = scmp.ne.s32.totalorder %s288, %s290
      %p297 = scmp.eq.s32.totalorder %s53, 1
      %p298 = por %p296, %p297
      %p299 = scmp.ne.s32.totalorder %s290, %s291
      %p300 = scmp.eq.s32.totalorder %s53, 0
      %p301 = por %p299, %p300
      %p302 = scmp.ne.s32.totalorder %s290, %s291
      %p303 = scmp.eq.s32.totalorder %s54, 1
      %p304 = por %p302, %p303
      %p306 = scmp.ne.s32.totalorder %s291, %s305
      %p307 = scmp.eq.s32.totalorder %s54, 0
      %p308 = por %p306, %p307
      %s310 = sadd.s32 %s309, 1
      %p313 = scmp.eq.s32.totalorder %s48, 1
      %p314 = scmp.ne.s32.totalorder %s309, %s311
      %p315 = scmp.eq.s32.totalorder %s48, 0
      %p316 = por %p314, %p315
      %p317 = scmp.ne.s32.totalorder %s309, %s311
      %p318 = scmp.eq.s32.totalorder %s53, 1
      %p319 = por %p317, %p318
      %p320 = scmp.ne.s32.totalorder %s311, %s312
      %p321 = scmp.eq.s32.totalorder %s53, 0
      %p322 = por %p320, %p321
      %p323 = scmp.ne.s32.totalorder %s311, %s312
      %p324 = scmp.eq.s32.totalorder %s54, 1
      %p325 = por %p323, %p324
      %p327 = scmp.ne.s32.totalorder %s312, %s326
      %p328 = scmp.eq.s32.totalorder %s54, 0
      %p329 = por %p327, %p328
      %s331 = sadd.s32 %s330, 1
      %p334 = scmp.eq.s32.totalorder %s48, 1
      %p335 = scmp.ne.s32.totalorder %s330, %s332
      %p336 = scmp.eq.s32.totalorder %s48, 0
      %p337 = por %p335, %p336
      %p338 = scmp.ne.s32.totalorder %s330, %s332
      %p339 = scmp.eq.s32.totalorder %s53, 1
      %p340 = por %p338, %p339
      %p341 = scmp.ne.s32.totalorder %s332, %s333
      %p342 = scmp.eq.s32.totalorder %s53, 0
      %p343 = por %p341, %p342
      %p344 = scmp.ne.s32.totalorder %s332, %s333
      %p345 = scmp.eq.s32.totalorder %s54, 1
      %p346 = por %p344, %p345
      %p348 = scmp.ne.s32.totalorder %s333, %s347
      %p349 = scmp.eq.s32.totalorder %s54, 0
      %p350 = por %p348, %p349
      %s352 = sadd.s32 %s351, 1
      %p355 = scmp.eq.s32.totalorder %s48, 1
      %p356 = scmp.ne.s32.totalorder %s351, %s353
      %p357 = scmp.eq.s32.totalorder %s48, 0
      %p358 = por %p356, %p357
      %p359 = scmp.ne.s32.totalorder %s351, %s353
      %p360 = scmp.eq.s32.totalorder %s53, 1
      %p361 = por %p359, %p360
      %p362 = scmp.ne.s32.totalorder %s353, %s354
      %p363 = scmp.eq.s32.totalorder %s53, 0
      %p364 = por %p362, %p363
      %p365 = scmp.ne.s32.totalorder %s353, %s354
      %p366 = scmp.eq.s32.totalorder %s54, 1
      %p367 = por %p365, %p366
      %p369 = scmp.ne.s32.totalorder %s354, %s368
      %p370 = scmp.eq.s32.totalorder %s54, 0
      %p371 = por %p369, %p370
      %s373 = sadd.s32 %s372, 1
      %p376 = scmp.eq.s32.totalorder %s48, 1
      %p377 = scmp.ne.s32.totalorder %s372, %s374
      %p378 = scmp.eq.s32.totalorder %s48, 0
      %p379 = por %p377, %p378
      %p380 = scmp.ne.s32.totalorder %s372, %s374
      %p381 = scmp.eq.s32.totalorder %s53, 1
      %p382 = por %p380, %p381
      %p383 = scmp.ne.s32.totalorder %s374, %s375
      %p384 = scmp.eq.s32.totalorder %s53, 0
      %p385 = por %p383, %p384
      %p386 = scmp.ne.s32.totalorder %s374, %s375
      %p387 = scmp.eq.s32.totalorder %s54, 1
      %p388 = por %p386, %p387
      %p390 = scmp.ne.s32.totalorder %s375, %s389
      %p391 = scmp.eq.s32.totalorder %s54, 0
      %p392 = por %p390, %p391
      %s394 = sadd.s32 %s393, 1
      %p397 = scmp.eq.s32.totalorder %s48, 1
      %p398 = scmp.ne.s32.totalorder %s393, %s395
      %p399 = scmp.eq.s32.totalorder %s48, 0
      %p400 = por %p398, %p399
      %p401 = scmp.ne.s32.totalorder %s393, %s395
      %p402 = scmp.eq.s32.totalorder %s53, 1
      %p403 = por %p401, %p402
      %p404 = scmp.ne.s32.totalorder %s395, %s396
      %p405 = scmp.eq.s32.totalorder %s53, 0
      %p406 = por %p404, %p405
      %p407 = scmp.ne.s32.totalorder %s395, %s396
      %p408 = scmp.eq.s32.totalorder %s54, 1
      %p409 = por %p407, %p408
      %p411 = scmp.ne.s32.totalorder %s396, %s410
      %p412 = scmp.eq.s32.totalorder %s54, 0
      %p413 = por %p411, %p412
      %s415 = sadd.s32 %s414, 1
      %p418 = scmp.eq.s32.totalorder %s48, 1
      %p419 = scmp.ne.s32.totalorder %s414, %s416
      %p420 = scmp.eq.s32.totalorder %s48, 0
      %p421 = por %p419, %p420
      %p422 = scmp.ne.s32.totalorder %s414, %s416
      %p423 = scmp.eq.s32.totalorder %s53, 1
      %p424 = por %p422, %p423
      %p425 = scmp.ne.s32.totalorder %s416, %s417
      %p426 = scmp.eq.s32.totalorder %s53, 0
      %p427 = por %p425, %p426
      %p428 = scmp.ne.s32.totalorder %s416, %s417
      %p429 = scmp.eq.s32.totalorder %s54, 1
      %p430 = por %p428, %p429
      %p432 = scmp.ne.s32.totalorder %s417, %s431
      %p433 = scmp.eq.s32.totalorder %s54, 0
      %p434 = por %p432, %p433
      %s436 = sadd.s32 %s435, 1
      %p439 = scmp.eq.s32.totalorder %s48, 1
      %p440 = scmp.ne.s32.totalorder %s435, %s437
      %p441 = scmp.eq.s32.totalorder %s48, 0
      %p442 = por %p440, %p441
      %p443 = scmp.ne.s32.totalorder %s435, %s437
      %p444 = scmp.eq.s32.totalorder %s53, 1
      %p445 = por %p443, %p444
      %p446 = scmp.ne.s32.totalorder %s437, %s438
      %p447 = scmp.eq.s32.totalorder %s53, 0
      %p448 = por %p446, %p447
      %p449 = scmp.ne.s32.totalorder %s437, %s438
      %p450 = scmp.eq.s32.totalorder %s54, 1
      %p451 = por %p449, %p450
      %p453 = scmp.ne.s32.totalorder %s438, %s452
      %p454 = scmp.eq.s32.totalorder %s54, 0
      %p455 = por %p453, %p454
      %s457 = sadd.s32 %s456, 1
      %p460 = scmp.eq.s32.totalorder %s48, 1
      %p461 = scmp.ne.s32.totalorder %s456, %s458
      %p462 = scmp.eq.s32.totalorder %s48, 0
      %p463 = por %p461, %p462
      %p464 = scmp.ne.s32.totalorder %s456, %s458
      %p465 = scmp.eq.s32.totalorder %s53, 1
      %p466 = por %p464, %p465
      %p467 = scmp.ne.s32.totalorder %s458, %s459
      %p468 = scmp.eq.s32.totalorder %s53, 0
      %p469 = por %p467, %p468
      %p470 = scmp.ne.s32.totalorder %s458, %s459
      %p471 = scmp.eq.s32.totalorder %s54, 1
      %p472 = por %p470, %p471
      %p474 = scmp.ne.s32.totalorder %s459, %s473
      %p475 = scmp.eq.s32.totalorder %s54, 0
      %p476 = por %p474, %p475
      %s478 = sadd.s32 %s477, 1
      %p481 = scmp.eq.s32.totalorder %s48, 1
      %p482 = scmp.ne.s32.totalorder %s477, %s479
      %p483 = scmp.eq.s32.totalorder %s48, 0
      %p484 = por %p482, %p483
      %p485 = scmp.ne.s32.totalorder %s477, %s479
      %p486 = scmp.eq.s32.totalorder %s53, 1
      %p487 = por %p485, %p486
      %p488 = scmp.ne.s32.totalorder %s479, %s480
      %p489 = scmp.eq.s32.totalorder %s53, 0
      %p490 = por %p488, %p489
      %p491 = scmp.ne.s32.totalorder %s479, %s480
      %p492 = scmp.eq.s32.totalorder %s54, 1
      %p493 = por %p491, %p492
      %p495 = scmp.ne.s32.totalorder %s480, %s494
      %p496 = scmp.eq.s32.totalorder %s54, 0
      %p497 = por %p495, %p496
      %s499 = sadd.s32 %s498, 1
      %p502 = scmp.eq.s32.totalorder %s48, 1
      %p503 = scmp.ne.s32.totalorder %s498, %s500
      %p504 = scmp.eq.s32.totalorder %s48, 0
      %p505 = por %p503, %p504
      %p506 = scmp.ne.s32.totalorder %s498, %s500
      %p507 = scmp.eq.s32.totalorder %s53, 1
      %p508 = por %p506, %p507
      %p509 = scmp.ne.s32.totalorder %s500, %s501
      %p510 = scmp.eq.s32.totalorder %s53, 0
      %p511 = por %p509, %p510
      %p512 = scmp.ne.s32.totalorder %s500, %s501
      %p513 = scmp.eq.s32.totalorder %s54, 1
      %p514 = por %p512, %p513
      %p516 = scmp.ne.s32.totalorder %s501, %s515
      %p517 = scmp.eq.s32.totalorder %s54, 0
      %p518 = por %p516, %p517
      %s520 = sadd.s32 %s519, 1
      %p523 = scmp.eq.s32.totalorder %s48, 1
      %p524 = scmp.ne.s32.totalorder %s519, %s521
      %p525 = scmp.eq.s32.totalorder %s48, 0
      %p526 = por %p524, %p525
      %p527 = scmp.ne.s32.totalorder %s519, %s521
      %p528 = scmp.eq.s32.totalorder %s53, 1
      %p529 = por %p527, %p528
      %p530 = scmp.ne.s32.totalorder %s521, %s522
      %p531 = scmp.eq.s32.totalorder %s53, 0
      %p532 = por %p530, %p531
      %p533 = scmp.ne.s32.totalorder %s521, %s522
      %p534 = scmp.eq.s32.totalorder %s54, 1
      %p535 = por %p533, %p534
      %p537 = scmp.ne.s32.totalorder %s522, %s536
      %p538 = scmp.eq.s32.totalorder %s54, 0
      %p539 = por %p537, %p538
      %s540 = ssub.s32 %s55, %s67
      %s541 = ssub.s32 %s56, %s63
      %s542 = sor.u32 %s540, %s541
      %p543 = scmp.eq.s32.totalorder %s542, 0
      %s545 = sadd.s32 %s544, 1
      %s546 = scalar_select %p543, %s544, %s545
      %p549 = pneg %p543
      %p550 = scmp.eq.s32.totalorder %s48, 1
      %p551 = por %p549, %p550
      %p552 = scmp.ne.s32.totalorder %s544, %s547
      %p553 = scmp.eq.s32.totalorder %s48, 0
      %p554 = por %p552, %p553
      %p555 = scmp.ne.s32.totalorder %s544, %s547
      %p556 = scmp.eq.s32.totalorder %s53, 1
      %p557 = por %p555, %p556
      %p558 = scmp.ne.s32.totalorder %s547, %s548
      %p559 = scmp.eq.s32.totalorder %s53, 0
      %p560 = por %p558, %p559
      %p561 = scmp.ne.s32.totalorder %s547, %s548
      %p562 = scmp.eq.s32.totalorder %s54, 1
      %p563 = por %p561, %p562
      %p565 = scmp.ne.s32.totalorder %s548, %s564
      %p566 = scmp.eq.s32.totalorder %s54, 0
      %p567 = por %p565, %p566
      %p568 = scmp.le.s32.totalorder 1, %s48
      %p569 = scmp.lt.s32.totalorder %s48, 3
      %p570 = pnand %p568, %p569
      %p571 = pneg %p570
      // Predicated region
      $region9: #{tpu_custom_call.1} parent=5 // pred_check
        _
      $region10: #{tpu_custom_call.1} parent=5 // pred_check_branch
        %573 = sbr.rel (%p570) target = $region12
      $region11: #{tpu_custom_call.1} parent=5 // pred_region
        %s574 = ssub.s32 %s48, 1
        // Predicated region
        $region13: #{tpu_custom_call.1} parent=11 // pred_check
          %p575 = pneg %p133
        $region14: #{tpu_custom_call.1} parent=11 // pred_check_branch
          %577 = sbr.rel (%p575) target = $region16
        $region15: #{tpu_custom_call.1} parent=11 // pred_region
          %s579 = ssub.s32 3072, 3072
          %580 = vsyncadd [#allocation11], %s579
          %s581 = sshll.u32 [#allocation12], 4
          %s582 = int_to_ptr.vmem [resolvable:$true] %s581
          %587 = dma.hbm_to_vmem [thread:$0]  %s4, 3072, %s582, [#allocation11], 192, 192, 12
        $region16: #{tpu_custom_call.1} parent=11 // pred_fallthru
          _
        // Predicated region
        $region17: #{tpu_custom_call.1} parent=11 // pred_check
          %p588 = pneg %p154
        $region18: #{tpu_custom_call.1} parent=11 // pred_check_branch
          %590 = sbr.rel (%p588) target = $region20
        $region19: #{tpu_custom_call.1} parent=11 // pred_region
          _
        $region20: #{tpu_custom_call.1} parent=11 // pred_fallthru
          _
        // Predicated region
        $region21: #{tpu_custom_call.1} parent=11 // pred_check
          %p591 = pneg %p175
        $region22: #{tpu_custom_call.1} parent=11 // pred_check_branch
          %593 = sbr.rel (%p591) target = $region24
        $region23: #{tpu_custom_call.1} parent=11 // pred_region
          %s595 = ssub.s32 1024, 1024
          %596 = vsyncadd [#allocation14], %s595
          %s597 = sshll.u32 [#allocation13], 4
          %s598 = int_to_ptr.vmem [resolvable:$true] %s597
          %603 = dma.hbm_to_vmem [thread:$0]  %s6, 1024, %s598, [#allocation14], 64, 64, 4
        $region24: #{tpu_custom_call.1} parent=11 // pred_fallthru
          _
        // Predicated region
        $region25: #{tpu_custom_call.1} parent=11 // pred_check
          %p604 = pneg %p196
        $region26: #{tpu_custom_call.1} parent=11 // pred_check_branch
          %606 = sbr.rel (%p604) target = $region28
        $region27: #{tpu_custom_call.1} parent=11 // pred_region
          _
        $region28: #{tpu_custom_call.1} parent=11 // pred_fallthru
          _
        // Predicated region
        $region29: #{tpu_custom_call.1} parent=11 // pred_check
          %p607 = pneg %p217
        $region30: #{tpu_custom_call.1} parent=11 // pred_check_branch
          %609 = sbr.rel (%p607) target = $region32
        $region31: #{tpu_custom_call.1} parent=11 // pred_region
          %s611 = ssub.s32 1024, 1024
          %612 = vsyncadd [#allocation14], %s611
          %s613 = sshll.u32 [#allocation15], 4
          %s614 = int_to_ptr.vmem [resolvable:$true] %s613
          %619 = dma.hbm_to_vmem [thread:$0]  %s8, 1024, %s614, [#allocation14], 64, 64, 4
        $region32: #{tpu_custom_call.1} parent=11 // pred_fallthru
          _
        // Predicated region
        $region33: #{tpu_custom_call.1} parent=11 // pred_check
          %p620 = pneg %p238
        $region34: #{tpu_custom_call.1} parent=11 // pred_check_branch
          %622 = sbr.rel (%p620) target = $region36
        $region35: #{tpu_custom_call.1} parent=11 // pred_region
          _
        $region36: #{tpu_custom_call.1} parent=11 // pred_fallthru
          _
        // Predicated region
        $region37: #{tpu_custom_call.1} parent=11 // pred_check
          %p623 = pneg %p259
        $region38: #{tpu_custom_call.1} parent=11 // pred_check_branch
          %625 = sbr.rel (%p623) target = $region40
        $region39: #{tpu_custom_call.1} parent=11 // pred_region
          %s627 = ssub.s32 2048, 2048
          %628 = vsyncadd [#allocation17], %s627
          %s629 = sshll.u32 [#allocation16], 4
          %s630 = int_to_ptr.vmem [resolvable:$true] %s629
          %635 = dma.hbm_to_vmem [thread:$0]  %s10, 2048, %s630, [#allocation17], 128, 128, 8
        $region40: #{tpu_custom_call.1} parent=11 // pred_fallthru
          _
        // Predicated region
        $region41: #{tpu_custom_call.1} parent=11 // pred_check
          %p636 = pneg %p280
        $region42: #{tpu_custom_call.1} parent=11 // pred_check_branch
          %638 = sbr.rel (%p636) target = $region44
        $region43: #{tpu_custom_call.1} parent=11 // pred_region
          _
        $region44: #{tpu_custom_call.1} parent=11 // pred_fallthru
          _
        // Predicated region
        $region45: #{tpu_custom_call.1} parent=11 // pred_check
          %p639 = pneg %p301
        $region46: #{tpu_custom_call.1} parent=11 // pred_check_branch
          %641 = sbr.rel (%p639) target = $region48
        $region47: #{tpu_custom_call.1} parent=11 // pred_region
          %s643 = ssub.s32 1024, 1024
          %644 = vsyncadd [#allocation17], %s643
          %s645 = sshll.u32 [#allocation18], 4
          %s646 = int_to_ptr.vmem [resolvable:$true] %s645
          %651 = dma.hbm_to_vmem [thread:$0]  %s12, 1024, %s646, [#allocation17], 64, 64, 4
        $region48: #{tpu_custom_call.1} parent=11 // pred_fallthru
          _
        // Predicated region
        $region49: #{tpu_custom_call.1} parent=11 // pred_check
          %p652 = pneg %p322
        $region50: #{tpu_custom_call.1} parent=11 // pred_check_branch
          %654 = sbr.rel (%p652) target = $region52
        $region51: #{tpu_custom_call.1} parent=11 // pred_region
          _
        $region52: #{tpu_custom_call.1} parent=11 // pred_fallthru
          _
        // Predicated region
        $region53: #{tpu_custom_call.1} parent=11 // pred_check
          %p655 = pneg %p343
        $region54: #{tpu_custom_call.1} parent=11 // pred_check_branch
          %657 = sbr.rel (%p655) target = $region56
        $region55: #{tpu_custom_call.1} parent=11 // pred_region
          %s659 = ssub.s32 2048, 2048
          %660 = vsyncadd [#allocation20], %s659
          %s661 = sshll.u32 [#allocation19], 4
          %s662 = int_to_ptr.vmem [resolvable:$true] %s661
          %667 = dma.hbm_to_vmem [thread:$0]  %s14, 2048, %s662, [#allocation20], 128, 128, 8
        $region56: #{tpu_custom_call.1} parent=11 // pred_fallthru
          _
        // Predicated region
        $region57: #{tpu_custom_call.1} parent=11 // pred_check
          %p668 = pneg %p364
        $region58: #{tpu_custom_call.1} parent=11 // pred_check_branch
          %670 = sbr.rel (%p668) target = $region60
        $region59: #{tpu_custom_call.1} parent=11 // pred_region
          _
        $region60: #{tpu_custom_call.1} parent=11 // pred_fallthru
          _
        // Predicated region
        $region61: #{tpu_custom_call.1} parent=11 // pred_check
          %p671 = pneg %p385
        $region62: #{tpu_custom_call.1} parent=11 // pred_check_branch
          %673 = sbr.rel (%p671) target = $region64
        $region63: #{tpu_custom_call.1} parent=11 // pred_region
          %s675 = ssub.s32 2048, 2048
          %676 = vsyncadd [#allocation20], %s675
          %s677 = sshll.u32 [#allocation21], 4
          %s678 = int_to_ptr.vmem [resolvable:$true] %s677
          %683 = dma.hbm_to_vmem [thread:$0]  %s16, 2048, %s678, [#allocation20], 64, 64, 4
        $region64: #{tpu_custom_call.1} parent=11 // pred_fallthru
          _
        // Predicated region
        $region65: #{tpu_custom_call.1} parent=11 // pred_check
          %p684 = pneg %p406
        $region66: #{tpu_custom_call.1} parent=11 // pred_check_branch
          %686 = sbr.rel (%p684) target = $region68
        $region67: #{tpu_custom_call.1} parent=11 // pred_region
          _
        $region68: #{tpu_custom_call.1} parent=11 // pred_fallthru
          _
        // Predicated region
        $region69: #{tpu_custom_call.1} parent=11 // pred_check
          %p687 = pneg %p427
        $region70: #{tpu_custom_call.1} parent=11 // pred_check_branch
          %689 = sbr.rel (%p687) target = $region72
        $region71: #{tpu_custom_call.1} parent=11 // pred_region
          _
        $region72: #{tpu_custom_call.1} parent=11 // pred_fallthru
          _
        // Predicated region
        $region73: #{tpu_custom_call.1} parent=11 // pred_check
          %p690 = pneg %p448
        $region74: #{tpu_custom_call.1} parent=11 // pred_check_branch
          %692 = sbr.rel (%p690) target = $region76
        $region75: #{tpu_custom_call.1} parent=11 // pred_region
          _
        $region76: #{tpu_custom_call.1} parent=11 // pred_fallthru
          _
        // Predicated region
        $region77: #{tpu_custom_call.1} parent=11 // pred_check
          %p693 = pneg %p469
        $region78: #{tpu_custom_call.1} parent=11 // pred_check_branch
          %695 = sbr.rel (%p693) target = $region80
        $region79: #{tpu_custom_call.1} parent=11 // pred_region
          _
        $region80: #{tpu_custom_call.1} parent=11 // pred_fallthru
          _
        // Predicated region
        $region81: #{tpu_custom_call.1} parent=11 // pred_check
          %p696 = pneg %p490
        $region82: #{tpu_custom_call.1} parent=11 // pred_check_branch
          %698 = sbr.rel (%p696) target = $region84
        $region83: #{tpu_custom_call.1} parent=11 // pred_region
          _
        $region84: #{tpu_custom_call.1} parent=11 // pred_fallthru
          _
        // Predicated region
        $region85: #{tpu_custom_call.1} parent=11 // pred_check
          %p699 = pneg %p511
        $region86: #{tpu_custom_call.1} parent=11 // pred_check_branch
          %701 = sbr.rel (%p699) target = $region88
        $region87: #{tpu_custom_call.1} parent=11 // pred_region
          _
        $region88: #{tpu_custom_call.1} parent=11 // pred_fallthru
          _
        // Predicated region
        $region89: #{tpu_custom_call.1} parent=11 // pred_check
          %p702 = pneg %p532
        $region90: #{tpu_custom_call.1} parent=11 // pred_check_branch
          %704 = sbr.rel (%p702) target = $region92
        $region91: #{tpu_custom_call.1} parent=11 // pred_region
          _
        $region92: #{tpu_custom_call.1} parent=11 // pred_fallthru
          _
      $region12: #{tpu_custom_call.1} parent=5 // pred_fallthru
        _
      %p705 = scmp.lt.s32.totalorder %s48, 2
      // Predicated region
      $region93: #{tpu_custom_call.1} parent=5 // pred_check
        %p706 = pneg %p705
      $region94: #{tpu_custom_call.1} parent=5 // pred_check_branch
        %708 = sbr.rel (%p706) target = $region96
      $region95: #{tpu_custom_call.1} parent=5 // pred_region
        // Predicated region
        $region97: #{tpu_custom_call.1} parent=95 // pred_check
          %p709 = pneg %p80
        $region98: #{tpu_custom_call.1} parent=95 // pred_check_branch
          %711 = sbr.rel (%p709) target = $region100
        $region99: #{tpu_custom_call.1} parent=95 // pred_region
          %s712 = sand.u32 %s70, 1
          %s713 = scalar_lea.sflag [#allocation8], %s712
          %s714 = sand.u32 %s70, 1
          %s715 = smul.addr %s714, 4
          %s716 = scalar_lea.vmem [#allocation7], %s715
          %s718 = ssub.s32 64, 64
          %719 = vsyncadd %s713, %s718
          %s720 = smul.addr %s55, 64
          %s721 = scalar_lea.hbm %s2, %s720
          %s723 = sshll.u32 %s716, 4
          %s724 = int_to_ptr.vmem [resolvable:$true] %s723
          %726 = dma.hbm_to_vmem [thread:$0]  %s721, 64, %s724, %s713
        $region100: #{tpu_custom_call.1} parent=95 // pred_fallthru
          _
        // Predicated region
        $region101: #{tpu_custom_call.1} parent=95 // pred_check
          %p727 = pneg %p106
        $region102: #{tpu_custom_call.1} parent=95 // pred_check_branch
          %729 = sbr.rel (%p727) target = $region104
        $region103: #{tpu_custom_call.1} parent=95 // pred_region
          %s730 = sand.u32 %s48, 1
          %s731 = scalar_lea.sflag [#allocation11], %s730
          %s732 = sand.u32 %s96, 1
          %s733 = smul.addr %s732, 8
          %s734 = scalar_lea.vmem [#allocation10], %s733
          %s736 = ssub.s32 128, 128
          %737 = vsyncadd %s731, %s736
          %s738 = smul.addr %s55, 2
          %s739 = smul.addr %s738, 64
          %s740 = scalar_lea.hbm %s3, %s739
          %s741 = sshll.u32 %s734, 4
          %s742 = int_to_ptr.vmem [resolvable:$true] %s741
          %747 = dma.hbm_to_vmem [thread:$0]  %s740, 128, %s742, %s731, 64, 64, 4
        $region104: #{tpu_custom_call.1} parent=95 // pred_fallthru
          _
      $region96: #{tpu_custom_call.1} parent=5 // pred_fallthru
        _
      %p748 = scmp.le.s32.totalorder 1, %s48
      %p749 = scmp.lt.s32.totalorder %s48, 3
      %p750 = pnand %p748, %p749
      %p751 = pneg %p750
      // Predicated region
      $region105: #{tpu_custom_call.1} parent=5 // pred_check
        _
      $region106: #{tpu_custom_call.1} parent=5 // pred_check_branch
        %753 = sbr.rel (%p750) target = $region108
      $region107: #{tpu_custom_call.1} parent=5 // pred_region
        %s754 = ssub.s32 %s48, 1
        %s755 = sand.u32 %s73, 1
        %s756 = scalar_lea.sflag [#allocation8], %s755
        %s757 = sand.u32 %s73, 1
        %s758 = smul.addr %s757, 4
        %s759 = scalar_lea.vmem [#allocation7], %s758
        // Predicated region
        $region109: #{tpu_custom_call.1} parent=107 // pred_check
          %p760 = pneg %p86
        $region110: #{tpu_custom_call.1} parent=107 // pred_check_branch
          %762 = sbr.rel (%p760) target = $region112
        $region111: #{tpu_custom_call.1} parent=107 // pred_region
          %763 = dma.done %s756, 64
        $region112: #{tpu_custom_call.1} parent=107 // pred_fallthru
          _
        %s764 = sand.u32 %s53, 1
        %s765 = scalar_lea.sflag [#allocation11], %s764
        %s766 = sand.u32 %s99, 1
        %s767 = smul.addr %s766, 8
        %s768 = scalar_lea.vmem [#allocation10], %s767
        // Predicated region
        $region113: #{tpu_custom_call.1} parent=107 // pred_check
          %p769 = pneg %p112
        $region114: #{tpu_custom_call.1} parent=107 // pred_check_branch
          %771 = sbr.rel (%p769) target = $region116
        $region115: #{tpu_custom_call.1} parent=107 // pred_region
          %772 = dma.done %s765, 128
        $region116: #{tpu_custom_call.1} parent=107 // pred_fallthru
          _
        // Predicated region
        $region117: #{tpu_custom_call.1} parent=107 // pred_check
          %p773 = pneg %p133
        $region118: #{tpu_custom_call.1} parent=107 // pred_check_branch
          %775 = sbr.rel (%p773) target = $region120
        $region119: #{tpu_custom_call.1} parent=107 // pred_region
          %776 = dma.done [#allocation11], 3072
        $region120: #{tpu_custom_call.1} parent=107 // pred_fallthru
          _
        // Predicated region
        $region121: #{tpu_custom_call.1} parent=107 // pred_check
          %p777 = pneg %p175
        $region122: #{tpu_custom_call.1} parent=107 // pred_check_branch
          %779 = sbr.rel (%p777) target = $region124
        $region123: #{tpu_custom_call.1} parent=107 // pred_region
          %780 = dma.done [#allocation14], 1024
        $region124: #{tpu_custom_call.1} parent=107 // pred_fallthru
          _
        // Predicated region
        $region125: #{tpu_custom_call.1} parent=107 // pred_check
          %p781 = pneg %p217
        $region126: #{tpu_custom_call.1} parent=107 // pred_check_branch
          %783 = sbr.rel (%p781) target = $region128
        $region127: #{tpu_custom_call.1} parent=107 // pred_region
          %784 = dma.done [#allocation14], 1024
        $region128: #{tpu_custom_call.1} parent=107 // pred_fallthru
          _
        // Predicated region
        $region129: #{tpu_custom_call.1} parent=107 // pred_check
          %p785 = pneg %p259
        $region130: #{tpu_custom_call.1} parent=107 // pred_check_branch
          %787 = sbr.rel (%p785) target = $region132
        $region131: #{tpu_custom_call.1} parent=107 // pred_region
          %788 = dma.done [#allocation17], 2048
        $region132: #{tpu_custom_call.1} parent=107 // pred_fallthru
          _
        // Predicated region
        $region133: #{tpu_custom_call.1} parent=107 // pred_check
          %p789 = pneg %p301
        $region134: #{tpu_custom_call.1} parent=107 // pred_check_branch
          %791 = sbr.rel (%p789) target = $region136
        $region135: #{tpu_custom_call.1} parent=107 // pred_region
          %792 = dma.done [#allocation17], 1024
        $region136: #{tpu_custom_call.1} parent=107 // pred_fallthru
          _
        // Predicated region
        $region137: #{tpu_custom_call.1} parent=107 // pred_check
          %p793 = pneg %p343
        $region138: #{tpu_custom_call.1} parent=107 // pred_check_branch
          %795 = sbr.rel (%p793) target = $region140
        $region139: #{tpu_custom_call.1} parent=107 // pred_region
          %796 = dma.done [#allocation20], 2048
        $region140: #{tpu_custom_call.1} parent=107 // pred_fallthru
          _
        // Predicated region
        $region141: #{tpu_custom_call.1} parent=107 // pred_check
          %p797 = pneg %p385
        $region142: #{tpu_custom_call.1} parent=107 // pred_check_branch
          %799 = sbr.rel (%p797) target = $region144
        $region143: #{tpu_custom_call.1} parent=107 // pred_region
          %800 = dma.done [#allocation20], 2048
        $region144: #{tpu_custom_call.1} parent=107 // pred_fallthru
          _
        %s801 = sand.u32 %s73, 1
        %s802 = scalar_lea.sflag [#allocation8], %s801
        %s803 = sand.u32 %s73, 1
        %s804 = smul.addr %s803, 4
        %s805 = scalar_lea.vmem [#allocation7], %s804
        %p806 = pneg %p86
        %p807 = pneg %p83
        %s808 = sand.u32 %s53, 1
        %s809 = scalar_lea.sflag [#allocation11], %s808
        %s810 = sand.u32 %s99, 1
        %s811 = smul.addr %s810, 8
        %s812 = scalar_lea.vmem [#allocation10], %s811
        %p813 = pneg %p112
        %p814 = pneg %p109
        %p815 = pneg %p133
        %p816 = pneg %p130
        %p817 = pneg %p154
        %p818 = pneg %p151
        %p819 = pneg %p175
        %p820 = pneg %p172
        %p821 = pneg %p196
        %p822 = pneg %p193
        %p823 = pneg %p217
        %p824 = pneg %p214
        %p825 = pneg %p238
        %p826 = pneg %p235
        %p827 = pneg %p259
        %p828 = pneg %p256
        %p829 = pneg %p280
        %p830 = pneg %p277
        %p831 = pneg %p301
        %p832 = pneg %p298
        %p833 = pneg %p322
        %p834 = pneg %p319
        %p835 = pneg %p343
        %p836 = pneg %p340
        %p837 = pneg %p364
        %p838 = pneg %p361
        %p839 = pneg %p385
        %p840 = pneg %p382
        %p841 = pneg %p406
        %p842 = pneg %p403
        %p843 = pneg %p427
        %p844 = pneg %p424
        %p845 = pneg %p448
        %p846 = pneg %p445
        %p847 = pneg %p469
        %p848 = pneg %p466
        %p849 = pneg %p490
        %p850 = pneg %p487
        %p851 = pneg %p511
        %p852 = pneg %p508
        %p853 = pneg %p532
        %p854 = pneg %p529
        %p855 = pneg %p560
        %p856 = pneg %p557
        %s857 = sand.u32 %s547, 1
        %s858 = scalar_lea.sflag [#allocation9], %s857
        %s859 = sand.u32 %s547, 1
        %s860 = smul.addr %s859, 4
        %s861 = scalar_lea.vmem [#allocation22], %s860
        %s863 = smul.u32 %s58, 8
        %p864 = scmp.eq.s32.totalorder %s58, 0
        // Predicated region
        $region145: #{tpu_custom_call.1} parent=107 // pred_check
          %p865 = pneg %p864
        $region146: #{tpu_custom_call.1} parent=107 // pred_check_branch
          %867 = sbr.rel (%p865) target = $region148
        $region147: #{tpu_custom_call.1} parent=107 // pred_region
          %v868 = vld [vmem:[%s759] sm:$0xf]
          %v869 = vld [vmem:[#allocation12] sm:$0xff]
          %v870 = vld [vmem:[#allocation12 + $0x8] sm:$0xf]
          %v871 = vld [vmem:[#allocation12 + $0xc] sm:$0xff]
          %v872 = vld [vmem:[#allocation12 + $0x14] sm:$0xf]
          %v873 = vld [vmem:[#allocation12 + $0x18] sm:$0xff]
          %v874 = vld [vmem:[#allocation12 + $0x20] sm:$0xf]
          %v875 = vld [vmem:[#allocation12 + $0x24] sm:$0xff]
          %v876 = vld [vmem:[#allocation12 + $0x2c] sm:$0xf]
          %v877 = vld [vmem:[#allocation12 + $0x30] sm:$0xff]
          %v878 = vld [vmem:[#allocation12 + $0x38] sm:$0xf]
          %v879 = vld [vmem:[#allocation12 + $0x3c] sm:$0xff]
          %v880 = vld [vmem:[#allocation12 + $0x44] sm:$0xf]
          %v881 = vld [vmem:[#allocation12 + $0x48] sm:$0xff]
          %v882 = vld [vmem:[#allocation12 + $0x50] sm:$0xf]
          %v883 = vld [vmem:[#allocation12 + $0x54] sm:$0xff]
          %v884 = vld [vmem:[#allocation12 + $0x5c] sm:$0xf]
          %v885 = vld [vmem:[#allocation12 + $0x60] sm:$0xff]
          %v886 = vld [vmem:[#allocation12 + $0x68] sm:$0xf]
          %v887 = vld [vmem:[#allocation12 + $0x6c] sm:$0xff]
          %v888 = vld [vmem:[#allocation12 + $0x74] sm:$0xf]
          %v889 = vld [vmem:[#allocation12 + $0x78] sm:$0xff]
          %v890 = vld [vmem:[#allocation12 + $0x80] sm:$0xf]
          %v891 = vld [vmem:[#allocation12 + $0x84] sm:$0xff]
          %v892 = vld [vmem:[#allocation12 + $0x8c] sm:$0xf]
          %v893 = vld [vmem:[#allocation12 + $0x90] sm:$0xff]
          %v894 = vld [vmem:[#allocation12 + $0x98] sm:$0xf]
          %v895 = vld [vmem:[#allocation12 + $0x9c] sm:$0xff]
          %v896 = vld [vmem:[#allocation12 + $0xa4] sm:$0xf]
          %v897 = vld [vmem:[#allocation12 + $0xa8] sm:$0xff]
          %v898 = vld [vmem:[#allocation12 + $0xb0] sm:$0xf]
          %v899 = vld [vmem:[#allocation12 + $0xb4] sm:$0xff]
          %v900 = vld [vmem:[#allocation12 + $0xbc] sm:$0xf]
          %v901 = vld [vmem:[%s5] sm:$0x7]
          %v903 = vlaneseq
          %v904 = vshrl.u32 %v903, 7
          %v905 = vsub.s32 0, %v904
          %v906 = vrot.slane %v901, %v905
          %v907 = vlaneseq
          %v908 = vshrl.u32 %v907, 7
          %v909 = vsub.s32 1, %v908
          %v910 = vrot.slane %v901, %v909
          %v911 = vlaneseq
          %v912 = vshrl.u32 %v911, 7
          %v913 = vsub.s32 2, %v912
          %v914 = vrot.slane %v901, %v913
          %v950 = vunpack.c.l.b16 %v869
          %v951 = vunpack.c.h.b16 %v869
          %v952 = vunpack.c.l.b16 %v870
          %v953 = vunpack.c.l.b16 %v871
          %v954 = vunpack.c.h.b16 %v871
          %v955 = vunpack.c.l.b16 %v872
          %v956 = vunpack.c.l.b16 %v873
          %v957 = vunpack.c.h.b16 %v873
          %v958 = vunpack.c.l.b16 %v874
          %v959 = vunpack.c.l.b16 %v875
          %v960 = vunpack.c.h.b16 %v875
          %v961 = vunpack.c.l.b16 %v876
          %v962 = vunpack.c.l.b16 %v877
          %v963 = vunpack.c.h.b16 %v877
          %v964 = vunpack.c.l.b16 %v878
          %v965 = vunpack.c.l.b16 %v879
          %v966 = vunpack.c.h.b16 %v879
          %v967 = vunpack.c.l.b16 %v880
          %v968 = vunpack.c.l.b16 %v881
          %v969 = vunpack.c.h.b16 %v881
          %v970 = vunpack.c.l.b16 %v882
          %v971 = vunpack.c.l.b16 %v883
          %v972 = vunpack.c.h.b16 %v883
          %v973 = vunpack.c.l.b16 %v884
          %v974 = vunpack.c.l.b16 %v885
          %v975 = vunpack.c.h.b16 %v885
          %v976 = vunpack.c.l.b16 %v886
          %v977 = vunpack.c.l.b16 %v887
          %v978 = vunpack.c.h.b16 %v887
          %v979 = vunpack.c.l.b16 %v888
          %v980 = vunpack.c.l.b16 %v889
          %v981 = vunpack.c.h.b16 %v889
          %v982 = vunpack.c.l.b16 %v890
          %v983 = vunpack.c.l.b16 %v891
          %v984 = vunpack.c.h.b16 %v891
          %v985 = vunpack.c.l.b16 %v892
          %v986 = vunpack.c.l.b16 %v893
          %v987 = vunpack.c.h.b16 %v893
          %v988 = vunpack.c.l.b16 %v894
          %v989 = vunpack.c.l.b16 %v895
          %v990 = vunpack.c.h.b16 %v895
          %v991 = vunpack.c.l.b16 %v896
          %v992 = vunpack.c.l.b16 %v897
          %v993 = vunpack.c.h.b16 %v897
          %v994 = vunpack.c.l.b16 %v898
          %v995 = vunpack.c.l.b16 %v899
          %v996 = vunpack.c.h.b16 %v899
          %v997 = vunpack.c.l.b16 %v900
          %v998 = vpack.c.b16 %v953, %v950
          %v999 = vpack.c.b16 %v954, %v951
          %v1000 = vpack.c.b16 %v955, %v952
          %v1001 = vpack.c.b16 %v959, %v956
          %v1002 = vpack.c.b16 %v960, %v957
          %v1003 = vpack.c.b16 %v961, %v958
          %v1004 = vpack.c.b16 %v965, %v962
          %v1005 = vpack.c.b16 %v966, %v963
          %v1006 = vpack.c.b16 %v967, %v964
          %v1007 = vpack.c.b16 %v971, %v968
          %v1008 = vpack.c.b16 %v972, %v969
          %v1009 = vpack.c.b16 %v973, %v970
          %v1010 = vpack.c.b16 %v977, %v974
          %v1011 = vpack.c.b16 %v978, %v975
          %v1012 = vpack.c.b16 %v979, %v976
          %v1013 = vpack.c.b16 %v983, %v980
          %v1014 = vpack.c.b16 %v984, %v981
          %v1015 = vpack.c.b16 %v985, %v982
          %v1016 = vpack.c.b16 %v989, %v986
          %v1017 = vpack.c.b16 %v990, %v987
          %v1018 = vpack.c.b16 %v991, %v988
          %v1019 = vpack.c.b16 %v995, %v992
          %v1020 = vpack.c.b16 %v996, %v993
          %v1021 = vpack.c.b16 %v997, %v994
          %1046 = vmatprep.subr.bf16.mxu0 %v1020
          %1047 = vmatpush1.bf16.msra.mxu0 %v1019
          %1048 = vmatprep.subr.bf16.mxu0 %v1017
          %1049 = vmatpush1.bf16.msra.mxu0 %v1016
          %1050 = vmatprep.subr.bf16.mxu0 %v1014
          %1051 = vmatpush1.bf16.msra.mxu0 %v1013
          %1052 = vmatprep.subr.bf16.mxu0 %v1011
          %1053 = vmatpush1.bf16.msra.mxu0 %v1010
          %1054 = vmatprep.subr.bf16.mxu0 %v1008
          %1055 = vmatpush1.bf16.msra.mxu0 %v1007
          %1056 = vmatprep.subr.bf16.mxu0 %v1005
          %1057 = vmatpush1.bf16.msra.mxu0 %v1004
          %1058 = vmatprep.subr.bf16.mxu0 %v1002
          %1059 = vmatpush1.bf16.msra.mxu0 %v1001
          %1060 = vmatprep.subr.bf16.mxu0 %v999
          %1061 = vmatpush1.bf16.msra.mxu0 %v998
          %1062 = vmatprep.subr.bf16.mxu0 0
          %1063 = vmatpush2.bf16.msra.mxu0 0
          %1064 = vmatprep.subr.bf16.mxu0 0
          %1065 = vmatpush2.bf16.msra.mxu0 0
          %1066 = vmatprep.subr.bf16.mxu0 0
          %1067 = vmatpush2.bf16.msra.mxu0 0
          %1068 = vmatprep.subr.bf16.mxu0 0
          %1069 = vmatpush2.bf16.msra.mxu0 0
          %1070 = vmatprep.subr.bf16.mxu0 0
          %1071 = vmatpush2.bf16.msra.mxu0 0
          %1072 = vmatprep.subr.bf16.mxu0 0
          %1073 = vmatpush2.bf16.msra.mxu0 0
          %1074 = vmatprep.subr.bf16.mxu0 0
          %1075 = vmatpush2.bf16.msra.mxu0 0
          %1076 = vmatprep.subr.bf16.mxu0 0
          %1077 = vmatpush2.bf16.msra.mxu0 0
          %1078 = vmatprep.mubr.bf16.mxu0 0
          %1079 = vmatmul.mubr.bf16.gmra.mxu0 %v868
          %v1080 = vpop.f32.mrf.mxu0
          %v1081 = vadd.f32 %v906, %v1080
          %v1082 = vpop.f32.mrf.mxu0
          %v1083 = vadd.f32 %v910, %v1082
          %v1084 = vpop.f32.mrf.mxu0
          %v1085 = vpop.f32.mrf.mxu0
          %1086 = vdwg.mxu0
          %1087 = vmatprep.subr.bf16.mxu0 0
          %1088 = vmatpush1.bf16.msra.mxu0 %v1021
          %1089 = vmatprep.subr.bf16.mxu0 0
          %1090 = vmatpush1.bf16.msra.mxu0 %v1018
          %1091 = vmatprep.subr.bf16.mxu0 0
          %1092 = vmatpush1.bf16.msra.mxu0 %v1015
          %1093 = vmatprep.subr.bf16.mxu0 0
          %1094 = vmatpush1.bf16.msra.mxu0 %v1012
          %1095 = vmatprep.subr.bf16.mxu0 0
          %1096 = vmatpush1.bf16.msra.mxu0 %v1009
          %1097 = vmatprep.subr.bf16.mxu0 0
          %1098 = vmatpush1.bf16.msra.mxu0 %v1006
          %1099 = vmatprep.subr.bf16.mxu0 0
          %1100 = vmatpush1.bf16.msra.mxu0 %v1003
          %1101 = vmatprep.subr.bf16.mxu0 0
          %1102 = vmatpush1.bf16.msra.mxu0 %v1000
          %1103 = vmatprep.subr.bf16.mxu0 0
          %1104 = vmatpush2.bf16.msra.mxu0 0
          %1105 = vmatprep.subr.bf16.mxu0 0
          %1106 = vmatpush2.bf16.msra.mxu0 0
          %1107 = vmatprep.subr.bf16.mxu0 0
          %1108 = vmatpush2.bf16.msra.mxu0 0
          %1109 = vmatprep.subr.bf16.mxu0 0
          %1110 = vmatpush2.bf16.msra.mxu0 0
          %1111 = vmatprep.subr.bf16.mxu0 0
          %1112 = vmatpush2.bf16.msra.mxu0 0
          %1113 = vmatprep.subr.bf16.mxu0 0
          %1114 = vmatpush2.bf16.msra.mxu0 0
          %1115 = vmatprep.subr.bf16.mxu0 0
          %1116 = vmatpush2.bf16.msra.mxu0 0
          %1117 = vmatprep.subr.bf16.mxu0 0
          %1118 = vmatpush2.bf16.msra.mxu0 0
          %1119 = vmatprep.mubr.bf16.mxu0 0
          %1120 = vmatmul.mubr.bf16.gmra.mxu0 %v868
          %v1121 = vpop.f32.mrf.mxu0
          %v1122 = vadd.f32 %v914, %v1121
          %v1123 = vpop.f32.mrf.mxu0
          %v1124 = vpop.f32.mrf.mxu0
          %v1125 = vpop.f32.mrf.mxu0
          %1126 = vdwg.mxu0
          %1127 = vst [vmem:[#allocation2] sm:$0xff] %v1081
          %1128 = vst [vmem:[#allocation2 + $0x8] sm:$0xff] %v1083
          %1129 = vst [vmem:[#allocation2 + $0x10] sm:$0xff] %v1122
          %v1130 = vld [vmem:[%s768] sm:$0xf]
          %v1131 = vld [vmem:[%s768 + $0x4] sm:$0xf]
          %v1132 = vld [vmem:[#allocation16] sm:$0xff]
          %v1133 = vld [vmem:[#allocation16 + $0x8] sm:$0xff]
          %v1134 = vld [vmem:[#allocation16 + $0x10] sm:$0xff]
          %v1135 = vld [vmem:[#allocation16 + $0x18] sm:$0xff]
          %v1136 = vld [vmem:[#allocation16 + $0x20] sm:$0xff]
          %v1137 = vld [vmem:[#allocation16 + $0x28] sm:$0xff]
          %v1138 = vld [vmem:[#allocation16 + $0x30] sm:$0xff]
          %v1139 = vld [vmem:[#allocation16 + $0x38] sm:$0xff]
          %v1140 = vld [vmem:[#allocation16 + $0x40] sm:$0xff]
          %v1141 = vld [vmem:[#allocation16 + $0x48] sm:$0xff]
          %v1142 = vld [vmem:[#allocation16 + $0x50] sm:$0xff]
          %v1143 = vld [vmem:[#allocation16 + $0x58] sm:$0xff]
          %v1144 = vld [vmem:[#allocation16 + $0x60] sm:$0xff]
          %v1145 = vld [vmem:[#allocation16 + $0x68] sm:$0xff]
          %v1146 = vld [vmem:[#allocation16 + $0x70] sm:$0xff]
          %v1147 = vld [vmem:[#allocation16 + $0x78] sm:$0xff]
          %v1148 = vld [vmem:[%s11] sm:$0x3]
          %v1150 = vlaneseq
          %v1151 = vshrl.u32 %v1150, 7
          %v1152 = vsub.s32 0, %v1151
          %v1153 = vrot.slane %v1148, %v1152
          %v1154 = vlaneseq
          %v1155 = vshrl.u32 %v1154, 7
          %v1156 = vsub.s32 1, %v1155
          %v1157 = vrot.slane %v1148, %v1156
          %v1162 = vunpack.c.l.b16 %v1130
          %v1163 = vunpack.c.l.b16 %v1131
          %v1164 = vpack.c.b16 %v1163, %v1162
          %v1182 = vunpack.c.l.b16 %v1132
          %v1183 = vunpack.c.h.b16 %v1132
          %v1184 = vunpack.c.l.b16 %v1133
          %v1185 = vunpack.c.h.b16 %v1133
          %v1186 = vunpack.c.l.b16 %v1134
          %v1187 = vunpack.c.h.b16 %v1134
          %v1188 = vunpack.c.l.b16 %v1135
          %v1189 = vunpack.c.h.b16 %v1135
          %v1190 = vunpack.c.l.b16 %v1136
          %v1191 = vunpack.c.h.b16 %v1136
          %v1192 = vunpack.c.l.b16 %v1137
          %v1193 = vunpack.c.h.b16 %v1137
          %v1194 = vunpack.c.l.b16 %v1138
          %v1195 = vunpack.c.h.b16 %v1138
          %v1196 = vunpack.c.l.b16 %v1139
          %v1197 = vunpack.c.h.b16 %v1139
          %v1198 = vunpack.c.l.b16 %v1140
          %v1199 = vunpack.c.h.b16 %v1140
          %v1200 = vunpack.c.l.b16 %v1141
          %v1201 = vunpack.c.h.b16 %v1141
          %v1202 = vunpack.c.l.b16 %v1142
          %v1203 = vunpack.c.h.b16 %v1142
          %v1204 = vunpack.c.l.b16 %v1143
          %v1205 = vunpack.c.h.b16 %v1143
          %v1206 = vunpack.c.l.b16 %v1144
          %v1207 = vunpack.c.h.b16 %v1144
          %v1208 = vunpack.c.l.b16 %v1145
          %v1209 = vunpack.c.h.b16 %v1145
          %v1210 = vunpack.c.l.b16 %v1146
          %v1211 = vunpack.c.h.b16 %v1146
          %v1212 = vunpack.c.l.b16 %v1147
          %v1213 = vunpack.c.h.b16 %v1147
          %v1214 = vpack.c.b16 %v1184, %v1182
          %v1215 = vpack.c.b16 %v1185, %v1183
          %v1216 = vpack.c.b16 %v1188, %v1186
          %v1217 = vpack.c.b16 %v1189, %v1187
          %v1218 = vpack.c.b16 %v1192, %v1190
          %v1219 = vpack.c.b16 %v1193, %v1191
          %v1220 = vpack.c.b16 %v1196, %v1194
          %v1221 = vpack.c.b16 %v1197, %v1195
          %v1222 = vpack.c.b16 %v1200, %v1198
          %v1223 = vpack.c.b16 %v1201, %v1199
          %v1224 = vpack.c.b16 %v1204, %v1202
          %v1225 = vpack.c.b16 %v1205, %v1203
          %v1226 = vpack.c.b16 %v1208, %v1206
          %v1227 = vpack.c.b16 %v1209, %v1207
          %v1228 = vpack.c.b16 %v1212, %v1210
          %v1229 = vpack.c.b16 %v1213, %v1211
          %1246 = vmatprep.subr.bf16.mxu0 %v1229
          %1247 = vmatpush1.bf16.msra.mxu0 %v1228
          %1248 = vmatprep.subr.bf16.mxu0 %v1227
          %1249 = vmatpush1.bf16.msra.mxu0 %v1226
          %1250 = vmatprep.subr.bf16.mxu0 %v1225
          %1251 = vmatpush1.bf16.msra.mxu0 %v1224
          %1252 = vmatprep.subr.bf16.mxu0 %v1223
          %1253 = vmatpush1.bf16.msra.mxu0 %v1222
          %1254 = vmatprep.subr.bf16.mxu0 %v1221
          %1255 = vmatpush1.bf16.msra.mxu0 %v1220
          %1256 = vmatprep.subr.bf16.mxu0 %v1219
          %1257 = vmatpush1.bf16.msra.mxu0 %v1218
          %1258 = vmatprep.subr.bf16.mxu0 %v1217
          %1259 = vmatpush1.bf16.msra.mxu0 %v1216
          %1260 = vmatprep.subr.bf16.mxu0 %v1215
          %1261 = vmatpush1.bf16.msra.mxu0 %v1214
          %1262 = vmatprep.subr.bf16.mxu0 0
          %1263 = vmatpush2.bf16.msra.mxu0 0
          %1264 = vmatprep.subr.bf16.mxu0 0
          %1265 = vmatpush2.bf16.msra.mxu0 0
          %1266 = vmatprep.subr.bf16.mxu0 0
          %1267 = vmatpush2.bf16.msra.mxu0 0
          %1268 = vmatprep.subr.bf16.mxu0 0
          %1269 = vmatpush2.bf16.msra.mxu0 0
          %1270 = vmatprep.subr.bf16.mxu0 0
          %1271 = vmatpush2.bf16.msra.mxu0 0
          %1272 = vmatprep.subr.bf16.mxu0 0
          %1273 = vmatpush2.bf16.msra.mxu0 0
          %1274 = vmatprep.subr.bf16.mxu0 0
          %1275 = vmatpush2.bf16.msra.mxu0 0
          %1276 = vmatprep.subr.bf16.mxu0 0
          %1277 = vmatpush2.bf16.msra.mxu0 0
          %1278 = vmatprep.mubr.bf16.mxu0 0
          %1279 = vmatmul.mubr.bf16.gmra.mxu0 %v1164
          %v1280 = vpop.f32.mrf.mxu0
          %v1281 = vadd.f32 %v1153, %v1280
          %v1282 = vpop.f32.mrf.mxu0
          %v1283 = vadd.f32 %v1157, %v1282
          %v1284 = vpop.f32.mrf.mxu0
          %v1285 = vadd.f32 %v1153, %v1284
          %v1286 = vpop.f32.mrf.mxu0
          %v1287 = vadd.f32 %v1157, %v1286
          %1288 = vdwg.mxu0
          %1289 = vst [vmem:[#allocation3] sm:$0xff] %v1281
          %1290 = vst [vmem:[#allocation3 + $0x8] sm:$0xff] %v1283
          %1291 = vst [vmem:[#allocation3 + $0x10] sm:$0xff] %v1285
          %1292 = vst [vmem:[#allocation3 + $0x18] sm:$0xff] %v1287
        $region148: #{tpu_custom_call.1} parent=107 // pred_fallthru
          _
        %s1293 = sld [smem:[#allocation5 + %s57]]
        %s1294 = sld [smem:[#allocation6 + %s57]]
        %v1295 = vlaneseq
        %v1296 = vshrl.u32 %v1295, 7
        %v1297 = vstv %s863
        %v1298 = vadd.s32 %v1296, %v1297
        %v1299 = vlaneseq
        %v1300 = vand.u32 %v1299, 127
        %vm1301 = vcmp.le.s32.totalorder %v1300, %v1298
        %v1302 = vstv %s1293
        %vm1303 = vcmp.lt.s32.totalorder %v1300, %v1302
        %vm1304 = vmand %vm1301, %vm1303
        %v1305 = vsel %vm1304, 0.0, -1e+09
        %v1306 = vstv %s1294
        %vm1307 = vcmp.lt.s32.totalorder %v1300, %v1306
        %v1308 = vsel %vm1307, 0.0, -1e+09
        %s1309 = sshra.s32 %s863, 3
        %s1310 = sand.u32 %s863, 7
        %s1311 = smul.addr %s1309, 4
        %s1312 = scalar_lea.vmem %s759, %s1311 [#allocation7]
        %v1313 = vld [vmem:[%s1312] sm:$0xf]
        %v1314 = vunpack.c.l.bf16 %v1313
        %s1315 = smul.u32 %s1309, 3
        %s1316 = smul.addr %s1315, 8
        %s1317 = scalar_lea.vmem [#allocation2], %s1316
        %v1318 = vld [vmem:[%s1317] sm:$0xff]
        %v1319 = vld [vmem:[#allocation2 + $0x8] sm:$0xff]
        %v1320 = vld [vmem:[#allocation2 + $0x10] sm:$0xff]
        %v1321 = vpack.c.bf16 %v1318, %v1318
        %v1322 = vpack.c.bf16 %v1319, %v1319
        %v1323 = vpack.c.bf16 %v1320, %v1320
        %vm1324 = vcmask 261120
        %v1326 = vsel %vm1324, %v1321, 0
        %v1329 = vsel %vm1324, %v1322, 0
        %1331 = vmatprep.subr.bf16.mxu0 0
        %1332 = vmatpush1.bf16.xpose.msra.mxu0 0
        %1333 = vmatprep.subr.bf16.mxu0 0
        %1334 = vmatpush1.bf16.xpose.msra.mxu0 0
        %1335 = vmatprep.subr.bf16.mxu0 0
        %1336 = vmatpush1.bf16.xpose.msra.mxu0 0
        %1337 = vmatprep.subr.bf16.mxu0 0
        %1338 = vmatpush1.bf16.xpose.msra.mxu0 0
        %1339 = vmatprep.subr.bf16.mxu0 0
        %1340 = vmatpush1.bf16.xpose.msra.mxu0 0
        %1341 = vmatprep.subr.bf16.mxu0 0
        %1342 = vmatpush1.bf16.xpose.msra.mxu0 0
        %1343 = vmatprep.subr.bf16.mxu0 0
        %1344 = vmatpush1.bf16.xpose.msra.mxu0 0
        %1345 = vmatprep.subr.bf16.mxu0 0
        %1346 = vmatpush1.bf16.xpose.msra.mxu0 %v1329
        %1347 = vmatprep.subr.bf16.mxu0 0
        %1348 = vmatpush2.bf16.xpose.msra.mxu0 0
        %1349 = vmatprep.subr.bf16.mxu0 0
        %1350 = vmatpush2.bf16.xpose.msra.mxu0 0
        %1351 = vmatprep.subr.bf16.mxu0 0
        %1352 = vmatpush2.bf16.xpose.msra.mxu0 0
        %1353 = vmatprep.subr.bf16.mxu0 0
        %1354 = vmatpush2.bf16.xpose.msra.mxu0 0
        %1355 = vmatprep.subr.bf16.mxu0 0
        %1356 = vmatpush2.bf16.xpose.msra.mxu0 0
        %1357 = vmatprep.subr.bf16.mxu0 0
        %1358 = vmatpush2.bf16.xpose.msra.mxu0 0
        %1359 = vmatprep.subr.bf16.mxu0 0
        %1360 = vmatpush2.bf16.xpose.msra.mxu0 0
        %1361 = vmatprep.subr.bf16.mxu0 0
        %1362 = vmatpush2.bf16.xpose.msra.mxu0 0
        %1363 = vmatprep.mubr.bf16.mxu0 0
        %1364 = vmatmul.mubr.bf16.gmra.mxu0 %v1326
        %v1365 = vpop.f32.mrf.mxu0
        %v1366 = vadd.f32 %v1305, %v1365
        %v1367 = vpop.f32.mrf.mxu0
        %v1368 = vpop.f32.mrf.mxu0
        %v1369 = vpop.f32.mrf.mxu0
        %1370 = vdwg.mxu0
        %vm1371 = vcmask 64512
        %v1372 = vsel %vm1371, %v1366, -inf
        %1373 = vmax.xlane.f32.xlu0 %v1372
        %v1374 = vpop.xlane.xlu0 %1373
        %v1375 = vsub.f32 %v1366, %v1374
        %v1376 = vmul.f32 %v1375, 1.442695
        %v1377 = vpow.pop %v1376
        %v1378 = vsel %vm1371, %v1377, 0.0
        %1379 = vadd.xlane.f32.xlu0 %v1378
        %v1380 = vpop.xlane.xlu0 %1379
        %v1381 = vrcp.pop %v1380
        %v1382 = vmul.f32 %v1377, %v1381
        %v1383 = vpack.c.bf16 %v1382, %v1382
        %v1385 = vsel %vm1371, %v1383, 0
        %vm1387 = vcmask 1043456
        %v1389 = vsel %vm1387, %v1323, 0
        %1391 = vmatprep.subr.bf16.mxu0 0
        %1392 = vmatpush1.bf16.msra.mxu0 0
        %1393 = vmatprep.subr.bf16.mxu0 0
        %1394 = vmatpush1.bf16.msra.mxu0 0
        %1395 = vmatprep.subr.bf16.mxu0 0
        %1396 = vmatpush1.bf16.msra.mxu0 0
        %1397 = vmatprep.subr.bf16.mxu0 0
        %1398 = vmatpush1.bf16.msra.mxu0 0
        %1399 = vmatprep.subr.bf16.mxu0 0
        %1400 = vmatpush1.bf16.msra.mxu0 0
        %1401 = vmatprep.subr.bf16.mxu0 0
        %1402 = vmatpush1.bf16.msra.mxu0 0
        %1403 = vmatprep.subr.bf16.mxu0 0
        %1404 = vmatpush1.bf16.msra.mxu0 0
        %1405 = vmatprep.subr.bf16.mxu0 0
        %1406 = vmatpush1.bf16.msra.mxu0 %v1389
        %1407 = vmatprep.subr.bf16.mxu0 0
        %1408 = vmatpush2.bf16.msra.mxu0 0
        %1409 = vmatprep.subr.bf16.mxu0 0
        %1410 = vmatpush2.bf16.msra.mxu0 0
        %1411 = vmatprep.subr.bf16.mxu0 0
        %1412 = vmatpush2.bf16.msra.mxu0 0
        %1413 = vmatprep.subr.bf16.mxu0 0
        %1414 = vmatpush2.bf16.msra.mxu0 0
        %1415 = vmatprep.subr.bf16.mxu0 0
        %1416 = vmatpush2.bf16.msra.mxu0 0
        %1417 = vmatprep.subr.bf16.mxu0 0
        %1418 = vmatpush2.bf16.msra.mxu0 0
        %1419 = vmatprep.subr.bf16.mxu0 0
        %1420 = vmatpush2.bf16.msra.mxu0 0
        %1421 = vmatprep.subr.bf16.mxu0 0
        %1422 = vmatpush2.bf16.msra.mxu0 0
        %1423 = vmatprep.mubr.bf16.mxu0 0
        %1424 = vmatmul.mubr.bf16.gmra.mxu0 %v1385
        %v1425 = vpop.f32.mrf.mxu0
        %v1426 = vadd.f32 0.0, %v1425
        %v1427 = vpop.f32.mrf.mxu0
        %v1428 = vpop.f32.mrf.mxu0
        %v1429 = vpop.f32.mrf.mxu0
        %1430 = vdwg.mxu0
        %1432 = vrot.lane.b32.xlu0 %v1321, 96
        %v1433 = vpop.permute.xlu0 %1432
        %1435 = vrot.lane.b32.xlu0 %v1322, 96
        %v1436 = vpop.permute.xlu0 %1435
        %v1438 = vsel %vm1324, %v1433, 0
        %v1441 = vsel %vm1324, %v1436, 0
        %1443 = vmatprep.subr.bf16.mxu0 0
        %1444 = vmatpush1.bf16.xpose.msra.mxu0 0
        %1445 = vmatprep.subr.bf16.mxu0 0
        %1446 = vmatpush1.bf16.xpose.msra.mxu0 0
        %1447 = vmatprep.subr.bf16.mxu0 0
        %1448 = vmatpush1.bf16.xpose.msra.mxu0 0
        %1449 = vmatprep.subr.bf16.mxu0 0
        %1450 = vmatpush1.bf16.xpose.msra.mxu0 0
        %1451 = vmatprep.subr.bf16.mxu0 0
        %1452 = vmatpush1.bf16.xpose.msra.mxu0 0
        %1453 = vmatprep.subr.bf16.mxu0 0
        %1454 = vmatpush1.bf16.xpose.msra.mxu0 0
        %1455 = vmatprep.subr.bf16.mxu0 0
        %1456 = vmatpush1.bf16.xpose.msra.mxu0 0
        %1457 = vmatprep.subr.bf16.mxu0 0
        %1458 = vmatpush1.bf16.xpose.msra.mxu0 %v1441
        %1459 = vmatprep.subr.bf16.mxu0 0
        %1460 = vmatpush2.bf16.xpose.msra.mxu0 0
        %1461 = vmatprep.subr.bf16.mxu0 0
        %1462 = vmatpush2.bf16.xpose.msra.mxu0 0
        %1463 = vmatprep.subr.bf16.mxu0 0
        %1464 = vmatpush2.bf16.xpose.msra.mxu0 0
        %1465 = vmatprep.subr.bf16.mxu0 0
        %1466 = vmatpush2.bf16.xpose.msra.mxu0 0
        %1467 = vmatprep.subr.bf16.mxu0 0
        %1468 = vmatpush2.bf16.xpose.msra.mxu0 0
        %1469 = vmatprep.subr.bf16.mxu0 0
        %1470 = vmatpush2.bf16.xpose.msra.mxu0 0
        %1471 = vmatprep.subr.bf16.mxu0 0
        %1472 = vmatpush2.bf16.xpose.msra.mxu0 0
        %1473 = vmatprep.subr.bf16.mxu0 0
        %1474 = vmatpush2.bf16.xpose.msra.mxu0 0
        %1475 = vmatprep.mubr.bf16.mxu0 0
        %1476 = vmatmul.mubr.bf16.gmra.mxu0 %v1438
        %v1477 = vpop.f32.mrf.mxu0
        %v1478 = vadd.f32 %v1305, %v1477
        %v1479 = vpop.f32.mrf.mxu0
        %v1480 = vpop.f32.mrf.mxu0
        %v1481 = vpop.f32.mrf.mxu0
        %1482 = vdwg.mxu0
        %v1483 = vsel %vm1371, %v1478, -inf
        %1484 = vmax.xlane.f32.xlu0 %v1483
        %v1485 = vpop.xlane.xlu0 %1484
        %v1486 = vsub.f32 %v1478, %v1485
        %v1487 = vmul.f32 %v1486, 1.442695
        %v1488 = vpow.pop %v1487
        %v1489 = vsel %vm1371, %v1488, 0.0
        %1490 = vadd.xlane.f32.xlu0 %v1489
        %v1491 = vpop.xlane.xlu0 %1490
        %v1492 = vrcp.pop %v1491
        %v1493 = vmul.f32 %v1488, %v1492
        %v1494 = vpack.c.bf16 %v1493, %v1493
        %1496 = vrot.lane.b32.xlu0 %v1323, 96
        %v1497 = vpop.permute.xlu0 %1496
        %v1499 = vsel %vm1371, %v1494, 0
        %v1502 = vsel %vm1387, %v1497, 0
        %1504 = vmatprep.subr.bf16.mxu0 0
        %1505 = vmatpush1.bf16.msra.mxu0 0
        %1506 = vmatprep.subr.bf16.mxu0 0
        %1507 = vmatpush1.bf16.msra.mxu0 0
        %1508 = vmatprep.subr.bf16.mxu0 0
        %1509 = vmatpush1.bf16.msra.mxu0 0
        %1510 = vmatprep.subr.bf16.mxu0 0
        %1511 = vmatpush1.bf16.msra.mxu0 0
        %1512 = vmatprep.subr.bf16.mxu0 0
        %1513 = vmatpush1.bf16.msra.mxu0 0
        %1514 = vmatprep.subr.bf16.mxu0 0
        %1515 = vmatpush1.bf16.msra.mxu0 0
        %1516 = vmatprep.subr.bf16.mxu0 0
        %1517 = vmatpush1.bf16.msra.mxu0 0
        %1518 = vmatprep.subr.bf16.mxu0 0
        %1519 = vmatpush1.bf16.msra.mxu0 %v1502
        %1520 = vmatprep.subr.bf16.mxu0 0
        %1521 = vmatpush2.bf16.msra.mxu0 0
        %1522 = vmatprep.subr.bf16.mxu0 0
        %1523 = vmatpush2.bf16.msra.mxu0 0
        %1524 = vmatprep.subr.bf16.mxu0 0
        %1525 = vmatpush2.bf16.msra.mxu0 0
        %1526 = vmatprep.subr.bf16.mxu0 0
        %1527 = vmatpush2.bf16.msra.mxu0 0
        %1528 = vmatprep.subr.bf16.mxu0 0
        %1529 = vmatpush2.bf16.msra.mxu0 0
        %1530 = vmatprep.subr.bf16.mxu0 0
        %1531 = vmatpush2.bf16.msra.mxu0 0
        %1532 = vmatprep.subr.bf16.mxu0 0
        %1533 = vmatpush2.bf16.msra.mxu0 0
        %1534 = vmatprep.subr.bf16.mxu0 0
        %1535 = vmatpush2.bf16.msra.mxu0 0
        %1536 = vmatprep.mubr.bf16.mxu0 0
        %1537 = vmatmul.mubr.bf16.gmra.mxu0 %v1499
        %v1538 = vpop.f32.mrf.mxu0
        %v1539 = vadd.f32 0.0, %v1538
        %v1540 = vpop.f32.mrf.mxu0
        %v1541 = vpop.f32.mrf.mxu0
        %v1542 = vpop.f32.mrf.mxu0
        %1543 = vdwg.mxu0
        %1544 = vrot.lane.b32.xlu0 %v1321, 64
        %v1545 = vpop.permute.xlu0 %1544
        %1546 = vrot.lane.b32.xlu0 %v1322, 64
        %v1547 = vpop.permute.xlu0 %1546
        %v1549 = vsel %vm1324, %v1545, 0
        %v1552 = vsel %vm1324, %v1547, 0
        %1554 = vmatprep.subr.bf16.mxu0 0
        %1555 = vmatpush1.bf16.xpose.msra.mxu0 0
        %1556 = vmatprep.subr.bf16.mxu0 0
        %1557 = vmatpush1.bf16.xpose.msra.mxu0 0
        %1558 = vmatprep.subr.bf16.mxu0 0
        %1559 = vmatpush1.bf16.xpose.msra.mxu0 0
        %1560 = vmatprep.subr.bf16.mxu0 0
        %1561 = vmatpush1.bf16.xpose.msra.mxu0 0
        %1562 = vmatprep.subr.bf16.mxu0 0
        %1563 = vmatpush1.bf16.xpose.msra.mxu0 0
        %1564 = vmatprep.subr.bf16.mxu0 0
        %1565 = vmatpush1.bf16.xpose.msra.mxu0 0
        %1566 = vmatprep.subr.bf16.mxu0 0
        %1567 = vmatpush1.bf16.xpose.msra.mxu0 0
        %1568 = vmatprep.subr.bf16.mxu0 0
        %1569 = vmatpush1.bf16.xpose.msra.mxu0 %v1552
        %1570 = vmatprep.subr.bf16.mxu0 0
        %1571 = vmatpush2.bf16.xpose.msra.mxu0 0
        %1572 = vmatprep.subr.bf16.mxu0 0
        %1573 = vmatpush2.bf16.xpose.msra.mxu0 0
        %1574 = vmatprep.subr.bf16.mxu0 0
        %1575 = vmatpush2.bf16.xpose.msra.mxu0 0
        %1576 = vmatprep.subr.bf16.mxu0 0
        %1577 = vmatpush2.bf16.xpose.msra.mxu0 0
        %1578 = vmatprep.subr.bf16.mxu0 0
        %1579 = vmatpush2.bf16.xpose.msra.mxu0 0
        %1580 = vmatprep.subr.bf16.mxu0 0
        %1581 = vmatpush2.bf16.xpose.msra.mxu0 0
        %1582 = vmatprep.subr.bf16.mxu0 0
        %1583 = vmatpush2.bf16.xpose.msra.mxu0 0
        %1584 = vmatprep.subr.bf16.mxu0 0
        %1585 = vmatpush2.bf16.xpose.msra.mxu0 0
        %1586 = vmatprep.mubr.bf16.mxu0 0
        %1587 = vmatmul.mubr.bf16.gmra.mxu0 %v1549
        %v1588 = vpop.f32.mrf.mxu0
        %v1589 = vadd.f32 %v1305, %v1588
        %v1590 = vpop.f32.mrf.mxu0
        %v1591 = vpop.f32.mrf.mxu0
        %v1592 = vpop.f32.mrf.mxu0
        %1593 = vdwg.mxu0
        %v1594 = vsel %vm1371, %v1589, -inf
        %1595 = vmax.xlane.f32.xlu0 %v1594
        %v1596 = vpop.xlane.xlu0 %1595
        %v1597 = vsub.f32 %v1589, %v1596
        %v1598 = vmul.f32 %v1597, 1.442695
        %v1599 = vpow.pop %v1598
        %v1600 = vsel %vm1371, %v1599, 0.0
        %1601 = vadd.xlane.f32.xlu0 %v1600
        %v1602 = vpop.xlane.xlu0 %1601
        %v1603 = vrcp.pop %v1602
        %v1604 = vmul.f32 %v1599, %v1603
        %v1605 = vpack.c.bf16 %v1604, %v1604
        %1606 = vrot.lane.b32.xlu0 %v1323, 64
        %v1607 = vpop.permute.xlu0 %1606
        %v1609 = vsel %vm1371, %v1605, 0
        %v1612 = vsel %vm1387, %v1607, 0
        %1614 = vmatprep.subr.bf16.mxu0 0
        %1615 = vmatpush1.bf16.msra.mxu0 0
        %1616 = vmatprep.subr.bf16.mxu0 0
        %1617 = vmatpush1.bf16.msra.mxu0 0
        %1618 = vmatprep.subr.bf16.mxu0 0
        %1619 = vmatpush1.bf16.msra.mxu0 0
        %1620 = vmatprep.subr.bf16.mxu0 0
        %1621 = vmatpush1.bf16.msra.mxu0 0
        %1622 = vmatprep.subr.bf16.mxu0 0
        %1623 = vmatpush1.bf16.msra.mxu0 0
        %1624 = vmatprep.subr.bf16.mxu0 0
        %1625 = vmatpush1.bf16.msra.mxu0 0
        %1626 = vmatprep.subr.bf16.mxu0 0
        %1627 = vmatpush1.bf16.msra.mxu0 0
        %1628 = vmatprep.subr.bf16.mxu0 0
        %1629 = vmatpush1.bf16.msra.mxu0 %v1612
        %1630 = vmatprep.subr.bf16.mxu0 0
        %1631 = vmatpush2.bf16.msra.mxu0 0
        %1632 = vmatprep.subr.bf16.mxu0 0
        %1633 = vmatpush2.bf16.msra.mxu0 0
        %1634 = vmatprep.subr.bf16.mxu0 0
        %1635 = vmatpush2.bf16.msra.mxu0 0
        %1636 = vmatprep.subr.bf16.mxu0 0
        %1637 = vmatpush2.bf16.msra.mxu0 0
        %1638 = vmatprep.subr.bf16.mxu0 0
        %1639 = vmatpush2.bf16.msra.mxu0 0
        %1640 = vmatprep.subr.bf16.mxu0 0
        %1641 = vmatpush2.bf16.msra.mxu0 0
        %1642 = vmatprep.subr.bf16.mxu0 0
        %1643 = vmatpush2.bf16.msra.mxu0 0
        %1644 = vmatprep.subr.bf16.mxu0 0
        %1645 = vmatpush2.bf16.msra.mxu0 0
        %1646 = vmatprep.mubr.bf16.mxu0 0
        %1647 = vmatmul.mubr.bf16.gmra.mxu0 %v1609
        %v1648 = vpop.f32.mrf.mxu0
        %v1649 = vadd.f32 0.0, %v1648
        %v1650 = vpop.f32.mrf.mxu0
        %v1651 = vpop.f32.mrf.mxu0
        %v1652 = vpop.f32.mrf.mxu0
        %1653 = vdwg.mxu0
        %1654 = vrot.lane.b32.xlu0 %v1321, 32
        %v1655 = vpop.permute.xlu0 %1654
        %1656 = vrot.lane.b32.xlu0 %v1322, 32
        %v1657 = vpop.permute.xlu0 %1656
        %v1659 = vsel %vm1324, %v1655, 0
        %v1662 = vsel %vm1324, %v1657, 0
        %1664 = vmatprep.subr.bf16.mxu0 0
        %1665 = vmatpush1.bf16.xpose.msra.mxu0 0
        %1666 = vmatprep.subr.bf16.mxu0 0
        %1667 = vmatpush1.bf16.xpose.msra.mxu0 0
        %1668 = vmatprep.subr.bf16.mxu0 0
        %1669 = vmatpush1.bf16.xpose.msra.mxu0 0
        %1670 = vmatprep.subr.bf16.mxu0 0
        %1671 = vmatpush1.bf16.xpose.msra.mxu0 0
        %1672 = vmatprep.subr.bf16.mxu0 0
        %1673 = vmatpush1.bf16.xpose.msra.mxu0 0
        %1674 = vmatprep.subr.bf16.mxu0 0
        %1675 = vmatpush1.bf16.xpose.msra.mxu0 0
        %1676 = vmatprep.subr.bf16.mxu0 0
        %1677 = vmatpush1.bf16.xpose.msra.mxu0 0
        %1678 = vmatprep.subr.bf16.mxu0 0
        %1679 = vmatpush1.bf16.xpose.msra.mxu0 %v1662
        %1680 = vmatprep.subr.bf16.mxu0 0
        %1681 = vmatpush2.bf16.xpose.msra.mxu0 0
        %1682 = vmatprep.subr.bf16.mxu0 0
        %1683 = vmatpush2.bf16.xpose.msra.mxu0 0
        %1684 = vmatprep.subr.bf16.mxu0 0
        %1685 = vmatpush2.bf16.xpose.msra.mxu0 0
        %1686 = vmatprep.subr.bf16.mxu0 0
        %1687 = vmatpush2.bf16.xpose.msra.mxu0 0
        %1688 = vmatprep.subr.bf16.mxu0 0
        %1689 = vmatpush2.bf16.xpose.msra.mxu0 0
        %1690 = vmatprep.subr.bf16.mxu0 0
        %1691 = vmatpush2.bf16.xpose.msra.mxu0 0
        %1692 = vmatprep.subr.bf16.mxu0 0
        %1693 = vmatpush2.bf16.xpose.msra.mxu0 0
        %1694 = vmatprep.subr.bf16.mxu0 0
        %1695 = vmatpush2.bf16.xpose.msra.mxu0 0
        %1696 = vmatprep.mubr.bf16.mxu0 0
        %1697 = vmatmul.mubr.bf16.gmra.mxu0 %v1659
        %v1698 = vpop.f32.mrf.mxu0
        %v1699 = vadd.f32 %v1305, %v1698
        %v1700 = vpop.f32.mrf.mxu0
        %v1701 = vpop.f32.mrf.mxu0
        %v1702 = vpop.f32.mrf.mxu0
        %1703 = vdwg.mxu0
        %v1704 = vsel %vm1371, %v1699, -inf
        %1705 = vmax.xlane.f32.xlu0 %v1704
        %v1706 = vpop.xlane.xlu0 %1705
        %v1707 = vsub.f32 %v1699, %v1706
        %v1708 = vmul.f32 %v1707, 1.442695
        %v1709 = vpow.pop %v1708
        %v1710 = vsel %vm1371, %v1709, 0.0
        %1711 = vadd.xlane.f32.xlu0 %v1710
        %v1712 = vpop.xlane.xlu0 %1711
        %v1713 = vrcp.pop %v1712
        %v1714 = vmul.f32 %v1709, %v1713
        %v1715 = vpack.c.bf16 %v1714, %v1714
        %1716 = vrot.lane.b32.xlu0 %v1323, 32
        %v1717 = vpop.permute.xlu0 %1716
        %v1719 = vsel %vm1371, %v1715, 0
        %v1722 = vsel %vm1387, %v1717, 0
        %1724 = vmatprep.subr.bf16.mxu0 0
        %1725 = vmatpush1.bf16.msra.mxu0 0
        %1726 = vmatprep.subr.bf16.mxu0 0
        %1727 = vmatpush1.bf16.msra.mxu0 0
        %1728 = vmatprep.subr.bf16.mxu0 0
        %1729 = vmatpush1.bf16.msra.mxu0 0
        %1730 = vmatprep.subr.bf16.mxu0 0
        %1731 = vmatpush1.bf16.msra.mxu0 0
        %1732 = vmatprep.subr.bf16.mxu0 0
        %1733 = vmatpush1.bf16.msra.mxu0 0
        %1734 = vmatprep.subr.bf16.mxu0 0
        %1735 = vmatpush1.bf16.msra.mxu0 0
        %1736 = vmatprep.subr.bf16.mxu0 0
        %1737 = vmatpush1.bf16.msra.mxu0 0
        %1738 = vmatprep.subr.bf16.mxu0 0
        %1739 = vmatpush1.bf16.msra.mxu0 %v1722
        %1740 = vmatprep.subr.bf16.mxu0 0
        %1741 = vmatpush2.bf16.msra.mxu0 0
        %1742 = vmatprep.subr.bf16.mxu0 0
        %1743 = vmatpush2.bf16.msra.mxu0 0
        %1744 = vmatprep.subr.bf16.mxu0 0
        %1745 = vmatpush2.bf16.msra.mxu0 0
        %1746 = vmatprep.subr.bf16.mxu0 0
        %1747 = vmatpush2.bf16.msra.mxu0 0
        %1748 = vmatprep.subr.bf16.mxu0 0
        %1749 = vmatpush2.bf16.msra.mxu0 0
        %1750 = vmatprep.subr.bf16.mxu0 0
        %1751 = vmatpush2.bf16.msra.mxu0 0
        %1752 = vmatprep.subr.bf16.mxu0 0
        %1753 = vmatpush2.bf16.msra.mxu0 0
        %1754 = vmatprep.subr.bf16.mxu0 0
        %1755 = vmatpush2.bf16.msra.mxu0 0
        %1756 = vmatprep.mubr.bf16.mxu0 0
        %1757 = vmatmul.mubr.bf16.gmra.mxu0 %v1719
        %v1758 = vpop.f32.mrf.mxu0
        %v1759 = vadd.f32 0.0, %v1758
        %v1760 = vpop.f32.mrf.mxu0
        %v1761 = vpop.f32.mrf.mxu0
        %v1762 = vpop.f32.mrf.mxu0
        %1763 = vdwg.mxu0
        %1765 = vrot.lane.b32.xlu0 %v1539, 32
        %v1766 = vpop.permute.xlu0 %1765
        %1769 = vrot.lane.b32.xlu0 %v1649, 64
        %v1770 = vpop.permute.xlu0 %1769
        %1773 = vrot.lane.b32.xlu0 %v1759, 96
        %v1774 = vpop.permute.xlu0 %1773
        %v1776 = vsel %vm1324, %v1426, %v1766
        %vm1777 = vcmask 523264
        %v1778 = vsel %vm1777, %v1776, %v1770
        %vm1779 = vcmask 785408
        %v1780 = vsel %vm1779, %v1778, %v1774
        %v1781 = vpack.c.bf16 %v1780, %v1780
        %v1782 = vld [vmem:[#allocation13] sm:$0xf]
        %v1783 = vld [vmem:[#allocation13 + $0x4] sm:$0xf]
        %v1784 = vld [vmem:[#allocation13 + $0x8] sm:$0xf]
        %v1785 = vld [vmem:[#allocation13 + $0xc] sm:$0xf]
        %v1786 = vld [vmem:[#allocation13 + $0x10] sm:$0xf]
        %v1787 = vld [vmem:[#allocation13 + $0x14] sm:$0xf]
        %v1788 = vld [vmem:[#allocation13 + $0x18] sm:$0xf]
        %v1789 = vld [vmem:[#allocation13 + $0x1c] sm:$0xf]
        %v1790 = vld [vmem:[#allocation13 + $0x20] sm:$0xf]
        %v1791 = vld [vmem:[#allocation13 + $0x24] sm:$0xf]
        %v1792 = vld [vmem:[#allocation13 + $0x28] sm:$0xf]
        %v1793 = vld [vmem:[#allocation13 + $0x2c] sm:$0xf]
        %v1794 = vld [vmem:[#allocation13 + $0x30] sm:$0xf]
        %v1795 = vld [vmem:[#allocation13 + $0x34] sm:$0xf]
        %v1796 = vld [vmem:[#allocation13 + $0x38] sm:$0xf]
        %v1797 = vld [vmem:[#allocation13 + $0x3c] sm:$0xf]
        %v1798 = vld [vmem:[%s7] sm:$0x1]
        %v1800 = vlaneseq
        %v1801 = vshrl.u32 %v1800, 7
        %v1802 = vsub.s32 0, %v1801
        %v1803 = vrot.slane %v1798, %v1802
        %v1821 = vunpack.c.l.b16 %v1782
        %v1822 = vunpack.c.l.b16 %v1783
        %v1823 = vunpack.c.l.b16 %v1784
        %v1824 = vunpack.c.l.b16 %v1785
        %v1825 = vunpack.c.l.b16 %v1786
        %v1826 = vunpack.c.l.b16 %v1787
        %v1827 = vunpack.c.l.b16 %v1788
        %v1828 = vunpack.c.l.b16 %v1789
        %v1829 = vunpack.c.l.b16 %v1790
        %v1830 = vunpack.c.l.b16 %v1791
        %v1831 = vunpack.c.l.b16 %v1792
        %v1832 = vunpack.c.l.b16 %v1793
        %v1833 = vunpack.c.l.b16 %v1794
        %v1834 = vunpack.c.l.b16 %v1795
        %v1835 = vunpack.c.l.b16 %v1796
        %v1836 = vunpack.c.l.b16 %v1797
        %v1837 = vpack.c.b16 %v1822, %v1821
        %v1838 = vpack.c.b16 %v1824, %v1823
        %v1839 = vpack.c.b16 %v1826, %v1825
        %v1840 = vpack.c.b16 %v1828, %v1827
        %v1841 = vpack.c.b16 %v1830, %v1829
        %v1842 = vpack.c.b16 %v1832, %v1831
        %v1843 = vpack.c.b16 %v1834, %v1833
        %v1844 = vpack.c.b16 %v1836, %v1835
        %1853 = vmatprep.subr.bf16.mxu0 0
        %1854 = vmatpush1.bf16.msra.mxu0 %v1844
        %1855 = vmatprep.subr.bf16.mxu0 0
        %1856 = vmatpush1.bf16.msra.mxu0 %v1843
        %1857 = vmatprep.subr.bf16.mxu0 0
        %1858 = vmatpush1.bf16.msra.mxu0 %v1842
        %1859 = vmatprep.subr.bf16.mxu0 0
        %1860 = vmatpush1.bf16.msra.mxu0 %v1841
        %1861 = vmatprep.subr.bf16.mxu0 0
        %1862 = vmatpush1.bf16.msra.mxu0 %v1840
        %1863 = vmatprep.subr.bf16.mxu0 0
        %1864 = vmatpush1.bf16.msra.mxu0 %v1839
        %1865 = vmatprep.subr.bf16.mxu0 0
        %1866 = vmatpush1.bf16.msra.mxu0 %v1838
        %1867 = vmatprep.subr.bf16.mxu0 0
        %1868 = vmatpush1.bf16.msra.mxu0 %v1837
        %1869 = vmatprep.subr.bf16.mxu0 0
        %1870 = vmatpush2.bf16.msra.mxu0 0
        %1871 = vmatprep.subr.bf16.mxu0 0
        %1872 = vmatpush2.bf16.msra.mxu0 0
        %1873 = vmatprep.subr.bf16.mxu0 0
        %1874 = vmatpush2.bf16.msra.mxu0 0
        %1875 = vmatprep.subr.bf16.mxu0 0
        %1876 = vmatpush2.bf16.msra.mxu0 0
        %1877 = vmatprep.subr.bf16.mxu0 0
        %1878 = vmatpush2.bf16.msra.mxu0 0
        %1879 = vmatprep.subr.bf16.mxu0 0
        %1880 = vmatpush2.bf16.msra.mxu0 0
        %1881 = vmatprep.subr.bf16.mxu0 0
        %1882 = vmatpush2.bf16.msra.mxu0 0
        %1883 = vmatprep.subr.bf16.mxu0 0
        %1884 = vmatpush2.bf16.msra.mxu0 0
        %1885 = vmatprep.mubr.bf16.mxu0 0
        %1886 = vmatmul.mubr.bf16.gmra.mxu0 %v1781
        %v1887 = vpop.f32.mrf.mxu0
        %v1888 = vadd.f32 %v1803, %v1887
        %v1889 = vpop.f32.mrf.mxu0
        %v1890 = vpop.f32.mrf.mxu0
        %v1891 = vpop.f32.mrf.mxu0
        %1892 = vdwg.mxu0
        %v1893 = vadd.f32 %v1314, %v1888
        %1894 = vadd.xlane.f32.xlu0 %v1893
        %v1895 = vpop.xlane.xlu0 %1894
        %v1896 = vrcp.pop 128.0
        %v1897 = vmul.f32 %v1895, %v1896
        %v1898 = vsub.f32 %v1893, %v1897
        %v1899 = vmul.f32 %v1898, %v1898
        %1900 = vadd.xlane.f32.xlu0 %v1899
        %v1901 = vpop.xlane.xlu0 %1900
        %v1902 = vmul.f32 %v1901, %v1896
        %v1903 = vadd.f32 %v1902, 1e-05
        %v1904 = vrsqrt.pop %v1903
        %v1905 = vmul.f32 %v1898, %v1904
        %v1906 = vld [vmem:[%s18] sm:$0x1]
        %v1908 = vlaneseq
        %v1909 = vshrl.u32 %v1908, 7
        %v1910 = vsub.s32 0, %v1909
        %v1911 = vrot.slane %v1906, %v1910
        %v1913 = vmul.f32 %v1905, %v1911
        %v1914 = vld [vmem:[%s19] sm:$0x1]
        %v1916 = vlaneseq
        %v1917 = vshrl.u32 %v1916, 7
        %v1918 = vsub.s32 0, %v1917
        %v1919 = vrot.slane %v1914, %v1918
        %v1921 = vadd.f32 %v1913, %v1919
        %v1922 = vpack.c.bf16 %v1921, %v1921
        %v1923 = vld [vmem:[#allocation15] sm:$0xf]
        %v1924 = vld [vmem:[#allocation15 + $0x4] sm:$0xf]
        %v1925 = vld [vmem:[#allocation15 + $0x8] sm:$0xf]
        %v1926 = vld [vmem:[#allocation15 + $0xc] sm:$0xf]
        %v1927 = vld [vmem:[#allocation15 + $0x10] sm:$0xf]
        %v1928 = vld [vmem:[#allocation15 + $0x14] sm:$0xf]
        %v1929 = vld [vmem:[#allocation15 + $0x18] sm:$0xf]
        %v1930 = vld [vmem:[#allocation15 + $0x1c] sm:$0xf]
        %v1931 = vld [vmem:[#allocation15 + $0x20] sm:$0xf]
        %v1932 = vld [vmem:[#allocation15 + $0x24] sm:$0xf]
        %v1933 = vld [vmem:[#allocation15 + $0x28] sm:$0xf]
        %v1934 = vld [vmem:[#allocation15 + $0x2c] sm:$0xf]
        %v1935 = vld [vmem:[#allocation15 + $0x30] sm:$0xf]
        %v1936 = vld [vmem:[#allocation15 + $0x34] sm:$0xf]
        %v1937 = vld [vmem:[#allocation15 + $0x38] sm:$0xf]
        %v1938 = vld [vmem:[#allocation15 + $0x3c] sm:$0xf]
        %v1939 = vld [vmem:[%s9] sm:$0x1]
        %v1941 = vlaneseq
        %v1942 = vshrl.u32 %v1941, 7
        %v1943 = vsub.s32 0, %v1942
        %v1944 = vrot.slane %v1939, %v1943
        %v1962 = vunpack.c.l.b16 %v1923
        %v1963 = vunpack.c.l.b16 %v1924
        %v1964 = vunpack.c.l.b16 %v1925
        %v1965 = vunpack.c.l.b16 %v1926
        %v1966 = vunpack.c.l.b16 %v1927
        %v1967 = vunpack.c.l.b16 %v1928
        %v1968 = vunpack.c.l.b16 %v1929
        %v1969 = vunpack.c.l.b16 %v1930
        %v1970 = vunpack.c.l.b16 %v1931
        %v1971 = vunpack.c.l.b16 %v1932
        %v1972 = vunpack.c.l.b16 %v1933
        %v1973 = vunpack.c.l.b16 %v1934
        %v1974 = vunpack.c.l.b16 %v1935
        %v1975 = vunpack.c.l.b16 %v1936
        %v1976 = vunpack.c.l.b16 %v1937
        %v1977 = vunpack.c.l.b16 %v1938
        %v1978 = vpack.c.b16 %v1963, %v1962
        %v1979 = vpack.c.b16 %v1965, %v1964
        %v1980 = vpack.c.b16 %v1967, %v1966
        %v1981 = vpack.c.b16 %v1969, %v1968
        %v1982 = vpack.c.b16 %v1971, %v1970
        %v1983 = vpack.c.b16 %v1973, %v1972
        %v1984 = vpack.c.b16 %v1975, %v1974
        %v1985 = vpack.c.b16 %v1977, %v1976
        %1994 = vmatprep.subr.bf16.mxu0 0
        %1995 = vmatpush1.bf16.msra.mxu0 %v1985
        %1996 = vmatprep.subr.bf16.mxu0 0
        %1997 = vmatpush1.bf16.msra.mxu0 %v1984
        %1998 = vmatprep.subr.bf16.mxu0 0
        %1999 = vmatpush1.bf16.msra.mxu0 %v1983
        %2000 = vmatprep.subr.bf16.mxu0 0
        %2001 = vmatpush1.bf16.msra.mxu0 %v1982
        %2002 = vmatprep.subr.bf16.mxu0 0
        %2003 = vmatpush1.bf16.msra.mxu0 %v1981
        %2004 = vmatprep.subr.bf16.mxu0 0
        %2005 = vmatpush1.bf16.msra.mxu0 %v1980
        %2006 = vmatprep.subr.bf16.mxu0 0
        %2007 = vmatpush1.bf16.msra.mxu0 %v1979
        %2008 = vmatprep.subr.bf16.mxu0 0
        %2009 = vmatpush1.bf16.msra.mxu0 %v1978
        %2010 = vmatprep.subr.bf16.mxu0 0
        %2011 = vmatpush2.bf16.msra.mxu0 0
        %2012 = vmatprep.subr.bf16.mxu0 0
        %2013 = vmatpush2.bf16.msra.mxu0 0
        %2014 = vmatprep.subr.bf16.mxu0 0
        %2015 = vmatpush2.bf16.msra.mxu0 0
        %2016 = vmatprep.subr.bf16.mxu0 0
        %2017 = vmatpush2.bf16.msra.mxu0 0
        %2018 = vmatprep.subr.bf16.mxu0 0
        %2019 = vmatpush2.bf16.msra.mxu0 0
        %2020 = vmatprep.subr.bf16.mxu0 0
        %2021 = vmatpush2.bf16.msra.mxu0 0
        %2022 = vmatprep.subr.bf16.mxu0 0
        %2023 = vmatpush2.bf16.msra.mxu0 0
        %2024 = vmatprep.subr.bf16.mxu0 0
        %2025 = vmatpush2.bf16.msra.mxu0 0
        %2026 = vmatprep.mubr.bf16.mxu0 0
        %2027 = vmatmul.mubr.bf16.gmra.mxu0 %v1922
        %v2028 = vpop.f32.mrf.mxu0
        %v2029 = vadd.f32 %v1944, %v2028
        %v2030 = vpop.f32.mrf.mxu0
        %v2031 = vpop.f32.mrf.mxu0
        %v2032 = vpop.f32.mrf.mxu0
        %2033 = vdwg.mxu0
        %v2034 = vld [vmem:[#allocation3] sm:$0xff]
        %v2035 = vld [vmem:[#allocation3 + $0x10] sm:$0xff]
        %v2036 = vld [vmem:[#allocation3 + $0x8] sm:$0xff]
        %v2037 = vld [vmem:[#allocation3 + $0x18] sm:$0xff]
        %v2038 = vpack.c.bf16 %v2029, %v2029
        %v2039 = vpack.c.bf16 %v2035, %v2034
        %v2040 = vpack.c.bf16 %v2037, %v2036
        %v2042 = vsel %vm1324, %v2038, 0
        %v2045 = vsel %vm1324, %v2039, 0
        %2047 = vmatprep.subr.bf16.mxu0 0
        %2048 = vmatpush1.bf16.xpose.msra.mxu0 0
        %2049 = vmatprep.subr.bf16.mxu0 0
        %2050 = vmatpush1.bf16.xpose.msra.mxu0 0
        %2051 = vmatprep.subr.bf16.mxu0 0
        %2052 = vmatpush1.bf16.xpose.msra.mxu0 0
        %2053 = vmatprep.subr.bf16.mxu0 0
        %2054 = vmatpush1.bf16.xpose.msra.mxu0 0
        %2055 = vmatprep.subr.bf16.mxu0 0
        %2056 = vmatpush1.bf16.xpose.msra.mxu0 0
        %2057 = vmatprep.subr.bf16.mxu0 0
        %2058 = vmatpush1.bf16.xpose.msra.mxu0 0
        %2059 = vmatprep.subr.bf16.mxu0 0
        %2060 = vmatpush1.bf16.xpose.msra.mxu0 0
        %2061 = vmatprep.subr.bf16.mxu0 0
        %2062 = vmatpush1.bf16.xpose.msra.mxu0 %v2045
        %2063 = vmatprep.subr.bf16.mxu0 0
        %2064 = vmatpush2.bf16.xpose.msra.mxu0 0
        %2065 = vmatprep.subr.bf16.mxu0 0
        %2066 = vmatpush2.bf16.xpose.msra.mxu0 0
        %2067 = vmatprep.subr.bf16.mxu0 0
        %2068 = vmatpush2.bf16.xpose.msra.mxu0 0
        %2069 = vmatprep.subr.bf16.mxu0 0
        %2070 = vmatpush2.bf16.xpose.msra.mxu0 0
        %2071 = vmatprep.subr.bf16.mxu0 0
        %2072 = vmatpush2.bf16.xpose.msra.mxu0 0
        %2073 = vmatprep.subr.bf16.mxu0 0
        %2074 = vmatpush2.bf16.xpose.msra.mxu0 0
        %2075 = vmatprep.subr.bf16.mxu0 0
        %2076 = vmatpush2.bf16.xpose.msra.mxu0 0
        %2077 = vmatprep.subr.bf16.mxu0 0
        %2078 = vmatpush2.bf16.xpose.msra.mxu0 0
        %2079 = vmatprep.mubr.bf16.mxu0 0
        %2080 = vmatmul.mubr.bf16.gmra.mxu0 %v2042
        %v2081 = vpop.f32.mrf.mxu0
        %v2082 = vadd.f32 %v1308, %v2081
        %v2083 = vpop.f32.mrf.mxu0
        %v2084 = vpop.f32.mrf.mxu0
        %v2085 = vpop.f32.mrf.mxu0
        %2086 = vdwg.mxu0
        %vm2087 = vcmask 130048
        %v2088 = vsel %vm2087, %v2082, -inf
        %2089 = vmax.xlane.f32.xlu0 %v2088
        %v2090 = vpop.xlane.xlu0 %2089
        %v2091 = vsub.f32 %v2082, %v2090
        %v2092 = vmul.f32 %v2091, 1.442695
        %v2093 = vpow.pop %v2092
        %v2094 = vsel %vm2087, %v2093, 0.0
        %2095 = vadd.xlane.f32.xlu0 %v2094
        %v2096 = vpop.xlane.xlu0 %2095
        %v2097 = vrcp.pop %v2096
        %v2098 = vmul.f32 %v2093, %v2097
        %v2099 = vpack.c.bf16 %v2098, %v2098
        %v2101 = vsel %vm2087, %v2099, 0
        %2103 = vmatprep.subr.bf16.mxu0 0
        %2104 = vmatpush1.bf16.msra.mxu0 0
        %2105 = vmatprep.subr.bf16.mxu0 0
        %2106 = vmatpush1.bf16.msra.mxu0 0
        %2107 = vmatprep.subr.bf16.mxu0 0
        %2108 = vmatpush1.bf16.msra.mxu0 0
        %2109 = vmatprep.subr.bf16.mxu0 0
        %2110 = vmatpush1.bf16.msra.mxu0 0
        %2111 = vmatprep.subr.bf16.mxu0 0
        %2112 = vmatpush1.bf16.msra.mxu0 0
        %2113 = vmatprep.subr.bf16.mxu0 0
        %2114 = vmatpush1.bf16.msra.mxu0 0
        %2115 = vmatprep.subr.bf16.mxu0 0
        %2116 = vmatpush1.bf16.msra.mxu0 0
        %2117 = vmatprep.subr.bf16.mxu0 0
        %2118 = vmatpush1.bf16.msra.mxu0 %v2040
        %2119 = vmatprep.subr.bf16.mxu0 0
        %2120 = vmatpush2.bf16.msra.mxu0 0
        %2121 = vmatprep.subr.bf16.mxu0 0
        %2122 = vmatpush2.bf16.msra.mxu0 0
        %2123 = vmatprep.subr.bf16.mxu0 0
        %2124 = vmatpush2.bf16.msra.mxu0 0
        %2125 = vmatprep.subr.bf16.mxu0 0
        %2126 = vmatpush2.bf16.msra.mxu0 0
        %2127 = vmatprep.subr.bf16.mxu0 0
        %2128 = vmatpush2.bf16.msra.mxu0 0
        %2129 = vmatprep.subr.bf16.mxu0 0
        %2130 = vmatpush2.bf16.msra.mxu0 0
        %2131 = vmatprep.subr.bf16.mxu0 0
        %2132 = vmatpush2.bf16.msra.mxu0 0
        %2133 = vmatprep.subr.bf16.mxu0 0
        %2134 = vmatpush2.bf16.msra.mxu0 0
        %2135 = vmatprep.mubr.bf16.mxu0 0
        %2136 = vmatmul.mubr.bf16.gmra.mxu0 %v2101
        %v2137 = vpop.f32.mrf.mxu0
        %v2138 = vadd.f32 0.0, %v2137
        %v2139 = vpop.f32.mrf.mxu0
        %v2140 = vpop.f32.mrf.mxu0
        %v2141 = vpop.f32.mrf.mxu0
        %2142 = vdwg.mxu0
        %2144 = vrot.lane.b32.xlu0 %v2038, 96
        %v2145 = vpop.permute.xlu0 %2144
        %2147 = vrot.lane.b32.xlu0 %v2039, 96
        %v2148 = vpop.permute.xlu0 %2147
        %v2150 = vsel %vm1324, %v2145, 0
        %v2153 = vsel %vm1324, %v2148, 0
        %2155 = vmatprep.subr.bf16.mxu0 0
        %2156 = vmatpush1.bf16.xpose.msra.mxu0 0
        %2157 = vmatprep.subr.bf16.mxu0 0
        %2158 = vmatpush1.bf16.xpose.msra.mxu0 0
        %2159 = vmatprep.subr.bf16.mxu0 0
        %2160 = vmatpush1.bf16.xpose.msra.mxu0 0
        %2161 = vmatprep.subr.bf16.mxu0 0
        %2162 = vmatpush1.bf16.xpose.msra.mxu0 0
        %2163 = vmatprep.subr.bf16.mxu0 0
        %2164 = vmatpush1.bf16.xpose.msra.mxu0 0
        %2165 = vmatprep.subr.bf16.mxu0 0
        %2166 = vmatpush1.bf16.xpose.msra.mxu0 0
        %2167 = vmatprep.subr.bf16.mxu0 0
        %2168 = vmatpush1.bf16.xpose.msra.mxu0 0
        %2169 = vmatprep.subr.bf16.mxu0 0
        %2170 = vmatpush1.bf16.xpose.msra.mxu0 %v2153
        %2171 = vmatprep.subr.bf16.mxu0 0
        %2172 = vmatpush2.bf16.xpose.msra.mxu0 0
        %2173 = vmatprep.subr.bf16.mxu0 0
        %2174 = vmatpush2.bf16.xpose.msra.mxu0 0
        %2175 = vmatprep.subr.bf16.mxu0 0
        %2176 = vmatpush2.bf16.xpose.msra.mxu0 0
        %2177 = vmatprep.subr.bf16.mxu0 0
        %2178 = vmatpush2.bf16.xpose.msra.mxu0 0
        %2179 = vmatprep.subr.bf16.mxu0 0
        %2180 = vmatpush2.bf16.xpose.msra.mxu0 0
        %2181 = vmatprep.subr.bf16.mxu0 0
        %2182 = vmatpush2.bf16.xpose.msra.mxu0 0
        %2183 = vmatprep.subr.bf16.mxu0 0
        %2184 = vmatpush2.bf16.xpose.msra.mxu0 0
        %2185 = vmatprep.subr.bf16.mxu0 0
        %2186 = vmatpush2.bf16.xpose.msra.mxu0 0
        %2187 = vmatprep.mubr.bf16.mxu0 0
        %2188 = vmatmul.mubr.bf16.gmra.mxu0 %v2150
        %v2189 = vpop.f32.mrf.mxu0
        %v2190 = vadd.f32 %v1308, %v2189
        %v2191 = vpop.f32.mrf.mxu0
        %v2192 = vpop.f32.mrf.mxu0
        %v2193 = vpop.f32.mrf.mxu0
        %2194 = vdwg.mxu0
        %v2195 = vsel %vm2087, %v2190, -inf
        %2196 = vmax.xlane.f32.xlu0 %v2195
        %v2197 = vpop.xlane.xlu0 %2196
        %v2198 = vsub.f32 %v2190, %v2197
        %v2199 = vmul.f32 %v2198, 1.442695
        %v2200 = vpow.pop %v2199
        %v2201 = vsel %vm2087, %v2200, 0.0
        %2202 = vadd.xlane.f32.xlu0 %v2201
        %v2203 = vpop.xlane.xlu0 %2202
        %v2204 = vrcp.pop %v2203
        %v2205 = vmul.f32 %v2200, %v2204
        %v2206 = vpack.c.bf16 %v2205, %v2205
        %2208 = vrot.lane.b32.xlu0 %v2040, 96
        %v2209 = vpop.permute.xlu0 %2208
        %v2212 = vsel %vm2087, %v2206, 0
        %2214 = vmatprep.subr.bf16.mxu0 0
        %2215 = vmatpush1.bf16.msra.mxu0 0
        %2216 = vmatprep.subr.bf16.mxu0 0
        %2217 = vmatpush1.bf16.msra.mxu0 0
        %2218 = vmatprep.subr.bf16.mxu0 0
        %2219 = vmatpush1.bf16.msra.mxu0 0
        %2220 = vmatprep.subr.bf16.mxu0 0
        %2221 = vmatpush1.bf16.msra.mxu0 0
        %2222 = vmatprep.subr.bf16.mxu0 0
        %2223 = vmatpush1.bf16.msra.mxu0 0
        %2224 = vmatprep.subr.bf16.mxu0 0
        %2225 = vmatpush1.bf16.msra.mxu0 0
        %2226 = vmatprep.subr.bf16.mxu0 0
        %2227 = vmatpush1.bf16.msra.mxu0 0
        %2228 = vmatprep.subr.bf16.mxu0 0
        %2229 = vmatpush1.bf16.msra.mxu0 %v2209
        %2230 = vmatprep.subr.bf16.mxu0 0
        %2231 = vmatpush2.bf16.msra.mxu0 0
        %2232 = vmatprep.subr.bf16.mxu0 0
        %2233 = vmatpush2.bf16.msra.mxu0 0
        %2234 = vmatprep.subr.bf16.mxu0 0
        %2235 = vmatpush2.bf16.msra.mxu0 0
        %2236 = vmatprep.subr.bf16.mxu0 0
        %2237 = vmatpush2.bf16.msra.mxu0 0
        %2238 = vmatprep.subr.bf16.mxu0 0
        %2239 = vmatpush2.bf16.msra.mxu0 0
        %2240 = vmatprep.subr.bf16.mxu0 0
        %2241 = vmatpush2.bf16.msra.mxu0 0
        %2242 = vmatprep.subr.bf16.mxu0 0
        %2243 = vmatpush2.bf16.msra.mxu0 0
        %2244 = vmatprep.subr.bf16.mxu0 0
        %2245 = vmatpush2.bf16.msra.mxu0 0
        %2246 = vmatprep.mubr.bf16.mxu0 0
        %2247 = vmatmul.mubr.bf16.gmra.mxu0 %v2212
        %v2248 = vpop.f32.mrf.mxu0
        %v2249 = vadd.f32 0.0, %v2248
        %v2250 = vpop.f32.mrf.mxu0
        %v2251 = vpop.f32.mrf.mxu0
        %v2252 = vpop.f32.mrf.mxu0
        %2253 = vdwg.mxu0
        %2254 = vrot.lane.b32.xlu0 %v2038, 64
        %v2255 = vpop.permute.xlu0 %2254
        %2256 = vrot.lane.b32.xlu0 %v2039, 64
        %v2257 = vpop.permute.xlu0 %2256
        %v2259 = vsel %vm1324, %v2255, 0
        %v2262 = vsel %vm1324, %v2257, 0
        %2264 = vmatprep.subr.bf16.mxu0 0
        %2265 = vmatpush1.bf16.xpose.msra.mxu0 0
        %2266 = vmatprep.subr.bf16.mxu0 0
        %2267 = vmatpush1.bf16.xpose.msra.mxu0 0
        %2268 = vmatprep.subr.bf16.mxu0 0
        %2269 = vmatpush1.bf16.xpose.msra.mxu0 0
        %2270 = vmatprep.subr.bf16.mxu0 0
        %2271 = vmatpush1.bf16.xpose.msra.mxu0 0
        %2272 = vmatprep.subr.bf16.mxu0 0
        %2273 = vmatpush1.bf16.xpose.msra.mxu0 0
        %2274 = vmatprep.subr.bf16.mxu0 0
        %2275 = vmatpush1.bf16.xpose.msra.mxu0 0
        %2276 = vmatprep.subr.bf16.mxu0 0
        %2277 = vmatpush1.bf16.xpose.msra.mxu0 0
        %2278 = vmatprep.subr.bf16.mxu0 0
        %2279 = vmatpush1.bf16.xpose.msra.mxu0 %v2262
        %2280 = vmatprep.subr.bf16.mxu0 0
        %2281 = vmatpush2.bf16.xpose.msra.mxu0 0
        %2282 = vmatprep.subr.bf16.mxu0 0
        %2283 = vmatpush2.bf16.xpose.msra.mxu0 0
        %2284 = vmatprep.subr.bf16.mxu0 0
        %2285 = vmatpush2.bf16.xpose.msra.mxu0 0
        %2286 = vmatprep.subr.bf16.mxu0 0
        %2287 = vmatpush2.bf16.xpose.msra.mxu0 0
        %2288 = vmatprep.subr.bf16.mxu0 0
        %2289 = vmatpush2.bf16.xpose.msra.mxu0 0
        %2290 = vmatprep.subr.bf16.mxu0 0
        %2291 = vmatpush2.bf16.xpose.msra.mxu0 0
        %2292 = vmatprep.subr.bf16.mxu0 0
        %2293 = vmatpush2.bf16.xpose.msra.mxu0 0
        %2294 = vmatprep.subr.bf16.mxu0 0
        %2295 = vmatpush2.bf16.xpose.msra.mxu0 0
        %2296 = vmatprep.mubr.bf16.mxu0 0
        %2297 = vmatmul.mubr.bf16.gmra.mxu0 %v2259
        %v2298 = vpop.f32.mrf.mxu0
        %v2299 = vadd.f32 %v1308, %v2298
        %v2300 = vpop.f32.mrf.mxu0
        %v2301 = vpop.f32.mrf.mxu0
        %v2302 = vpop.f32.mrf.mxu0
        %2303 = vdwg.mxu0
        %v2304 = vsel %vm2087, %v2299, -inf
        %2305 = vmax.xlane.f32.xlu0 %v2304
        %v2306 = vpop.xlane.xlu0 %2305
        %v2307 = vsub.f32 %v2299, %v2306
        %v2308 = vmul.f32 %v2307, 1.442695
        %v2309 = vpow.pop %v2308
        %v2310 = vsel %vm2087, %v2309, 0.0
        %2311 = vadd.xlane.f32.xlu0 %v2310
        %v2312 = vpop.xlane.xlu0 %2311
        %v2313 = vrcp.pop %v2312
        %v2314 = vmul.f32 %v2309, %v2313
        %v2315 = vpack.c.bf16 %v2314, %v2314
        %2316 = vrot.lane.b32.xlu0 %v2040, 64
        %v2317 = vpop.permute.xlu0 %2316
        %v2320 = vsel %vm2087, %v2315, 0
        %2322 = vmatprep.subr.bf16.mxu0 0
        %2323 = vmatpush1.bf16.msra.mxu0 0
        %2324 = vmatprep.subr.bf16.mxu0 0
        %2325 = vmatpush1.bf16.msra.mxu0 0
        %2326 = vmatprep.subr.bf16.mxu0 0
        %2327 = vmatpush1.bf16.msra.mxu0 0
        %2328 = vmatprep.subr.bf16.mxu0 0
        %2329 = vmatpush1.bf16.msra.mxu0 0
        %2330 = vmatprep.subr.bf16.mxu0 0
        %2331 = vmatpush1.bf16.msra.mxu0 0
        %2332 = vmatprep.subr.bf16.mxu0 0
        %2333 = vmatpush1.bf16.msra.mxu0 0
        %2334 = vmatprep.subr.bf16.mxu0 0
        %2335 = vmatpush1.bf16.msra.mxu0 0
        %2336 = vmatprep.subr.bf16.mxu0 0
        %2337 = vmatpush1.bf16.msra.mxu0 %v2317
        %2338 = vmatprep.subr.bf16.mxu0 0
        %2339 = vmatpush2.bf16.msra.mxu0 0
        %2340 = vmatprep.subr.bf16.mxu0 0
        %2341 = vmatpush2.bf16.msra.mxu0 0
        %2342 = vmatprep.subr.bf16.mxu0 0
        %2343 = vmatpush2.bf16.msra.mxu0 0
        %2344 = vmatprep.subr.bf16.mxu0 0
        %2345 = vmatpush2.bf16.msra.mxu0 0
        %2346 = vmatprep.subr.bf16.mxu0 0
        %2347 = vmatpush2.bf16.msra.mxu0 0
        %2348 = vmatprep.subr.bf16.mxu0 0
        %2349 = vmatpush2.bf16.msra.mxu0 0
        %2350 = vmatprep.subr.bf16.mxu0 0
        %2351 = vmatpush2.bf16.msra.mxu0 0
        %2352 = vmatprep.subr.bf16.mxu0 0
        %2353 = vmatpush2.bf16.msra.mxu0 0
        %2354 = vmatprep.mubr.bf16.mxu0 0
        %2355 = vmatmul.mubr.bf16.gmra.mxu0 %v2320
        %v2356 = vpop.f32.mrf.mxu0
        %v2357 = vadd.f32 0.0, %v2356
        %v2358 = vpop.f32.mrf.mxu0
        %v2359 = vpop.f32.mrf.mxu0
        %v2360 = vpop.f32.mrf.mxu0
        %2361 = vdwg.mxu0
        %2362 = vrot.lane.b32.xlu0 %v2038, 32
        %v2363 = vpop.permute.xlu0 %2362
        %2364 = vrot.lane.b32.xlu0 %v2039, 32
        %v2365 = vpop.permute.xlu0 %2364
        %v2367 = vsel %vm1324, %v2363, 0
        %v2370 = vsel %vm1324, %v2365, 0
        %2372 = vmatprep.subr.bf16.mxu0 0
        %2373 = vmatpush1.bf16.xpose.msra.mxu0 0
        %2374 = vmatprep.subr.bf16.mxu0 0
        %2375 = vmatpush1.bf16.xpose.msra.mxu0 0
        %2376 = vmatprep.subr.bf16.mxu0 0
        %2377 = vmatpush1.bf16.xpose.msra.mxu0 0
        %2378 = vmatprep.subr.bf16.mxu0 0
        %2379 = vmatpush1.bf16.xpose.msra.mxu0 0
        %2380 = vmatprep.subr.bf16.mxu0 0
        %2381 = vmatpush1.bf16.xpose.msra.mxu0 0
        %2382 = vmatprep.subr.bf16.mxu0 0
        %2383 = vmatpush1.bf16.xpose.msra.mxu0 0
        %2384 = vmatprep.subr.bf16.mxu0 0
        %2385 = vmatpush1.bf16.xpose.msra.mxu0 0
        %2386 = vmatprep.subr.bf16.mxu0 0
        %2387 = vmatpush1.bf16.xpose.msra.mxu0 %v2370
        %2388 = vmatprep.subr.bf16.mxu0 0
        %2389 = vmatpush2.bf16.xpose.msra.mxu0 0
        %2390 = vmatprep.subr.bf16.mxu0 0
        %2391 = vmatpush2.bf16.xpose.msra.mxu0 0
        %2392 = vmatprep.subr.bf16.mxu0 0
        %2393 = vmatpush2.bf16.xpose.msra.mxu0 0
        %2394 = vmatprep.subr.bf16.mxu0 0
        %2395 = vmatpush2.bf16.xpose.msra.mxu0 0
        %2396 = vmatprep.subr.bf16.mxu0 0
        %2397 = vmatpush2.bf16.xpose.msra.mxu0 0
        %2398 = vmatprep.subr.bf16.mxu0 0
        %2399 = vmatpush2.bf16.xpose.msra.mxu0 0
        %2400 = vmatprep.subr.bf16.mxu0 0
        %2401 = vmatpush2.bf16.xpose.msra.mxu0 0
        %2402 = vmatprep.subr.bf16.mxu0 0
        %2403 = vmatpush2.bf16.xpose.msra.mxu0 0
        %2404 = vmatprep.mubr.bf16.mxu0 0
        %2405 = vmatmul.mubr.bf16.gmra.mxu0 %v2367
        %v2406 = vpop.f32.mrf.mxu0
        %v2407 = vadd.f32 %v1308, %v2406
        %v2408 = vpop.f32.mrf.mxu0
        %v2409 = vpop.f32.mrf.mxu0
        %v2410 = vpop.f32.mrf.mxu0
        %2411 = vdwg.mxu0
        %v2412 = vsel %vm2087, %v2407, -inf
        %2413 = vmax.xlane.f32.xlu0 %v2412
        %v2414 = vpop.xlane.xlu0 %2413
        %v2415 = vsub.f32 %v2407, %v2414
        %v2416 = vmul.f32 %v2415, 1.442695
        %v2417 = vpow.pop %v2416
        %v2418 = vsel %vm2087, %v2417, 0.0
        %2419 = vadd.xlane.f32.xlu0 %v2418
        %v2420 = vpop.xlane.xlu0 %2419
        %v2421 = vrcp.pop %v2420
        %v2422 = vmul.f32 %v2417, %v2421
        %v2423 = vpack.c.bf16 %v2422, %v2422
        %2424 = vrot.lane.b32.xlu0 %v2040, 32
        %v2425 = vpop.permute.xlu0 %2424
        %v2428 = vsel %vm2087, %v2423, 0
        %2430 = vmatprep.subr.bf16.mxu0 0
        %2431 = vmatpush1.bf16.msra.mxu0 0
        %2432 = vmatprep.subr.bf16.mxu0 0
        %2433 = vmatpush1.bf16.msra.mxu0 0
        %2434 = vmatprep.subr.bf16.mxu0 0
        %2435 = vmatpush1.bf16.msra.mxu0 0
        %2436 = vmatprep.subr.bf16.mxu0 0
        %2437 = vmatpush1.bf16.msra.mxu0 0
        %2438 = vmatprep.subr.bf16.mxu0 0
        %2439 = vmatpush1.bf16.msra.mxu0 0
        %2440 = vmatprep.subr.bf16.mxu0 0
        %2441 = vmatpush1.bf16.msra.mxu0 0
        %2442 = vmatprep.subr.bf16.mxu0 0
        %2443 = vmatpush1.bf16.msra.mxu0 0
        %2444 = vmatprep.subr.bf16.mxu0 0
        %2445 = vmatpush1.bf16.msra.mxu0 %v2425
        %2446 = vmatprep.subr.bf16.mxu0 0
        %2447 = vmatpush2.bf16.msra.mxu0 0
        %2448 = vmatprep.subr.bf16.mxu0 0
        %2449 = vmatpush2.bf16.msra.mxu0 0
        %2450 = vmatprep.subr.bf16.mxu0 0
        %2451 = vmatpush2.bf16.msra.mxu0 0
        %2452 = vmatprep.subr.bf16.mxu0 0
        %2453 = vmatpush2.bf16.msra.mxu0 0
        %2454 = vmatprep.subr.bf16.mxu0 0
        %2455 = vmatpush2.bf16.msra.mxu0 0
        %2456 = vmatprep.subr.bf16.mxu0 0
        %2457 = vmatpush2.bf16.msra.mxu0 0
        %2458 = vmatprep.subr.bf16.mxu0 0
        %2459 = vmatpush2.bf16.msra.mxu0 0
        %2460 = vmatprep.subr.bf16.mxu0 0
        %2461 = vmatpush2.bf16.msra.mxu0 0
        %2462 = vmatprep.mubr.bf16.mxu0 0
        %2463 = vmatmul.mubr.bf16.gmra.mxu0 %v2428
        %v2464 = vpop.f32.mrf.mxu0
        %v2465 = vadd.f32 0.0, %v2464
        %v2466 = vpop.f32.mrf.mxu0
        %v2467 = vpop.f32.mrf.mxu0
        %v2468 = vpop.f32.mrf.mxu0
        %2469 = vdwg.mxu0
        %2471 = vrot.lane.b32.xlu0 %v2249, 32
        %v2472 = vpop.permute.xlu0 %2471
        %2475 = vrot.lane.b32.xlu0 %v2357, 64
        %v2476 = vpop.permute.xlu0 %2475
        %2479 = vrot.lane.b32.xlu0 %v2465, 96
        %v2480 = vpop.permute.xlu0 %2479
        %v2482 = vsel %vm1324, %v2138, %v2472
        %v2483 = vsel %vm1777, %v2482, %v2476
        %v2484 = vsel %vm1779, %v2483, %v2480
        %v2485 = vpack.c.bf16 %v2484, %v2484
        %v2486 = vld [vmem:[#allocation18] sm:$0xf]
        %v2487 = vld [vmem:[#allocation18 + $0x4] sm:$0xf]
        %v2488 = vld [vmem:[#allocation18 + $0x8] sm:$0xf]
        %v2489 = vld [vmem:[#allocation18 + $0xc] sm:$0xf]
        %v2490 = vld [vmem:[#allocation18 + $0x10] sm:$0xf]
        %v2491 = vld [vmem:[#allocation18 + $0x14] sm:$0xf]
        %v2492 = vld [vmem:[#allocation18 + $0x18] sm:$0xf]
        %v2493 = vld [vmem:[#allocation18 + $0x1c] sm:$0xf]
        %v2494 = vld [vmem:[#allocation18 + $0x20] sm:$0xf]
        %v2495 = vld [vmem:[#allocation18 + $0x24] sm:$0xf]
        %v2496 = vld [vmem:[#allocation18 + $0x28] sm:$0xf]
        %v2497 = vld [vmem:[#allocation18 + $0x2c] sm:$0xf]
        %v2498 = vld [vmem:[#allocation18 + $0x30] sm:$0xf]
        %v2499 = vld [vmem:[#allocation18 + $0x34] sm:$0xf]
        %v2500 = vld [vmem:[#allocation18 + $0x38] sm:$0xf]
        %v2501 = vld [vmem:[#allocation18 + $0x3c] sm:$0xf]
        %v2502 = vld [vmem:[%s13] sm:$0x1]
        %v2504 = vlaneseq
        %v2505 = vshrl.u32 %v2504, 7
        %v2506 = vsub.s32 0, %v2505
        %v2507 = vrot.slane %v2502, %v2506
        %v2525 = vunpack.c.l.b16 %v2486
        %v2526 = vunpack.c.l.b16 %v2487
        %v2527 = vunpack.c.l.b16 %v2488
        %v2528 = vunpack.c.l.b16 %v2489
        %v2529 = vunpack.c.l.b16 %v2490
        %v2530 = vunpack.c.l.b16 %v2491
        %v2531 = vunpack.c.l.b16 %v2492
        %v2532 = vunpack.c.l.b16 %v2493
        %v2533 = vunpack.c.l.b16 %v2494
        %v2534 = vunpack.c.l.b16 %v2495
        %v2535 = vunpack.c.l.b16 %v2496
        %v2536 = vunpack.c.l.b16 %v2497
        %v2537 = vunpack.c.l.b16 %v2498
        %v2538 = vunpack.c.l.b16 %v2499
        %v2539 = vunpack.c.l.b16 %v2500
        %v2540 = vunpack.c.l.b16 %v2501
        %v2541 = vpack.c.b16 %v2526, %v2525
        %v2542 = vpack.c.b16 %v2528, %v2527
        %v2543 = vpack.c.b16 %v2530, %v2529
        %v2544 = vpack.c.b16 %v2532, %v2531
        %v2545 = vpack.c.b16 %v2534, %v2533
        %v2546 = vpack.c.b16 %v2536, %v2535
        %v2547 = vpack.c.b16 %v2538, %v2537
        %v2548 = vpack.c.b16 %v2540, %v2539
        %2557 = vmatprep.subr.bf16.mxu0 0
        %2558 = vmatpush1.bf16.msra.mxu0 %v2548
        %2559 = vmatprep.subr.bf16.mxu0 0
        %2560 = vmatpush1.bf16.msra.mxu0 %v2547
        %2561 = vmatprep.subr.bf16.mxu0 0
        %2562 = vmatpush1.bf16.msra.mxu0 %v2546
        %2563 = vmatprep.subr.bf16.mxu0 0
        %2564 = vmatpush1.bf16.msra.mxu0 %v2545
        %2565 = vmatprep.subr.bf16.mxu0 0
        %2566 = vmatpush1.bf16.msra.mxu0 %v2544
        %2567 = vmatprep.subr.bf16.mxu0 0
        %2568 = vmatpush1.bf16.msra.mxu0 %v2543
        %2569 = vmatprep.subr.bf16.mxu0 0
        %2570 = vmatpush1.bf16.msra.mxu0 %v2542
        %2571 = vmatprep.subr.bf16.mxu0 0
        %2572 = vmatpush1.bf16.msra.mxu0 %v2541
        %2573 = vmatprep.subr.bf16.mxu0 0
        %2574 = vmatpush2.bf16.msra.mxu0 0
        %2575 = vmatprep.subr.bf16.mxu0 0
        %2576 = vmatpush2.bf16.msra.mxu0 0
        %2577 = vmatprep.subr.bf16.mxu0 0
        %2578 = vmatpush2.bf16.msra.mxu0 0
        %2579 = vmatprep.subr.bf16.mxu0 0
        %2580 = vmatpush2.bf16.msra.mxu0 0
        %2581 = vmatprep.subr.bf16.mxu0 0
        %2582 = vmatpush2.bf16.msra.mxu0 0
        %2583 = vmatprep.subr.bf16.mxu0 0
        %2584 = vmatpush2.bf16.msra.mxu0 0
        %2585 = vmatprep.subr.bf16.mxu0 0
        %2586 = vmatpush2.bf16.msra.mxu0 0
        %2587 = vmatprep.subr.bf16.mxu0 0
        %2588 = vmatpush2.bf16.msra.mxu0 0
        %2589 = vmatprep.mubr.bf16.mxu0 0
        %2590 = vmatmul.mubr.bf16.gmra.mxu0 %v2485
        %v2591 = vpop.f32.mrf.mxu0
        %v2592 = vadd.f32 %v2507, %v2591
        %v2593 = vpop.f32.mrf.mxu0
        %v2594 = vpop.f32.mrf.mxu0
        %v2595 = vpop.f32.mrf.mxu0
        %2596 = vdwg.mxu0
        %v2597 = vadd.f32 %v1921, %v2592
        %2598 = vadd.xlane.f32.xlu0 %v2597
        %v2599 = vpop.xlane.xlu0 %2598
        %v2600 = vmul.f32 %v2599, %v1896
        %v2601 = vsub.f32 %v2597, %v2600
        %v2602 = vmul.f32 %v2601, %v2601
        %2603 = vadd.xlane.f32.xlu0 %v2602
        %v2604 = vpop.xlane.xlu0 %2603
        %v2605 = vmul.f32 %v2604, %v1896
        %v2606 = vadd.f32 %v2605, 1e-05
        %v2607 = vrsqrt.pop %v2606
        %v2608 = vmul.f32 %v2601, %v2607
        %v2609 = vld [vmem:[%s20] sm:$0x1]
        %v2611 = vlaneseq
        %v2612 = vshrl.u32 %v2611, 7
        %v2613 = vsub.s32 0, %v2612
        %v2614 = vrot.slane %v2609, %v2613
        %v2616 = vmul.f32 %v2608, %v2614
        %v2617 = vld [vmem:[%s21] sm:$0x1]
        %v2619 = vlaneseq
        %v2620 = vshrl.u32 %v2619, 7
        %v2621 = vsub.s32 0, %v2620
        %v2622 = vrot.slane %v2617, %v2621
        %v2624 = vadd.f32 %v2616, %v2622
        %v2625 = vpack.c.bf16 %v2624, %v2624
        %v2626 = vld [vmem:[#allocation19] sm:$0xff]
        %v2627 = vld [vmem:[#allocation19 + $0x8] sm:$0xff]
        %v2628 = vld [vmem:[#allocation19 + $0x10] sm:$0xff]
        %v2629 = vld [vmem:[#allocation19 + $0x18] sm:$0xff]
        %v2630 = vld [vmem:[#allocation19 + $0x20] sm:$0xff]
        %v2631 = vld [vmem:[#allocation19 + $0x28] sm:$0xff]
        %v2632 = vld [vmem:[#allocation19 + $0x30] sm:$0xff]
        %v2633 = vld [vmem:[#allocation19 + $0x38] sm:$0xff]
        %v2634 = vld [vmem:[#allocation19 + $0x40] sm:$0xff]
        %v2635 = vld [vmem:[#allocation19 + $0x48] sm:$0xff]
        %v2636 = vld [vmem:[#allocation19 + $0x50] sm:$0xff]
        %v2637 = vld [vmem:[#allocation19 + $0x58] sm:$0xff]
        %v2638 = vld [vmem:[#allocation19 + $0x60] sm:$0xff]
        %v2639 = vld [vmem:[#allocation19 + $0x68] sm:$0xff]
        %v2640 = vld [vmem:[#allocation19 + $0x70] sm:$0xff]
        %v2641 = vld [vmem:[#allocation19 + $0x78] sm:$0xff]
        %v2642 = vld [vmem:[%s15] sm:$0x3]
        %v2644 = vlaneseq
        %v2645 = vshrl.u32 %v2644, 7
        %v2646 = vsub.s32 0, %v2645
        %v2647 = vrot.slane %v2642, %v2646
        %v2648 = vlaneseq
        %v2649 = vshrl.u32 %v2648, 7
        %v2650 = vsub.s32 1, %v2649
        %v2651 = vrot.slane %v2642, %v2650
        %v2670 = vunpack.c.l.b16 %v2626
        %v2671 = vunpack.c.h.b16 %v2626
        %v2672 = vunpack.c.l.b16 %v2627
        %v2673 = vunpack.c.h.b16 %v2627
        %v2674 = vunpack.c.l.b16 %v2628
        %v2675 = vunpack.c.h.b16 %v2628
        %v2676 = vunpack.c.l.b16 %v2629
        %v2677 = vunpack.c.h.b16 %v2629
        %v2678 = vunpack.c.l.b16 %v2630
        %v2679 = vunpack.c.h.b16 %v2630
        %v2680 = vunpack.c.l.b16 %v2631
        %v2681 = vunpack.c.h.b16 %v2631
        %v2682 = vunpack.c.l.b16 %v2632
        %v2683 = vunpack.c.h.b16 %v2632
        %v2684 = vunpack.c.l.b16 %v2633
        %v2685 = vunpack.c.h.b16 %v2633
        %v2686 = vunpack.c.l.b16 %v2634
        %v2687 = vunpack.c.h.b16 %v2634
        %v2688 = vunpack.c.l.b16 %v2635
        %v2689 = vunpack.c.h.b16 %v2635
        %v2690 = vunpack.c.l.b16 %v2636
        %v2691 = vunpack.c.h.b16 %v2636
        %v2692 = vunpack.c.l.b16 %v2637
        %v2693 = vunpack.c.h.b16 %v2637
        %v2694 = vunpack.c.l.b16 %v2638
        %v2695 = vunpack.c.h.b16 %v2638
        %v2696 = vunpack.c.l.b16 %v2639
        %v2697 = vunpack.c.h.b16 %v2639
        %v2698 = vunpack.c.l.b16 %v2640
        %v2699 = vunpack.c.h.b16 %v2640
        %v2700 = vunpack.c.l.b16 %v2641
        %v2701 = vunpack.c.h.b16 %v2641
        %v2702 = vpack.c.b16 %v2672, %v2670
        %v2703 = vpack.c.b16 %v2673, %v2671
        %v2704 = vpack.c.b16 %v2676, %v2674
        %v2705 = vpack.c.b16 %v2677, %v2675
        %v2706 = vpack.c.b16 %v2680, %v2678
        %v2707 = vpack.c.b16 %v2681, %v2679
        %v2708 = vpack.c.b16 %v2684, %v2682
        %v2709 = vpack.c.b16 %v2685, %v2683
        %v2710 = vpack.c.b16 %v2688, %v2686
        %v2711 = vpack.c.b16 %v2689, %v2687
        %v2712 = vpack.c.b16 %v2692, %v2690
        %v2713 = vpack.c.b16 %v2693, %v2691
        %v2714 = vpack.c.b16 %v2696, %v2694
        %v2715 = vpack.c.b16 %v2697, %v2695
        %v2716 = vpack.c.b16 %v2700, %v2698
        %v2717 = vpack.c.b16 %v2701, %v2699
        %2734 = vmatprep.subr.bf16.mxu0 %v2717
        %2735 = vmatpush1.bf16.msra.mxu0 %v2716
        %2736 = vmatprep.subr.bf16.mxu0 %v2715
        %2737 = vmatpush1.bf16.msra.mxu0 %v2714
        %2738 = vmatprep.subr.bf16.mxu0 %v2713
        %2739 = vmatpush1.bf16.msra.mxu0 %v2712
        %2740 = vmatprep.subr.bf16.mxu0 %v2711
        %2741 = vmatpush1.bf16.msra.mxu0 %v2710
        %2742 = vmatprep.subr.bf16.mxu0 %v2709
        %2743 = vmatpush1.bf16.msra.mxu0 %v2708
        %2744 = vmatprep.subr.bf16.mxu0 %v2707
        %2745 = vmatpush1.bf16.msra.mxu0 %v2706
        %2746 = vmatprep.subr.bf16.mxu0 %v2705
        %2747 = vmatpush1.bf16.msra.mxu0 %v2704
        %2748 = vmatprep.subr.bf16.mxu0 %v2703
        %2749 = vmatpush1.bf16.msra.mxu0 %v2702
        %2750 = vmatprep.subr.bf16.mxu0 0
        %2751 = vmatpush2.bf16.msra.mxu0 0
        %2752 = vmatprep.subr.bf16.mxu0 0
        %2753 = vmatpush2.bf16.msra.mxu0 0
        %2754 = vmatprep.subr.bf16.mxu0 0
        %2755 = vmatpush2.bf16.msra.mxu0 0
        %2756 = vmatprep.subr.bf16.mxu0 0
        %2757 = vmatpush2.bf16.msra.mxu0 0
        %2758 = vmatprep.subr.bf16.mxu0 0
        %2759 = vmatpush2.bf16.msra.mxu0 0
        %2760 = vmatprep.subr.bf16.mxu0 0
        %2761 = vmatpush2.bf16.msra.mxu0 0
        %2762 = vmatprep.subr.bf16.mxu0 0
        %2763 = vmatpush2.bf16.msra.mxu0 0
        %2764 = vmatprep.subr.bf16.mxu0 0
        %2765 = vmatpush2.bf16.msra.mxu0 0
        %2766 = vmatprep.mubr.bf16.mxu0 0
        %2767 = vmatmul.mubr.bf16.gmra.mxu0 %v2625
        %v2768 = vpop.f32.mrf.mxu0
        %v2769 = vadd.f32 %v2647, %v2768
        %v2770 = vpop.f32.mrf.mxu0
        %v2771 = vadd.f32 %v2651, %v2770
        %v2772 = vpop.f32.mrf.mxu0
        %v2773 = vpop.f32.mrf.mxu0
        %2774 = vdwg.mxu0
        %v2775 = vmax.f32 %v2769, 0.0
        %v2776 = vmax.f32 %v2771, 0.0
        %v2777 = vpack.c.bf16 %v2775, %v2775
        %v2778 = vpack.c.bf16 %v2776, %v2776
        %v2779 = vld [vmem:[#allocation21] sm:$0xf]
        %v2780 = vld [vmem:[#allocation21 + $0x4] sm:$0xf]
        %v2781 = vld [vmem:[#allocation21 + $0x8] sm:$0xf]
        %v2782 = vld [vmem:[#allocation21 + $0xc] sm:$0xf]
        %v2783 = vld [vmem:[#allocation21 + $0x10] sm:$0xf]
        %v2784 = vld [vmem:[#allocation21 + $0x14] sm:$0xf]
        %v2785 = vld [vmem:[#allocation21 + $0x18] sm:$0xf]
        %v2786 = vld [vmem:[#allocation21 + $0x1c] sm:$0xf]
        %v2787 = vld [vmem:[#allocation21 + $0x20] sm:$0xf]
        %v2788 = vld [vmem:[#allocation21 + $0x24] sm:$0xf]
        %v2789 = vld [vmem:[#allocation21 + $0x28] sm:$0xf]
        %v2790 = vld [vmem:[#allocation21 + $0x2c] sm:$0xf]
        %v2791 = vld [vmem:[#allocation21 + $0x30] sm:$0xf]
        %v2792 = vld [vmem:[#allocation21 + $0x34] sm:$0xf]
        %v2793 = vld [vmem:[#allocation21 + $0x38] sm:$0xf]
        %v2794 = vld [vmem:[#allocation21 + $0x3c] sm:$0xf]
        %v2795 = vld [vmem:[#allocation21 + $0x40] sm:$0xf]
        %v2796 = vld [vmem:[#allocation21 + $0x44] sm:$0xf]
        %v2797 = vld [vmem:[#allocation21 + $0x48] sm:$0xf]
        %v2798 = vld [vmem:[#allocation21 + $0x4c] sm:$0xf]
        %v2799 = vld [vmem:[#allocation21 + $0x50] sm:$0xf]
        %v2800 = vld [vmem:[#allocation21 + $0x54] sm:$0xf]
        %v2801 = vld [vmem:[#allocation21 + $0x58] sm:$0xf]
        %v2802 = vld [vmem:[#allocation21 + $0x5c] sm:$0xf]
        %v2803 = vld [vmem:[#allocation21 + $0x60] sm:$0xf]
        %v2804 = vld [vmem:[#allocation21 + $0x64] sm:$0xf]
        %v2805 = vld [vmem:[#allocation21 + $0x68] sm:$0xf]
        %v2806 = vld [vmem:[#allocation21 + $0x6c] sm:$0xf]
        %v2807 = vld [vmem:[#allocation21 + $0x70] sm:$0xf]
        %v2808 = vld [vmem:[#allocation21 + $0x74] sm:$0xf]
        %v2809 = vld [vmem:[#allocation21 + $0x78] sm:$0xf]
        %v2810 = vld [vmem:[#allocation21 + $0x7c] sm:$0xf]
        %v2811 = vld [vmem:[%s17] sm:$0x1]
        %v2813 = vlaneseq
        %v2814 = vshrl.u32 %v2813, 7
        %v2815 = vsub.s32 0, %v2814
        %v2816 = vrot.slane %v2811, %v2815
        %v2850 = vunpack.c.l.b16 %v2779
        %v2851 = vunpack.c.l.b16 %v2780
        %v2852 = vunpack.c.l.b16 %v2781
        %v2853 = vunpack.c.l.b16 %v2782
        %v2854 = vunpack.c.l.b16 %v2783
        %v2855 = vunpack.c.l.b16 %v2784
        %v2856 = vunpack.c.l.b16 %v2785
        %v2857 = vunpack.c.l.b16 %v2786
        %v2858 = vunpack.c.l.b16 %v2787
        %v2859 = vunpack.c.l.b16 %v2788
        %v2860 = vunpack.c.l.b16 %v2789
        %v2861 = vunpack.c.l.b16 %v2790
        %v2862 = vunpack.c.l.b16 %v2791
        %v2863 = vunpack.c.l.b16 %v2792
        %v2864 = vunpack.c.l.b16 %v2793
        %v2865 = vunpack.c.l.b16 %v2794
        %v2866 = vunpack.c.l.b16 %v2795
        %v2867 = vunpack.c.l.b16 %v2796
        %v2868 = vunpack.c.l.b16 %v2797
        %v2869 = vunpack.c.l.b16 %v2798
        %v2870 = vunpack.c.l.b16 %v2799
        %v2871 = vunpack.c.l.b16 %v2800
        %v2872 = vunpack.c.l.b16 %v2801
        %v2873 = vunpack.c.l.b16 %v2802
        %v2874 = vunpack.c.l.b16 %v2803
        %v2875 = vunpack.c.l.b16 %v2804
        %v2876 = vunpack.c.l.b16 %v2805
        %v2877 = vunpack.c.l.b16 %v2806
        %v2878 = vunpack.c.l.b16 %v2807
        %v2879 = vunpack.c.l.b16 %v2808
        %v2880 = vunpack.c.l.b16 %v2809
        %v2881 = vunpack.c.l.b16 %v2810
        %v2882 = vpack.c.b16 %v2851, %v2850
        %v2883 = vpack.c.b16 %v2853, %v2852
        %v2884 = vpack.c.b16 %v2855, %v2854
        %v2885 = vpack.c.b16 %v2857, %v2856
        %v2886 = vpack.c.b16 %v2859, %v2858
        %v2887 = vpack.c.b16 %v2861, %v2860
        %v2888 = vpack.c.b16 %v2863, %v2862
        %v2889 = vpack.c.b16 %v2865, %v2864
        %v2890 = vpack.c.b16 %v2867, %v2866
        %v2891 = vpack.c.b16 %v2869, %v2868
        %v2892 = vpack.c.b16 %v2871, %v2870
        %v2893 = vpack.c.b16 %v2873, %v2872
        %v2894 = vpack.c.b16 %v2875, %v2874
        %v2895 = vpack.c.b16 %v2877, %v2876
        %v2896 = vpack.c.b16 %v2879, %v2878
        %v2897 = vpack.c.b16 %v2881, %v2880
        %2914 = vmatprep.subr.bf16.mxu0 0
        %2915 = vmatpush1.bf16.msra.mxu0 %v2889
        %2916 = vmatprep.subr.bf16.mxu0 0
        %2917 = vmatpush1.bf16.msra.mxu0 %v2888
        %2918 = vmatprep.subr.bf16.mxu0 0
        %2919 = vmatpush1.bf16.msra.mxu0 %v2887
        %2920 = vmatprep.subr.bf16.mxu0 0
        %2921 = vmatpush1.bf16.msra.mxu0 %v2886
        %2922 = vmatprep.subr.bf16.mxu0 0
        %2923 = vmatpush1.bf16.msra.mxu0 %v2885
        %2924 = vmatprep.subr.bf16.mxu0 0
        %2925 = vmatpush1.bf16.msra.mxu0 %v2884
        %2926 = vmatprep.subr.bf16.mxu0 0
        %2927 = vmatpush1.bf16.msra.mxu0 %v2883
        %2928 = vmatprep.subr.bf16.mxu0 0
        %2929 = vmatpush1.bf16.msra.mxu0 %v2882
        %2930 = vmatprep.subr.bf16.mxu0 0
        %2931 = vmatpush2.bf16.msra.mxu0 %v2897
        %2932 = vmatprep.subr.bf16.mxu0 0
        %2933 = vmatpush2.bf16.msra.mxu0 %v2896
        %2934 = vmatprep.subr.bf16.mxu0 0
        %2935 = vmatpush2.bf16.msra.mxu0 %v2895
        %2936 = vmatprep.subr.bf16.mxu0 0
        %2937 = vmatpush2.bf16.msra.mxu0 %v2894
        %2938 = vmatprep.subr.bf16.mxu0 0
        %2939 = vmatpush2.bf16.msra.mxu0 %v2893
        %2940 = vmatprep.subr.bf16.mxu0 0
        %2941 = vmatpush2.bf16.msra.mxu0 %v2892
        %2942 = vmatprep.subr.bf16.mxu0 0
        %2943 = vmatpush2.bf16.msra.mxu0 %v2891
        %2944 = vmatprep.subr.bf16.mxu0 0
        %2945 = vmatpush2.bf16.msra.mxu0 %v2890
        %2946 = vmatprep.mubr.bf16.mxu0 %v2778
        %2947 = vmatmul.mubr.bf16.gmra.mxu0 %v2777
        %v2948 = vpop.f32.mrf.mxu0
        %v2949 = vadd.f32 %v2816, %v2948
        %v2950 = vpop.f32.mrf.mxu0
        %v2951 = vpop.f32.mrf.mxu0
        %v2952 = vpop.f32.mrf.mxu0
        %2953 = vdwg.mxu0
        %v2954 = vadd.f32 %v2624, %v2949
        %2955 = vadd.xlane.f32.xlu0 %v2954
        %v2956 = vpop.xlane.xlu0 %2955
        %v2957 = vmul.f32 %v2956, %v1896
        %v2958 = vsub.f32 %v2954, %v2957
        %v2959 = vmul.f32 %v2958, %v2958
        %2960 = vadd.xlane.f32.xlu0 %v2959
        %v2961 = vpop.xlane.xlu0 %2960
        %v2962 = vmul.f32 %v2961, %v1896
        %v2963 = vadd.f32 %v2962, 1e-05
        %v2964 = vrsqrt.pop %v2963
        %v2965 = vmul.f32 %v2958, %v2964
        %v2966 = vld [vmem:[%s22] sm:$0x1]
        %v2968 = vlaneseq
        %v2969 = vshrl.u32 %v2968, 7
        %v2970 = vsub.s32 0, %v2969
        %v2971 = vrot.slane %v2966, %v2970
        %v2973 = vmul.f32 %v2965, %v2971
        %v2974 = vld [vmem:[%s23] sm:$0x1]
        %v2976 = vlaneseq
        %v2977 = vshrl.u32 %v2976, 7
        %v2978 = vsub.s32 0, %v2977
        %v2979 = vrot.slane %v2974, %v2978
        %v2981 = vadd.f32 %v2973, %v2979
        %v2982 = vpack.c.bf16 %v2981, %v2981
        %2983 = vst [vmem:[%s861] sm:$0xf] %v2982
        %s2984 = sand.u32 %s547, 1
        %s2985 = scalar_lea.sflag [#allocation9], %s2984
        %s2986 = sand.u32 %s547, 1
        %s2987 = smul.addr %s2986, 4
        %s2988 = scalar_lea.vmem [#allocation22], %s2987
        // Predicated region
        $region149: #{tpu_custom_call.1} parent=107 // pred_check
          %p2989 = pneg %p557
        $region150: #{tpu_custom_call.1} parent=107 // pred_check_branch
          %2991 = sbr.rel (%p2989) target = $region152
        $region151: #{tpu_custom_call.1} parent=107 // pred_region
          %s2993 = ssub.s32 64, 64
          %2994 = vsyncadd %s2985, %s2993
          %s2995 = sadd.s32 %s58, %s57
          %s2996 = smul.addr %s2995, 64
          %s2997 = scalar_lea.hbm %s24, %s2996
          %s2999 = sshll.u32 %s2988, 4
          %s3000 = int_to_ptr.vmem [resolvable:$true] %s2999
          %3002 = dma.vmem_to_hbm [thread:$0]  %s3000, 64, %s2997, %s2985
        $region152: #{tpu_custom_call.1} parent=107 // pred_fallthru
          _
      $region108: #{tpu_custom_call.1} parent=5 // pred_fallthru
        _
      %p3003 = scmp.le.s32.totalorder 2, %s48
      // Predicated region
      $region153: #{tpu_custom_call.1} parent=5 // pred_check
        %p3004 = pneg %p3003
      $region154: #{tpu_custom_call.1} parent=5 // pred_check_branch
        %3006 = sbr.rel (%p3004) target = $region156
      $region155: #{tpu_custom_call.1} parent=5 // pred_region
        %s3007 = ssub.s32 %s48, 2
        // Predicated region
        $region157: #{tpu_custom_call.1} parent=155 // pred_check
          %p3008 = pneg %p563
        $region158: #{tpu_custom_call.1} parent=155 // pred_check_branch
          %3010 = sbr.rel (%p3008) target = $region160
        $region159: #{tpu_custom_call.1} parent=155 // pred_region
          %s3011 = sand.u32 %s548, 1
          %s3012 = scalar_lea.sflag [#allocation9], %s3011
          %s3013 = sand.u32 %s548, 1
          %s3014 = smul.addr %s3013, 4
          %s3015 = scalar_lea.vmem [#allocation22], %s3014
          %3016 = dma.done %s3012, 64
        $region160: #{tpu_custom_call.1} parent=155 // pred_fallthru
          _
      $region156: #{tpu_custom_call.1} parent=5 // pred_fallthru
        _
    $region6: #{tpu_custom_call.1} parent=1 // loop_footer
      %s52 = sadd.s32 1, %s48
    $region7: #{tpu_custom_call.1} parent=1 // loop_footer_branch
      %47 = sbr.rel target = $region3
    $region8: #{tpu_custom_call.1} parent=1 // loop_exit
      _
    %3017 = vsyncpa [#allocation8], 1
    %s3018 = scalar_lea.sflag [#allocation8], 1
    %3019 = vsyncpa %s3018, 1
    %3020 = vsyncpa [#allocation11], 1
    %s3021 = scalar_lea.sflag [#allocation11], 1
    %3022 = vsyncpa %s3021, 1
    %3023 = vsyncpa [#allocation14], 1
    %3024 = vsyncpa [#allocation17], 1
    %3025 = vsyncpa [#allocation20], 1
    %3026 = vsyncpa [#allocation9], 1
    %s3027 = scalar_lea.sflag [#allocation9], 1
    %3028 = vsyncpa %s3027, 1

</llo_original>
